<compile_context>
chip_gen: v7x
topology: tpu7x:2x2x1
jax: 0.10.0
libtpu: 0.0.40
codegen_flags: <defaults>
</compile_context>

<pallas_src>
import jax
import jax.numpy as jnp
from jax.experimental import pallas as pl
from jax.experimental.pallas import tpu as pltpu

# ---- small, module-consistent shapes ----
HIDDEN = 32
EMB = 16
SRC_VOCAB = 32
TRG_VOCAB = 32
SRC_LEN = 6
TRG_LEN = 8
GROUPS = 2                    # grid over independent batch groups (v7x: one per TC)
B_PER_GROUP = 8               # fills all 8 f32 sublanes of a vreg
BATCH = GROUPS * B_PER_GROUP  # 16 independent sequences
G4H = 4 * HIDDEN              # 128 -> one full lane dimension
TEACHER_FORCING_RATIO = 0.5


# ---------------- fused Pallas kernel ----------------
def _lstm_step(gates_ih, h, c, whh_ref):
    """LSTM cell with the input->gate term precomputed (gates_ih = x @ W_ih + b)."""
    H = HIDDEN
    gates = gates_ih + jnp.dot(h, whh_ref[...], preferred_element_type=jnp.float32)  # [B,4H]
    sig = jax.nn.sigmoid(gates)   # one EUP pass over the whole [B,4H] vreg
    th = jnp.tanh(gates)          # one EUP pass
    i = sig[:, 0 * H:1 * H]
    f = sig[:, 1 * H:2 * H]
    g = th[:, 2 * H:3 * H]
    o = sig[:, 3 * H:4 * H]
    c_new = f * c + i * g
    h_new = o * jnp.tanh(c_new)
    return h_new, c_new


def seq2seq_kernel(tf_ref,            # SMEM [TRG_LEN] int32 (scalar prefetch)
                   src_gates_ref,     # VMEM [SRC_LEN, Bg, 4H]
                   trg_gates_ref,     # VMEM [TRG_LEN, Bg, 4H]
                   enc_whh_ref,       # VMEM [H, 4H]
                   dec_whh_ref,       # VMEM [H, 4H]
                   dec_fused_ref,     # VMEM [V, 4H]  = dec_emb @ dec_wih + dec_b
                   dec_wout_ref,      # VMEM [H, V]
                   dec_bout_ref,      # VMEM [1, V]
                   out_ref):          # VMEM [Bg, TRG_LEN*V]
    B, H, V = B_PER_GROUP, HIDDEN, TRG_VOCAB

    h = jnp.zeros((B, H), jnp.float32)
    c = jnp.zeros((B, H), jnp.float32)

    # ---- encoder: fully unrolled time loop (one h@W_hh matmul per step) ----
    for t in range(SRC_LEN):
        h, c = _lstm_step(src_gates_ref[t], h, c, enc_whh_ref)

    # ---- decoder: fused time loop with in-kernel argmax + teacher forcing ----
    col = jax.lax.broadcasted_iota(jnp.int32, (B, V), 1)          # hoisted
    bout = jnp.broadcast_to(dec_bout_ref[...], (B, V))            # hoisted (no per-iter bcast)

    logit_blocks = [jnp.zeros((B, V), jnp.float32)]               # outputs[0] stays zero
    gates_ih = trg_gates_ref[0]                                   # ih-gates of trg[0]
    for t in range(1, TRG_LEN):
        h, c = _lstm_step(gates_ih, h, c, dec_whh_ref)
        logits = jnp.dot(h, dec_wout_ref[...],
                         preferred_element_type=jnp.float32) + bout          # [B, V]
        logit_blocks.append(logits)

        if t < TRG_LEN - 1:   # last step's next-input is never used -> skip the glue
            # argmax along vocab lanes, lowest index on ties (matches torch.argmax)
            m = jnp.max(logits, axis=1, keepdims=True)
            top1 = jnp.min(jnp.where(logits == m, col, V), axis=1, keepdims=True)
            one_hot = (col == top1).astype(jnp.float32)                      # [B, V]
            # generated-token branch: one matmul straight to the ih gate term
            gates_gen = jnp.dot(one_hot, dec_fused_ref[...],
                                preferred_element_type=jnp.float32)          # [B, 4H]
            gates_ih = jnp.where(tf_ref[t] != 0, trg_gates_ref[t], gates_gen)

    # single lane-dense store: [Bg, TRG_LEN*V] = [8, 256]
    out_ref[...] = jnp.concatenate(logit_blocks, axis=1)


# ---------------- parameter init (uniform(-0.08, 0.08), like init_weights) ----------------
def init_params(key):
    def u(k, shape):
        return jax.random.uniform(k, shape, jnp.float32, -0.08, 0.08)
    ks = jax.random.split(key, 10)
    # NOTE: b_* is the combined (b_ih + b_hh) bias drawn as a single uniform vector
    # (distributionally different from PyTorch's sum of two uniforms, deliberate).
    return {
        "enc_emb":  u(ks[0], (SRC_VOCAB, EMB)),
        "enc_wih":  u(ks[1], (EMB, 4 * HIDDEN)),
        "enc_whh":  u(ks[2], (HIDDEN, 4 * HIDDEN)),
        "enc_b":    u(ks[3], (1, 4 * HIDDEN)),
        "dec_emb":  u(ks[4], (TRG_VOCAB, EMB)),
        "dec_wih":  u(ks[5], (EMB, 4 * HIDDEN)),
        "dec_whh":  u(ks[6], (HIDDEN, 4 * HIDDEN)),
        "dec_b":    u(ks[7], (1, 4 * HIDDEN)),
        "dec_wout": u(ks[8], (HIDDEN, TRG_VOCAB)),
        "dec_bout": u(ks[9], (1, TRG_VOCAB)),
    }


# ---------------- Seq2Seq forward (one fused kernel launch) ----------------
@jax.jit
def seq2seq_forward(params, src, trg, teacher_force_mask):
    """src: [SRC_LEN, B] int32, trg: [TRG_LEN, B] int32,
    teacher_force_mask: [TRG_LEN] bool (deterministic stand-in for random.random())."""
    # Precompute all x @ W_ih + b contributions outside the kernel (tokens known ahead).
    src_emb = params["enc_emb"][src]                                      # [S, B, E]
    trg_emb = params["dec_emb"][trg]                                      # [T, B, E]
    src_gates = src_emb @ params["enc_wih"] + params["enc_b"]             # [S, B, 4H]
    trg_gates = trg_emb @ params["dec_wih"] + params["dec_b"]             # [T, B, 4H]
    dec_fused = params["dec_emb"] @ params["dec_wih"] + params["dec_b"]   # [V, 4H]
    tf_mask = teacher_force_mask.astype(jnp.int32)                        # -> SMEM

    in_specs = [
        pl.BlockSpec((SRC_LEN, B_PER_GROUP, G4H), lambda g, tf: (0, g, 0)),
        pl.BlockSpec((TRG_LEN, B_PER_GROUP, G4H), lambda g, tf: (0, g, 0)),
        pl.BlockSpec((HIDDEN, G4H),               lambda g, tf: (0, 0)),
        pl.BlockSpec((HIDDEN, G4H),               lambda g, tf: (0, 0)),
        pl.BlockSpec((TRG_VOCAB, G4H),            lambda g, tf: (0, 0)),
        pl.BlockSpec((HIDDEN, TRG_VOCAB),         lambda g, tf: (0, 0)),
        pl.BlockSpec((1, TRG_VOCAB),              lambda g, tf: (0, 0)),
    ]
    out_spec = pl.BlockSpec((B_PER_GROUP, TRG_LEN * TRG_VOCAB), lambda g, tf: (g, 0))

    out2d = pl.pallas_call(
        seq2seq_kernel,
        out_shape=jax.ShapeDtypeStruct((BATCH, TRG_LEN * TRG_VOCAB), jnp.float32),
        grid_spec=pltpu.PrefetchScalarGridSpec(
            num_scalar_prefetch=1,
            grid=(GROUPS,),
            in_specs=in_specs,
            out_specs=out_spec,
        ),
        compiler_params=pltpu.CompilerParams(dimension_semantics=("parallel",)),
    )(tf_mask, src_gates, trg_gates,
      params["enc_whh"], params["dec_whh"], dec_fused,
      params["dec_wout"], params["dec_bout"])

    # [B, T*V] -> [T, B, V]
    return out2d.reshape(BATCH, TRG_LEN, TRG_VOCAB).transpose(1, 0, 2)


if __name__ == "__main__":
    key = jax.random.PRNGKey(0)
    k_param, k_src, k_trg, k_tf = jax.random.split(key, 4)

    params = init_params(k_param)
    src = jax.random.randint(k_src, (SRC_LEN, BATCH), 0, SRC_VOCAB, dtype=jnp.int32)
    trg = jax.random.randint(k_trg, (TRG_LEN, BATCH), 0, TRG_VOCAB, dtype=jnp.int32)
    # TODO(synk): PyTorch uses python random.random() per decoder step for teacher
    # forcing; replaced with a deterministic per-step Bernoulli mask at the same ratio.
    teacher_force_mask = jax.random.bernoulli(k_tf, TEACHER_FORCING_RATIO, (TRG_LEN,))

    out = seq2seq_forward(params, src, trg, teacher_force_mask)
    jax.block_until_ready(out)
    assert out.shape == (TRG_LEN, BATCH, TRG_VOCAB)
    assert bool(jnp.all(out[0] == 0.0))
    assert bool(jnp.all(jnp.isfinite(out)))
    print("KERNEL_OK")
</pallas_src>

<mosaic_0001>
module attributes {stable_mosaic.version = 11 : i64} {
  func.func @seq2seq_kernel(%arg0: i32, %arg1: memref<8xi32, #tpu.memory_space<smem>>, %arg2: memref<6x8x128xf32, #tpu.memory_space<vmem>>, %arg3: memref<8x8x128xf32, #tpu.memory_space<vmem>>, %arg4: memref<32x128xf32, #tpu.memory_space<vmem>>, %arg5: memref<32x128xf32, #tpu.memory_space<vmem>>, %arg6: memref<32x128xf32, #tpu.memory_space<vmem>>, %arg7: memref<32x32xf32, #tpu.memory_space<vmem>>, %arg8: memref<1x32xf32, #tpu.memory_space<vmem>>, %arg9: memref<8x256xf32, #tpu.memory_space<vmem>>) attributes {dimension_semantics = [#tpu.dimension_semantics<parallel>], iteration_bounds = array<i64: 2>, scalar_prefetch = 1 : i64, scratch_operands = 0 : i64, tpu.core_type = #tpu.core_type<tc>, window_params = [{transform_indices = @transform_0, window_bounds = array<i64: 6, 8, 128>}, {transform_indices = @transform_1, window_bounds = array<i64: 8, 8, 128>}, {pipeline_mode = #tpu.pipeline_mode<synchronous>, transform_indices = @transform_2, window_bounds = array<i64: 32, 128>}, {pipeline_mode = #tpu.pipeline_mode<synchronous>, transform_indices = @transform_3, window_bounds = array<i64: 32, 128>}, {pipeline_mode = #tpu.pipeline_mode<synchronous>, transform_indices = @transform_4, window_bounds = array<i64: 32, 128>}, {pipeline_mode = #tpu.pipeline_mode<synchronous>, transform_indices = @transform_5, window_bounds = array<i64: 32, 32>}, {pipeline_mode = #tpu.pipeline_mode<synchronous>, transform_indices = @transform_6, window_bounds = array<i64: 1, 32>}, {transform_indices = @transform_7, window_bounds = array<i64: 8, 256>}]} {
    %cst = arith.constant 0.000000e+00 : f32
    %0 = vector.broadcast %cst : f32 to vector<8x32xf32>
    %cst_0 = arith.constant 0.000000e+00 : f32
    %1 = vector.broadcast %cst_0 : f32 to vector<8x32xf32>
    %c0 = arith.constant 0 : index
    %c0_1 = arith.constant 0 : index
    %c0_2 = arith.constant 0 : index
    %2 = vector.load %arg2[%c0, %c0_1, %c0_2] : memref<6x8x128xf32, #tpu.memory_space<vmem>>, vector<1x8x128xf32>
    %3 = vector.shape_cast %2 : vector<1x8x128xf32> to vector<8x128xf32>
    %c0_3 = arith.constant 0 : index
    %c0_4 = arith.constant 0 : index
    %4 = vector.load %arg4[%c0_3, %c0_4] : memref<32x128xf32, #tpu.memory_space<vmem>>, vector<32x128xf32>
    %cst_5 = arith.constant dense<0.000000e+00> : vector<8x128xf32>
    %5 = tpu.matmul %0, %4, %cst_5 {dimension_numbers = #tpu.dot_dimension_numbers<[1], [0], [0], [1], [0, 0, 1, 1], [], []>} : vector<8x32xf32>, vector<32x128xf32>, vector<8x128xf32> -> vector<8x128xf32>
    %6 = arith.addf %3, %5 : vector<8x128xf32>
    %7 = arith.negf %6 : vector<8x128xf32>
    %8 = math.exp %7 : vector<8x128xf32>
    %cst_6 = arith.constant 1.000000e+00 : f32
    %9 = vector.broadcast %cst_6 : f32 to vector<8x128xf32>
    %10 = arith.addf %9, %8 : vector<8x128xf32>
    %11 = arith.divf %9, %10 : vector<8x128xf32>
    %12 = math.tanh %6 : vector<8x128xf32>
    %13 = vector.extract_strided_slice %11 {offsets = [0, 0], sizes = [8, 32], strides = [1, 1]} : vector<8x128xf32> to vector<8x32xf32>
    %14 = vector.extract_strided_slice %11 {offsets = [0, 32], sizes = [8, 32], strides = [1, 1]} : vector<8x128xf32> to vector<8x32xf32>
    %15 = vector.extract_strided_slice %12 {offsets = [0, 64], sizes = [8, 32], strides = [1, 1]} : vector<8x128xf32> to vector<8x32xf32>
    %16 = vector.extract_strided_slice %11 {offsets = [0, 96], sizes = [8, 32], strides = [1, 1]} : vector<8x128xf32> to vector<8x32xf32>
    %17 = arith.mulf %14, %1 : vector<8x32xf32>
    %18 = arith.mulf %13, %15 : vector<8x32xf32>
    %19 = arith.addf %17, %18 : vector<8x32xf32>
    %20 = math.tanh %19 : vector<8x32xf32>
    %21 = arith.mulf %16, %20 : vector<8x32xf32>
    %c1 = arith.constant 1 : index
    %c0_7 = arith.constant 0 : index
    %c0_8 = arith.constant 0 : index
    %22 = vector.load %arg2[%c1, %c0_7, %c0_8] : memref<6x8x128xf32, #tpu.memory_space<vmem>>, vector<1x8x128xf32>
    %23 = vector.shape_cast %22 : vector<1x8x128xf32> to vector<8x128xf32>
    %c0_9 = arith.constant 0 : index
    %c0_10 = arith.constant 0 : index
    %24 = vector.load %arg4[%c0_9, %c0_10] : memref<32x128xf32, #tpu.memory_space<vmem>>, vector<32x128xf32>
    %cst_11 = arith.constant dense<0.000000e+00> : vector<8x128xf32>
    %25 = tpu.matmul %21, %24, %cst_11 {dimension_numbers = #tpu.dot_dimension_numbers<[1], [0], [0], [1], [0, 0, 1, 1], [], []>} : vector<8x32xf32>, vector<32x128xf32>, vector<8x128xf32> -> vector<8x128xf32>
    %26 = arith.addf %23, %25 : vector<8x128xf32>
    %27 = arith.negf %26 : vector<8x128xf32>
    %28 = math.exp %27 : vector<8x128xf32>
    %cst_12 = arith.constant 1.000000e+00 : f32
    %29 = vector.broadcast %cst_12 : f32 to vector<8x128xf32>
    %30 = arith.addf %29, %28 : vector<8x128xf32>
    %31 = arith.divf %29, %30 : vector<8x128xf32>
    %32 = math.tanh %26 : vector<8x128xf32>
    %33 = vector.extract_strided_slice %31 {offsets = [0, 0], sizes = [8, 32], strides = [1, 1]} : vector<8x128xf32> to vector<8x32xf32>
    %34 = vector.extract_strided_slice %31 {offsets = [0, 32], sizes = [8, 32], strides = [1, 1]} : vector<8x128xf32> to vector<8x32xf32>
    %35 = vector.extract_strided_slice %32 {offsets = [0, 64], sizes = [8, 32], strides = [1, 1]} : vector<8x128xf32> to vector<8x32xf32>
    %36 = vector.extract_strided_slice %31 {offsets = [0, 96], sizes = [8, 32], strides = [1, 1]} : vector<8x128xf32> to vector<8x32xf32>
    %37 = arith.mulf %34, %19 : vector<8x32xf32>
    %38 = arith.mulf %33, %35 : vector<8x32xf32>
    %39 = arith.addf %37, %38 : vector<8x32xf32>
    %40 = math.tanh %39 : vector<8x32xf32>
    %41 = arith.mulf %36, %40 : vector<8x32xf32>
    %c2 = arith.constant 2 : index
    %c0_13 = arith.constant 0 : index
    %c0_14 = arith.constant 0 : index
    %42 = vector.load %arg2[%c2, %c0_13, %c0_14] : memref<6x8x128xf32, #tpu.memory_space<vmem>>, vector<1x8x128xf32>
    %43 = vector.shape_cast %42 : vector<1x8x128xf32> to vector<8x128xf32>
    %c0_15 = arith.constant 0 : index
    %c0_16 = arith.constant 0 : index
    %44 = vector.load %arg4[%c0_15, %c0_16] : memref<32x128xf32, #tpu.memory_space<vmem>>, vector<32x128xf32>
    %cst_17 = arith.constant dense<0.000000e+00> : vector<8x128xf32>
    %45 = tpu.matmul %41, %44, %cst_17 {dimension_numbers = #tpu.dot_dimension_numbers<[1], [0], [0], [1], [0, 0, 1, 1], [], []>} : vector<8x32xf32>, vector<32x128xf32>, vector<8x128xf32> -> vector<8x128xf32>
    %46 = arith.addf %43, %45 : vector<8x128xf32>
    %47 = arith.negf %46 : vector<8x128xf32>
    %48 = math.exp %47 : vector<8x128xf32>
    %cst_18 = arith.constant 1.000000e+00 : f32
    %49 = vector.broadcast %cst_18 : f32 to vector<8x128xf32>
    %50 = arith.addf %49, %48 : vector<8x128xf32>
    %51 = arith.divf %49, %50 : vector<8x128xf32>
    %52 = math.tanh %46 : vector<8x128xf32>
    %53 = vector.extract_strided_slice %51 {offsets = [0, 0], sizes = [8, 32], strides = [1, 1]} : vector<8x128xf32> to vector<8x32xf32>
    %54 = vector.extract_strided_slice %51 {offsets = [0, 32], sizes = [8, 32], strides = [1, 1]} : vector<8x128xf32> to vector<8x32xf32>
    %55 = vector.extract_strided_slice %52 {offsets = [0, 64], sizes = [8, 32], strides = [1, 1]} : vector<8x128xf32> to vector<8x32xf32>
    %56 = vector.extract_strided_slice %51 {offsets = [0, 96], sizes = [8, 32], strides = [1, 1]} : vector<8x128xf32> to vector<8x32xf32>
    %57 = arith.mulf %54, %39 : vector<8x32xf32>
    %58 = arith.mulf %53, %55 : vector<8x32xf32>
    %59 = arith.addf %57, %58 : vector<8x32xf32>
    %60 = math.tanh %59 : vector<8x32xf32>
    %61 = arith.mulf %56, %60 : vector<8x32xf32>
    %c3 = arith.constant 3 : index
    %c0_19 = arith.constant 0 : index
    %c0_20 = arith.constant 0 : index
    %62 = vector.load %arg2[%c3, %c0_19, %c0_20] : memref<6x8x128xf32, #tpu.memory_space<vmem>>, vector<1x8x128xf32>
    %63 = vector.shape_cast %62 : vector<1x8x128xf32> to vector<8x128xf32>
    %c0_21 = arith.constant 0 : index
    %c0_22 = arith.constant 0 : index
    %64 = vector.load %arg4[%c0_21, %c0_22] : memref<32x128xf32, #tpu.memory_space<vmem>>, vector<32x128xf32>
    %cst_23 = arith.constant dense<0.000000e+00> : vector<8x128xf32>
    %65 = tpu.matmul %61, %64, %cst_23 {dimension_numbers = #tpu.dot_dimension_numbers<[1], [0], [0], [1], [0, 0, 1, 1], [], []>} : vector<8x32xf32>, vector<32x128xf32>, vector<8x128xf32> -> vector<8x128xf32>
    %66 = arith.addf %63, %65 : vector<8x128xf32>
    %67 = arith.negf %66 : vector<8x128xf32>
    %68 = math.exp %67 : vector<8x128xf32>
    %cst_24 = arith.constant 1.000000e+00 : f32
    %69 = vector.broadcast %cst_24 : f32 to vector<8x128xf32>
    %70 = arith.addf %69, %68 : vector<8x128xf32>
    %71 = arith.divf %69, %70 : vector<8x128xf32>
    %72 = math.tanh %66 : vector<8x128xf32>
    %73 = vector.extract_strided_slice %71 {offsets = [0, 0], sizes = [8, 32], strides = [1, 1]} : vector<8x128xf32> to vector<8x32xf32>
    %74 = vector.extract_strided_slice %71 {offsets = [0, 32], sizes = [8, 32], strides = [1, 1]} : vector<8x128xf32> to vector<8x32xf32>
    %75 = vector.extract_strided_slice %72 {offsets = [0, 64], sizes = [8, 32], strides = [1, 1]} : vector<8x128xf32> to vector<8x32xf32>
    %76 = vector.extract_strided_slice %71 {offsets = [0, 96], sizes = [8, 32], strides = [1, 1]} : vector<8x128xf32> to vector<8x32xf32>
    %77 = arith.mulf %74, %59 : vector<8x32xf32>
    %78 = arith.mulf %73, %75 : vector<8x32xf32>
    %79 = arith.addf %77, %78 : vector<8x32xf32>
    %80 = math.tanh %79 : vector<8x32xf32>
    %81 = arith.mulf %76, %80 : vector<8x32xf32>
    %c4 = arith.constant 4 : index
    %c0_25 = arith.constant 0 : index
    %c0_26 = arith.constant 0 : index
    %82 = vector.load %arg2[%c4, %c0_25, %c0_26] : memref<6x8x128xf32, #tpu.memory_space<vmem>>, vector<1x8x128xf32>
    %83 = vector.shape_cast %82 : vector<1x8x128xf32> to vector<8x128xf32>
    %c0_27 = arith.constant 0 : index
    %c0_28 = arith.constant 0 : index
    %84 = vector.load %arg4[%c0_27, %c0_28] : memref<32x128xf32, #tpu.memory_space<vmem>>, vector<32x128xf32>
    %cst_29 = arith.constant dense<0.000000e+00> : vector<8x128xf32>
    %85 = tpu.matmul %81, %84, %cst_29 {dimension_numbers = #tpu.dot_dimension_numbers<[1], [0], [0], [1], [0, 0, 1, 1], [], []>} : vector<8x32xf32>, vector<32x128xf32>, vector<8x128xf32> -> vector<8x128xf32>
    %86 = arith.addf %83, %85 : vector<8x128xf32>
    %87 = arith.negf %86 : vector<8x128xf32>
    %88 = math.exp %87 : vector<8x128xf32>
    %cst_30 = arith.constant 1.000000e+00 : f32
    %89 = vector.broadcast %cst_30 : f32 to vector<8x128xf32>
    %90 = arith.addf %89, %88 : vector<8x128xf32>
    %91 = arith.divf %89, %90 : vector<8x128xf32>
    %92 = math.tanh %86 : vector<8x128xf32>
    %93 = vector.extract_strided_slice %91 {offsets = [0, 0], sizes = [8, 32], strides = [1, 1]} : vector<8x128xf32> to vector<8x32xf32>
    %94 = vector.extract_strided_slice %91 {offsets = [0, 32], sizes = [8, 32], strides = [1, 1]} : vector<8x128xf32> to vector<8x32xf32>
    %95 = vector.extract_strided_slice %92 {offsets = [0, 64], sizes = [8, 32], strides = [1, 1]} : vector<8x128xf32> to vector<8x32xf32>
    %96 = vector.extract_strided_slice %91 {offsets = [0, 96], sizes = [8, 32], strides = [1, 1]} : vector<8x128xf32> to vector<8x32xf32>
    %97 = arith.mulf %94, %79 : vector<8x32xf32>
    %98 = arith.mulf %93, %95 : vector<8x32xf32>
    %99 = arith.addf %97, %98 : vector<8x32xf32>
    %100 = math.tanh %99 : vector<8x32xf32>
    %101 = arith.mulf %96, %100 : vector<8x32xf32>
    %c5 = arith.constant 5 : index
    %c0_31 = arith.constant 0 : index
    %c0_32 = arith.constant 0 : index
    %102 = vector.load %arg2[%c5, %c0_31, %c0_32] : memref<6x8x128xf32, #tpu.memory_space<vmem>>, vector<1x8x128xf32>
    %103 = vector.shape_cast %102 : vector<1x8x128xf32> to vector<8x128xf32>
    %c0_33 = arith.constant 0 : index
    %c0_34 = arith.constant 0 : index
    %104 = vector.load %arg4[%c0_33, %c0_34] : memref<32x128xf32, #tpu.memory_space<vmem>>, vector<32x128xf32>
    %cst_35 = arith.constant dense<0.000000e+00> : vector<8x128xf32>
    %105 = tpu.matmul %101, %104, %cst_35 {dimension_numbers = #tpu.dot_dimension_numbers<[1], [0], [0], [1], [0, 0, 1, 1], [], []>} : vector<8x32xf32>, vector<32x128xf32>, vector<8x128xf32> -> vector<8x128xf32>
    %106 = arith.addf %103, %105 : vector<8x128xf32>
    %107 = arith.negf %106 : vector<8x128xf32>
    %108 = math.exp %107 : vector<8x128xf32>
    %cst_36 = arith.constant 1.000000e+00 : f32
    %109 = vector.broadcast %cst_36 : f32 to vector<8x128xf32>
    %110 = arith.addf %109, %108 : vector<8x128xf32>
    %111 = arith.divf %109, %110 : vector<8x128xf32>
    %112 = math.tanh %106 : vector<8x128xf32>
    %113 = vector.extract_strided_slice %111 {offsets = [0, 0], sizes = [8, 32], strides = [1, 1]} : vector<8x128xf32> to vector<8x32xf32>
    %114 = vector.extract_strided_slice %111 {offsets = [0, 32], sizes = [8, 32], strides = [1, 1]} : vector<8x128xf32> to vector<8x32xf32>
    %115 = vector.extract_strided_slice %112 {offsets = [0, 64], sizes = [8, 32], strides = [1, 1]} : vector<8x128xf32> to vector<8x32xf32>
    %116 = vector.extract_strided_slice %111 {offsets = [0, 96], sizes = [8, 32], strides = [1, 1]} : vector<8x128xf32> to vector<8x32xf32>
    %117 = arith.mulf %114, %99 : vector<8x32xf32>
    %118 = arith.mulf %113, %115 : vector<8x32xf32>
    %119 = arith.addf %117, %118 : vector<8x32xf32>
    %120 = math.tanh %119 : vector<8x32xf32>
    %121 = arith.mulf %116, %120 : vector<8x32xf32>
    %122 = tpu.iota {dimensions = array<i32: 1>} : vector<8x32xi32>
    %c0_37 = arith.constant 0 : index
    %c0_38 = arith.constant 0 : index
    %123 = vector.load %arg8[%c0_37, %c0_38] : memref<1x32xf32, #tpu.memory_space<vmem>>, vector<1x32xf32>
    %124 = vector.shape_cast %123 : vector<1x32xf32> to vector<1x32xf32>
    %125 = vector.broadcast %124 : vector<1x32xf32> to vector<8x32xf32>
    %cst_39 = arith.constant 0.000000e+00 : f32
    %126 = vector.broadcast %cst_39 : f32 to vector<8x32xf32>
    %c0_40 = arith.constant 0 : index
    %c0_41 = arith.constant 0 : index
    %c0_42 = arith.constant 0 : index
    %127 = vector.load %arg3[%c0_40, %c0_41, %c0_42] : memref<8x8x128xf32, #tpu.memory_space<vmem>>, vector<1x8x128xf32>
    %128 = vector.shape_cast %127 : vector<1x8x128xf32> to vector<8x128xf32>
    %c0_43 = arith.constant 0 : index
    %c0_44 = arith.constant 0 : index
    %129 = vector.load %arg5[%c0_43, %c0_44] : memref<32x128xf32, #tpu.memory_space<vmem>>, vector<32x128xf32>
    %cst_45 = arith.constant dense<0.000000e+00> : vector<8x128xf32>
    %130 = tpu.matmul %121, %129, %cst_45 {dimension_numbers = #tpu.dot_dimension_numbers<[1], [0], [0], [1], [0, 0, 1, 1], [], []>} : vector<8x32xf32>, vector<32x128xf32>, vector<8x128xf32> -> vector<8x128xf32>
    %131 = arith.addf %128, %130 : vector<8x128xf32>
    %132 = arith.negf %131 : vector<8x128xf32>
    %133 = math.exp %132 : vector<8x128xf32>
    %cst_46 = arith.constant 1.000000e+00 : f32
    %134 = vector.broadcast %cst_46 : f32 to vector<8x128xf32>
    %135 = arith.addf %134, %133 : vector<8x128xf32>
    %136 = arith.divf %134, %135 : vector<8x128xf32>
    %137 = math.tanh %131 : vector<8x128xf32>
    %138 = vector.extract_strided_slice %136 {offsets = [0, 0], sizes = [8, 32], strides = [1, 1]} : vector<8x128xf32> to vector<8x32xf32>
    %139 = vector.extract_strided_slice %136 {offsets = [0, 32], sizes = [8, 32], strides = [1, 1]} : vector<8x128xf32> to vector<8x32xf32>
    %140 = vector.extract_strided_slice %137 {offsets = [0, 64], sizes = [8, 32], strides = [1, 1]} : vector<8x128xf32> to vector<8x32xf32>
    %141 = vector.extract_strided_slice %136 {offsets = [0, 96], sizes = [8, 32], strides = [1, 1]} : vector<8x128xf32> to vector<8x32xf32>
    %142 = arith.mulf %139, %119 : vector<8x32xf32>
    %143 = arith.mulf %138, %140 : vector<8x32xf32>
    %144 = arith.addf %142, %143 : vector<8x32xf32>
    %145 = math.tanh %144 : vector<8x32xf32>
    %146 = arith.mulf %141, %145 : vector<8x32xf32>
    %c0_47 = arith.constant 0 : index
    %c0_48 = arith.constant 0 : index
    %147 = vector.load %arg7[%c0_47, %c0_48] : memref<32x32xf32, #tpu.memory_space<vmem>>, vector<32x32xf32>
    %cst_49 = arith.constant dense<0.000000e+00> : vector<8x32xf32>
    %148 = tpu.matmul %146, %147, %cst_49 {dimension_numbers = #tpu.dot_dimension_numbers<[1], [0], [0], [1], [0, 0, 1, 1], [], []>} : vector<8x32xf32>, vector<32x32xf32>, vector<8x32xf32> -> vector<8x32xf32>
    %149 = arith.addf %148, %125 : vector<8x32xf32>
    %cst_50 = arith.constant dense<0xFF800000> : vector<8xf32>
    %150 = vector.multi_reduction <maximumf>, %149, %cst_50 [1] : vector<8x32xf32> to vector<8xf32>
    %151 = vector.shape_cast %150 : vector<8xf32> to vector<8x1xf32>
    %152 = vector.broadcast %151 : vector<8x1xf32> to vector<8x32xf32>
    %153 = arith.cmpf oeq, %149, %152 : vector<8x32xf32>
    %c32_i32 = arith.constant 32 : i32
    %154 = vector.broadcast %c32_i32 : i32 to vector<8x32xi32>
    %155 = arith.select %153, %122, %154 : vector<8x32xi1>, vector<8x32xi32>
    %cst_51 = arith.constant dense<2147483647> : vector<8xi32>
    %156 = vector.multi_reduction <minsi>, %155, %cst_51 [1] : vector<8x32xi32> to vector<8xi32>
    %157 = vector.shape_cast %156 : vector<8xi32> to vector<8x1xi32>
    %158 = vector.broadcast %157 : vector<8x1xi32> to vector<8x32xi32>
    %159 = arith.cmpi eq, %122, %158 : vector<8x32xi32>
    %160 = arith.extui %159 : vector<8x32xi1> to vector<8x32xi32>
    %161 = arith.sitofp %160 : vector<8x32xi32> to vector<8x32xf32>
    %c0_52 = arith.constant 0 : index
    %c0_53 = arith.constant 0 : index
    %162 = vector.load %arg6[%c0_52, %c0_53] : memref<32x128xf32, #tpu.memory_space<vmem>>, vector<32x128xf32>
    %cst_54 = arith.constant dense<0.000000e+00> : vector<8x128xf32>
    %163 = tpu.matmul %161, %162, %cst_54 {dimension_numbers = #tpu.dot_dimension_numbers<[1], [0], [0], [1], [0, 0, 1, 1], [], []>} : vector<8x32xf32>, vector<32x128xf32>, vector<8x128xf32> -> vector<8x128xf32>
    %c1_55 = arith.constant 1 : index
    %164 = memref.load %arg1[%c1_55] : memref<8xi32, #tpu.memory_space<smem>>
    %c0_i32 = arith.constant 0 : i32
    %165 = arith.cmpi ne, %164, %c0_i32 : i32
    %c1_56 = arith.constant 1 : index
    %c0_57 = arith.constant 0 : index
    %c0_58 = arith.constant 0 : index
    %166 = vector.load %arg3[%c1_56, %c0_57, %c0_58] : memref<8x8x128xf32, #tpu.memory_space<vmem>>, vector<1x8x128xf32>
    %167 = vector.shape_cast %166 : vector<1x8x128xf32> to vector<8x128xf32>
    %168 = arith.select %165, %167, %163 : vector<8x128xf32>
    %c0_59 = arith.constant 0 : index
    %c0_60 = arith.constant 0 : index
    %169 = vector.load %arg5[%c0_59, %c0_60] : memref<32x128xf32, #tpu.memory_space<vmem>>, vector<32x128xf32>
    %cst_61 = arith.constant dense<0.000000e+00> : vector<8x128xf32>
    %170 = tpu.matmul %146, %169, %cst_61 {dimension_numbers = #tpu.dot_dimension_numbers<[1], [0], [0], [1], [0, 0, 1, 1], [], []>} : vector<8x32xf32>, vector<32x128xf32>, vector<8x128xf32> -> vector<8x128xf32>
    %171 = arith.addf %168, %170 : vector<8x128xf32>
    %172 = arith.negf %171 : vector<8x128xf32>
    %173 = math.exp %172 : vector<8x128xf32>
    %cst_62 = arith.constant 1.000000e+00 : f32
    %174 = vector.broadcast %cst_62 : f32 to vector<8x128xf32>
    %175 = arith.addf %174, %173 : vector<8x128xf32>
    %176 = arith.divf %174, %175 : vector<8x128xf32>
    %177 = math.tanh %171 : vector<8x128xf32>
    %178 = vector.extract_strided_slice %176 {offsets = [0, 0], sizes = [8, 32], strides = [1, 1]} : vector<8x128xf32> to vector<8x32xf32>
    %179 = vector.extract_strided_slice %176 {offsets = [0, 32], sizes = [8, 32], strides = [1, 1]} : vector<8x128xf32> to vector<8x32xf32>
    %180 = vector.extract_strided_slice %177 {offsets = [0, 64], sizes = [8, 32], strides = [1, 1]} : vector<8x128xf32> to vector<8x32xf32>
    %181 = vector.extract_strided_slice %176 {offsets = [0, 96], sizes = [8, 32], strides = [1, 1]} : vector<8x128xf32> to vector<8x32xf32>
    %182 = arith.mulf %179, %144 : vector<8x32xf32>
    %183 = arith.mulf %178, %180 : vector<8x32xf32>
    %184 = arith.addf %182, %183 : vector<8x32xf32>
    %185 = math.tanh %184 : vector<8x32xf32>
    %186 = arith.mulf %181, %185 : vector<8x32xf32>
    %c0_63 = arith.constant 0 : index
    %c0_64 = arith.constant 0 : index
    %187 = vector.load %arg7[%c0_63, %c0_64] : memref<32x32xf32, #tpu.memory_space<vmem>>, vector<32x32xf32>
    %cst_65 = arith.constant dense<0.000000e+00> : vector<8x32xf32>
    %188 = tpu.matmul %186, %187, %cst_65 {dimension_numbers = #tpu.dot_dimension_numbers<[1], [0], [0], [1], [0, 0, 1, 1], [], []>} : vector<8x32xf32>, vector<32x32xf32>, vector<8x32xf32> -> vector<8x32xf32>
    %189 = arith.addf %188, %125 : vector<8x32xf32>
    %cst_66 = arith.constant dense<0xFF800000> : vector<8xf32>
    %190 = vector.multi_reduction <maximumf>, %189, %cst_66 [1] : vector<8x32xf32> to vector<8xf32>
    %191 = vector.shape_cast %190 : vector<8xf32> to vector<8x1xf32>
    %192 = vector.broadcast %191 : vector<8x1xf32> to vector<8x32xf32>
    %193 = arith.cmpf oeq, %189, %192 : vector<8x32xf32>
    %c32_i32_67 = arith.constant 32 : i32
    %194 = vector.broadcast %c32_i32_67 : i32 to vector<8x32xi32>
    %195 = arith.select %193, %122, %194 : vector<8x32xi1>, vector<8x32xi32>
    %cst_68 = arith.constant dense<2147483647> : vector<8xi32>
    %196 = vector.multi_reduction <minsi>, %195, %cst_68 [1] : vector<8x32xi32> to vector<8xi32>
    %197 = vector.shape_cast %196 : vector<8xi32> to vector<8x1xi32>
    %198 = vector.broadcast %197 : vector<8x1xi32> to vector<8x32xi32>
    %199 = arith.cmpi eq, %122, %198 : vector<8x32xi32>
    %200 = arith.extui %199 : vector<8x32xi1> to vector<8x32xi32>
    %201 = arith.sitofp %200 : vector<8x32xi32> to vector<8x32xf32>
    %c0_69 = arith.constant 0 : index
    %c0_70 = arith.constant 0 : index
    %202 = vector.load %arg6[%c0_69, %c0_70] : memref<32x128xf32, #tpu.memory_space<vmem>>, vector<32x128xf32>
    %cst_71 = arith.constant dense<0.000000e+00> : vector<8x128xf32>
    %203 = tpu.matmul %201, %202, %cst_71 {dimension_numbers = #tpu.dot_dimension_numbers<[1], [0], [0], [1], [0, 0, 1, 1], [], []>} : vector<8x32xf32>, vector<32x128xf32>, vector<8x128xf32> -> vector<8x128xf32>
    %c2_72 = arith.constant 2 : index
    %204 = memref.load %arg1[%c2_72] : memref<8xi32, #tpu.memory_space<smem>>
    %c0_i32_73 = arith.constant 0 : i32
    %205 = arith.cmpi ne, %204, %c0_i32_73 : i32
    %c2_74 = arith.constant 2 : index
    %c0_75 = arith.constant 0 : index
    %c0_76 = arith.constant 0 : index
    %206 = vector.load %arg3[%c2_74, %c0_75, %c0_76] : memref<8x8x128xf32, #tpu.memory_space<vmem>>, vector<1x8x128xf32>
    %207 = vector.shape_cast %206 : vector<1x8x128xf32> to vector<8x128xf32>
    %208 = arith.select %205, %207, %203 : vector<8x128xf32>
    %c0_77 = arith.constant 0 : index
    %c0_78 = arith.constant 0 : index
    %209 = vector.load %arg5[%c0_77, %c0_78] : memref<32x128xf32, #tpu.memory_space<vmem>>, vector<32x128xf32>
    %cst_79 = arith.constant dense<0.000000e+00> : vector<8x128xf32>
    %210 = tpu.matmul %186, %209, %cst_79 {dimension_numbers = #tpu.dot_dimension_numbers<[1], [0], [0], [1], [0, 0, 1, 1], [], []>} : vector<8x32xf32>, vector<32x128xf32>, vector<8x128xf32> -> vector<8x128xf32>
    %211 = arith.addf %208, %210 : vector<8x128xf32>
    %212 = arith.negf %211 : vector<8x128xf32>
    %213 = math.exp %212 : vector<8x128xf32>
    %cst_80 = arith.constant 1.000000e+00 : f32
    %214 = vector.broadcast %cst_80 : f32 to vector<8x128xf32>
    %215 = arith.addf %214, %213 : vector<8x128xf32>
    %216 = arith.divf %214, %215 : vector<8x128xf32>
    %217 = math.tanh %211 : vector<8x128xf32>
    %218 = vector.extract_strided_slice %216 {offsets = [0, 0], sizes = [8, 32], strides = [1, 1]} : vector<8x128xf32> to vector<8x32xf32>
    %219 = vector.extract_strided_slice %216 {offsets = [0, 32], sizes = [8, 32], strides = [1, 1]} : vector<8x128xf32> to vector<8x32xf32>
    %220 = vector.extract_strided_slice %217 {offsets = [0, 64], sizes = [8, 32], strides = [1, 1]} : vector<8x128xf32> to vector<8x32xf32>
    %221 = vector.extract_strided_slice %216 {offsets = [0, 96], sizes = [8, 32], strides = [1, 1]} : vector<8x128xf32> to vector<8x32xf32>
    %222 = arith.mulf %219, %184 : vector<8x32xf32>
    %223 = arith.mulf %218, %220 : vector<8x32xf32>
    %224 = arith.addf %222, %223 : vector<8x32xf32>
    %225 = math.tanh %224 : vector<8x32xf32>
    %226 = arith.mulf %221, %225 : vector<8x32xf32>
    %c0_81 = arith.constant 0 : index
    %c0_82 = arith.constant 0 : index
    %227 = vector.load %arg7[%c0_81, %c0_82] : memref<32x32xf32, #tpu.memory_space<vmem>>, vector<32x32xf32>
    %cst_83 = arith.constant dense<0.000000e+00> : vector<8x32xf32>
    %228 = tpu.matmul %226, %227, %cst_83 {dimension_numbers = #tpu.dot_dimension_numbers<[1], [0], [0], [1], [0, 0, 1, 1], [], []>} : vector<8x32xf32>, vector<32x32xf32>, vector<8x32xf32> -> vector<8x32xf32>
    %229 = arith.addf %228, %125 : vector<8x32xf32>
    %cst_84 = arith.constant dense<0xFF800000> : vector<8xf32>
    %230 = vector.multi_reduction <maximumf>, %229, %cst_84 [1] : vector<8x32xf32> to vector<8xf32>
    %231 = vector.shape_cast %230 : vector<8xf32> to vector<8x1xf32>
    %232 = vector.broadcast %231 : vector<8x1xf32> to vector<8x32xf32>
    %233 = arith.cmpf oeq, %229, %232 : vector<8x32xf32>
    %c32_i32_85 = arith.constant 32 : i32
    %234 = vector.broadcast %c32_i32_85 : i32 to vector<8x32xi32>
    %235 = arith.select %233, %122, %234 : vector<8x32xi1>, vector<8x32xi32>
    %cst_86 = arith.constant dense<2147483647> : vector<8xi32>
    %236 = vector.multi_reduction <minsi>, %235, %cst_86 [1] : vector<8x32xi32> to vector<8xi32>
    %237 = vector.shape_cast %236 : vector<8xi32> to vector<8x1xi32>
    %238 = vector.broadcast %237 : vector<8x1xi32> to vector<8x32xi32>
    %239 = arith.cmpi eq, %122, %238 : vector<8x32xi32>
    %240 = arith.extui %239 : vector<8x32xi1> to vector<8x32xi32>
    %241 = arith.sitofp %240 : vector<8x32xi32> to vector<8x32xf32>
    %c0_87 = arith.constant 0 : index
    %c0_88 = arith.constant 0 : index
    %242 = vector.load %arg6[%c0_87, %c0_88] : memref<32x128xf32, #tpu.memory_space<vmem>>, vector<32x128xf32>
    %cst_89 = arith.constant dense<0.000000e+00> : vector<8x128xf32>
    %243 = tpu.matmul %241, %242, %cst_89 {dimension_numbers = #tpu.dot_dimension_numbers<[1], [0], [0], [1], [0, 0, 1, 1], [], []>} : vector<8x32xf32>, vector<32x128xf32>, vector<8x128xf32> -> vector<8x128xf32>
    %c3_90 = arith.constant 3 : index
    %244 = memref.load %arg1[%c3_90] : memref<8xi32, #tpu.memory_space<smem>>
    %c0_i32_91 = arith.constant 0 : i32
    %245 = arith.cmpi ne, %244, %c0_i32_91 : i32
    %c3_92 = arith.constant 3 : index
    %c0_93 = arith.constant 0 : index
    %c0_94 = arith.constant 0 : index
    %246 = vector.load %arg3[%c3_92, %c0_93, %c0_94] : memref<8x8x128xf32, #tpu.memory_space<vmem>>, vector<1x8x128xf32>
    %247 = vector.shape_cast %246 : vector<1x8x128xf32> to vector<8x128xf32>
    %248 = arith.select %245, %247, %243 : vector<8x128xf32>
    %c0_95 = arith.constant 0 : index
    %c0_96 = arith.constant 0 : index
    %249 = vector.load %arg5[%c0_95, %c0_96] : memref<32x128xf32, #tpu.memory_space<vmem>>, vector<32x128xf32>
    %cst_97 = arith.constant dense<0.000000e+00> : vector<8x128xf32>
    %250 = tpu.matmul %226, %249, %cst_97 {dimension_numbers = #tpu.dot_dimension_numbers<[1], [0], [0], [1], [0, 0, 1, 1], [], []>} : vector<8x32xf32>, vector<32x128xf32>, vector<8x128xf32> -> vector<8x128xf32>
    %251 = arith.addf %248, %250 : vector<8x128xf32>
    %252 = arith.negf %251 : vector<8x128xf32>
    %253 = math.exp %252 : vector<8x128xf32>
    %cst_98 = arith.constant 1.000000e+00 : f32
    %254 = vector.broadcast %cst_98 : f32 to vector<8x128xf32>
    %255 = arith.addf %254, %253 : vector<8x128xf32>
    %256 = arith.divf %254, %255 : vector<8x128xf32>
    %257 = math.tanh %251 : vector<8x128xf32>
    %258 = vector.extract_strided_slice %256 {offsets = [0, 0], sizes = [8, 32], strides = [1, 1]} : vector<8x128xf32> to vector<8x32xf32>
    %259 = vector.extract_strided_slice %256 {offsets = [0, 32], sizes = [8, 32], strides = [1, 1]} : vector<8x128xf32> to vector<8x32xf32>
    %260 = vector.extract_strided_slice %257 {offsets = [0, 64], sizes = [8, 32], strides = [1, 1]} : vector<8x128xf32> to vector<8x32xf32>
    %261 = vector.extract_strided_slice %256 {offsets = [0, 96], sizes = [8, 32], strides = [1, 1]} : vector<8x128xf32> to vector<8x32xf32>
    %262 = arith.mulf %259, %224 : vector<8x32xf32>
    %263 = arith.mulf %258, %260 : vector<8x32xf32>
    %264 = arith.addf %262, %263 : vector<8x32xf32>
    %265 = math.tanh %264 : vector<8x32xf32>
    %266 = arith.mulf %261, %265 : vector<8x32xf32>
    %c0_99 = arith.constant 0 : index
    %c0_100 = arith.constant 0 : index
    %267 = vector.load %arg7[%c0_99, %c0_100] : memref<32x32xf32, #tpu.memory_space<vmem>>, vector<32x32xf32>
    %cst_101 = arith.constant dense<0.000000e+00> : vector<8x32xf32>
    %268 = tpu.matmul %266, %267, %cst_101 {dimension_numbers = #tpu.dot_dimension_numbers<[1], [0], [0], [1], [0, 0, 1, 1], [], []>} : vector<8x32xf32>, vector<32x32xf32>, vector<8x32xf32> -> vector<8x32xf32>
    %269 = arith.addf %268, %125 : vector<8x32xf32>
    %cst_102 = arith.constant dense<0xFF800000> : vector<8xf32>
    %270 = vector.multi_reduction <maximumf>, %269, %cst_102 [1] : vector<8x32xf32> to vector<8xf32>
    %271 = vector.shape_cast %270 : vector<8xf32> to vector<8x1xf32>
    %272 = vector.broadcast %271 : vector<8x1xf32> to vector<8x32xf32>
    %273 = arith.cmpf oeq, %269, %272 : vector<8x32xf32>
    %c32_i32_103 = arith.constant 32 : i32
    %274 = vector.broadcast %c32_i32_103 : i32 to vector<8x32xi32>
    %275 = arith.select %273, %122, %274 : vector<8x32xi1>, vector<8x32xi32>
    %cst_104 = arith.constant dense<2147483647> : vector<8xi32>
    %276 = vector.multi_reduction <minsi>, %275, %cst_104 [1] : vector<8x32xi32> to vector<8xi32>
    %277 = vector.shape_cast %276 : vector<8xi32> to vector<8x1xi32>
    %278 = vector.broadcast %277 : vector<8x1xi32> to vector<8x32xi32>
    %279 = arith.cmpi eq, %122, %278 : vector<8x32xi32>
    %280 = arith.extui %279 : vector<8x32xi1> to vector<8x32xi32>
    %281 = arith.sitofp %280 : vector<8x32xi32> to vector<8x32xf32>
    %c0_105 = arith.constant 0 : index
    %c0_106 = arith.constant 0 : index
    %282 = vector.load %arg6[%c0_105, %c0_106] : memref<32x128xf32, #tpu.memory_space<vmem>>, vector<32x128xf32>
    %cst_107 = arith.constant dense<0.000000e+00> : vector<8x128xf32>
    %283 = tpu.matmul %281, %282, %cst_107 {dimension_numbers = #tpu.dot_dimension_numbers<[1], [0], [0], [1], [0, 0, 1, 1], [], []>} : vector<8x32xf32>, vector<32x128xf32>, vector<8x128xf32> -> vector<8x128xf32>
    %c4_108 = arith.constant 4 : index
    %284 = memref.load %arg1[%c4_108] : memref<8xi32, #tpu.memory_space<smem>>
    %c0_i32_109 = arith.constant 0 : i32
    %285 = arith.cmpi ne, %284, %c0_i32_109 : i32
    %c4_110 = arith.constant 4 : index
    %c0_111 = arith.constant 0 : index
    %c0_112 = arith.constant 0 : index
    %286 = vector.load %arg3[%c4_110, %c0_111, %c0_112] : memref<8x8x128xf32, #tpu.memory_space<vmem>>, vector<1x8x128xf32>
    %287 = vector.shape_cast %286 : vector<1x8x128xf32> to vector<8x128xf32>
    %288 = arith.select %285, %287, %283 : vector<8x128xf32>
    %c0_113 = arith.constant 0 : index
    %c0_114 = arith.constant 0 : index
    %289 = vector.load %arg5[%c0_113, %c0_114] : memref<32x128xf32, #tpu.memory_space<vmem>>, vector<32x128xf32>
    %cst_115 = arith.constant dense<0.000000e+00> : vector<8x128xf32>
    %290 = tpu.matmul %266, %289, %cst_115 {dimension_numbers = #tpu.dot_dimension_numbers<[1], [0], [0], [1], [0, 0, 1, 1], [], []>} : vector<8x32xf32>, vector<32x128xf32>, vector<8x128xf32> -> vector<8x128xf32>
    %291 = arith.addf %288, %290 : vector<8x128xf32>
    %292 = arith.negf %291 : vector<8x128xf32>
    %293 = math.exp %292 : vector<8x128xf32>
    %cst_116 = arith.constant 1.000000e+00 : f32
    %294 = vector.broadcast %cst_116 : f32 to vector<8x128xf32>
    %295 = arith.addf %294, %293 : vector<8x128xf32>
    %296 = arith.divf %294, %295 : vector<8x128xf32>
    %297 = math.tanh %291 : vector<8x128xf32>
    %298 = vector.extract_strided_slice %296 {offsets = [0, 0], sizes = [8, 32], strides = [1, 1]} : vector<8x128xf32> to vector<8x32xf32>
    %299 = vector.extract_strided_slice %296 {offsets = [0, 32], sizes = [8, 32], strides = [1, 1]} : vector<8x128xf32> to vector<8x32xf32>
    %300 = vector.extract_strided_slice %297 {offsets = [0, 64], sizes = [8, 32], strides = [1, 1]} : vector<8x128xf32> to vector<8x32xf32>
    %301 = vector.extract_strided_slice %296 {offsets = [0, 96], sizes = [8, 32], strides = [1, 1]} : vector<8x128xf32> to vector<8x32xf32>
    %302 = arith.mulf %299, %264 : vector<8x32xf32>
    %303 = arith.mulf %298, %300 : vector<8x32xf32>
    %304 = arith.addf %302, %303 : vector<8x32xf32>
    %305 = math.tanh %304 : vector<8x32xf32>
    %306 = arith.mulf %301, %305 : vector<8x32xf32>
    %c0_117 = arith.constant 0 : index
    %c0_118 = arith.constant 0 : index
    %307 = vector.load %arg7[%c0_117, %c0_118] : memref<32x32xf32, #tpu.memory_space<vmem>>, vector<32x32xf32>
    %cst_119 = arith.constant dense<0.000000e+00> : vector<8x32xf32>
    %308 = tpu.matmul %306, %307, %cst_119 {dimension_numbers = #tpu.dot_dimension_numbers<[1], [0], [0], [1], [0, 0, 1, 1], [], []>} : vector<8x32xf32>, vector<32x32xf32>, vector<8x32xf32> -> vector<8x32xf32>
    %309 = arith.addf %308, %125 : vector<8x32xf32>
    %cst_120 = arith.constant dense<0xFF800000> : vector<8xf32>
    %310 = vector.multi_reduction <maximumf>, %309, %cst_120 [1] : vector<8x32xf32> to vector<8xf32>
    %311 = vector.shape_cast %310 : vector<8xf32> to vector<8x1xf32>
    %312 = vector.broadcast %311 : vector<8x1xf32> to vector<8x32xf32>
    %313 = arith.cmpf oeq, %309, %312 : vector<8x32xf32>
    %c32_i32_121 = arith.constant 32 : i32
    %314 = vector.broadcast %c32_i32_121 : i32 to vector<8x32xi32>
    %315 = arith.select %313, %122, %314 : vector<8x32xi1>, vector<8x32xi32>
    %cst_122 = arith.constant dense<2147483647> : vector<8xi32>
    %316 = vector.multi_reduction <minsi>, %315, %cst_122 [1] : vector<8x32xi32> to vector<8xi32>
    %317 = vector.shape_cast %316 : vector<8xi32> to vector<8x1xi32>
    %318 = vector.broadcast %317 : vector<8x1xi32> to vector<8x32xi32>
    %319 = arith.cmpi eq, %122, %318 : vector<8x32xi32>
    %320 = arith.extui %319 : vector<8x32xi1> to vector<8x32xi32>
    %321 = arith.sitofp %320 : vector<8x32xi32> to vector<8x32xf32>
    %c0_123 = arith.constant 0 : index
    %c0_124 = arith.constant 0 : index
    %322 = vector.load %arg6[%c0_123, %c0_124] : memref<32x128xf32, #tpu.memory_space<vmem>>, vector<32x128xf32>
    %cst_125 = arith.constant dense<0.000000e+00> : vector<8x128xf32>
    %323 = tpu.matmul %321, %322, %cst_125 {dimension_numbers = #tpu.dot_dimension_numbers<[1], [0], [0], [1], [0, 0, 1, 1], [], []>} : vector<8x32xf32>, vector<32x128xf32>, vector<8x128xf32> -> vector<8x128xf32>
    %c5_126 = arith.constant 5 : index
    %324 = memref.load %arg1[%c5_126] : memref<8xi32, #tpu.memory_space<smem>>
    %c0_i32_127 = arith.constant 0 : i32
    %325 = arith.cmpi ne, %324, %c0_i32_127 : i32
    %c5_128 = arith.constant 5 : index
    %c0_129 = arith.constant 0 : index
    %c0_130 = arith.constant 0 : index
    %326 = vector.load %arg3[%c5_128, %c0_129, %c0_130] : memref<8x8x128xf32, #tpu.memory_space<vmem>>, vector<1x8x128xf32>
    %327 = vector.shape_cast %326 : vector<1x8x128xf32> to vector<8x128xf32>
    %328 = arith.select %325, %327, %323 : vector<8x128xf32>
    %c0_131 = arith.constant 0 : index
    %c0_132 = arith.constant 0 : index
    %329 = vector.load %arg5[%c0_131, %c0_132] : memref<32x128xf32, #tpu.memory_space<vmem>>, vector<32x128xf32>
    %cst_133 = arith.constant dense<0.000000e+00> : vector<8x128xf32>
    %330 = tpu.matmul %306, %329, %cst_133 {dimension_numbers = #tpu.dot_dimension_numbers<[1], [0], [0], [1], [0, 0, 1, 1], [], []>} : vector<8x32xf32>, vector<32x128xf32>, vector<8x128xf32> -> vector<8x128xf32>
    %331 = arith.addf %328, %330 : vector<8x128xf32>
    %332 = arith.negf %331 : vector<8x128xf32>
    %333 = math.exp %332 : vector<8x128xf32>
    %cst_134 = arith.constant 1.000000e+00 : f32
    %334 = vector.broadcast %cst_134 : f32 to vector<8x128xf32>
    %335 = arith.addf %334, %333 : vector<8x128xf32>
    %336 = arith.divf %334, %335 : vector<8x128xf32>
    %337 = math.tanh %331 : vector<8x128xf32>
    %338 = vector.extract_strided_slice %336 {offsets = [0, 0], sizes = [8, 32], strides = [1, 1]} : vector<8x128xf32> to vector<8x32xf32>
    %339 = vector.extract_strided_slice %336 {offsets = [0, 32], sizes = [8, 32], strides = [1, 1]} : vector<8x128xf32> to vector<8x32xf32>
    %340 = vector.extract_strided_slice %337 {offsets = [0, 64], sizes = [8, 32], strides = [1, 1]} : vector<8x128xf32> to vector<8x32xf32>
    %341 = vector.extract_strided_slice %336 {offsets = [0, 96], sizes = [8, 32], strides = [1, 1]} : vector<8x128xf32> to vector<8x32xf32>
    %342 = arith.mulf %339, %304 : vector<8x32xf32>
    %343 = arith.mulf %338, %340 : vector<8x32xf32>
    %344 = arith.addf %342, %343 : vector<8x32xf32>
    %345 = math.tanh %344 : vector<8x32xf32>
    %346 = arith.mulf %341, %345 : vector<8x32xf32>
    %c0_135 = arith.constant 0 : index
    %c0_136 = arith.constant 0 : index
    %347 = vector.load %arg7[%c0_135, %c0_136] : memref<32x32xf32, #tpu.memory_space<vmem>>, vector<32x32xf32>
    %cst_137 = arith.constant dense<0.000000e+00> : vector<8x32xf32>
    %348 = tpu.matmul %346, %347, %cst_137 {dimension_numbers = #tpu.dot_dimension_numbers<[1], [0], [0], [1], [0, 0, 1, 1], [], []>} : vector<8x32xf32>, vector<32x32xf32>, vector<8x32xf32> -> vector<8x32xf32>
    %349 = arith.addf %348, %125 : vector<8x32xf32>
    %cst_138 = arith.constant dense<0xFF800000> : vector<8xf32>
    %350 = vector.multi_reduction <maximumf>, %349, %cst_138 [1] : vector<8x32xf32> to vector<8xf32>
    %351 = vector.shape_cast %350 : vector<8xf32> to vector<8x1xf32>
    %352 = vector.broadcast %351 : vector<8x1xf32> to vector<8x32xf32>
    %353 = arith.cmpf oeq, %349, %352 : vector<8x32xf32>
    %c32_i32_139 = arith.constant 32 : i32
    %354 = vector.broadcast %c32_i32_139 : i32 to vector<8x32xi32>
    %355 = arith.select %353, %122, %354 : vector<8x32xi1>, vector<8x32xi32>
    %cst_140 = arith.constant dense<2147483647> : vector<8xi32>
    %356 = vector.multi_reduction <minsi>, %355, %cst_140 [1] : vector<8x32xi32> to vector<8xi32>
    %357 = vector.shape_cast %356 : vector<8xi32> to vector<8x1xi32>
    %358 = vector.broadcast %357 : vector<8x1xi32> to vector<8x32xi32>
    %359 = arith.cmpi eq, %122, %358 : vector<8x32xi32>
    %360 = arith.extui %359 : vector<8x32xi1> to vector<8x32xi32>
    %361 = arith.sitofp %360 : vector<8x32xi32> to vector<8x32xf32>
    %c0_141 = arith.constant 0 : index
    %c0_142 = arith.constant 0 : index
    %362 = vector.load %arg6[%c0_141, %c0_142] : memref<32x128xf32, #tpu.memory_space<vmem>>, vector<32x128xf32>
    %cst_143 = arith.constant dense<0.000000e+00> : vector<8x128xf32>
    %363 = tpu.matmul %361, %362, %cst_143 {dimension_numbers = #tpu.dot_dimension_numbers<[1], [0], [0], [1], [0, 0, 1, 1], [], []>} : vector<8x32xf32>, vector<32x128xf32>, vector<8x128xf32> -> vector<8x128xf32>
    %c6 = arith.constant 6 : index
    %364 = memref.load %arg1[%c6] : memref<8xi32, #tpu.memory_space<smem>>
    %c0_i32_144 = arith.constant 0 : i32
    %365 = arith.cmpi ne, %364, %c0_i32_144 : i32
    %c6_145 = arith.constant 6 : index
    %c0_146 = arith.constant 0 : index
    %c0_147 = arith.constant 0 : index
    %366 = vector.load %arg3[%c6_145, %c0_146, %c0_147] : memref<8x8x128xf32, #tpu.memory_space<vmem>>, vector<1x8x128xf32>
    %367 = vector.shape_cast %366 : vector<1x8x128xf32> to vector<8x128xf32>
    %368 = arith.select %365, %367, %363 : vector<8x128xf32>
    %c0_148 = arith.constant 0 : index
    %c0_149 = arith.constant 0 : index
    %369 = vector.load %arg5[%c0_148, %c0_149] : memref<32x128xf32, #tpu.memory_space<vmem>>, vector<32x128xf32>
    %cst_150 = arith.constant dense<0.000000e+00> : vector<8x128xf32>
    %370 = tpu.matmul %346, %369, %cst_150 {dimension_numbers = #tpu.dot_dimension_numbers<[1], [0], [0], [1], [0, 0, 1, 1], [], []>} : vector<8x32xf32>, vector<32x128xf32>, vector<8x128xf32> -> vector<8x128xf32>
    %371 = arith.addf %368, %370 : vector<8x128xf32>
    %372 = arith.negf %371 : vector<8x128xf32>
    %373 = math.exp %372 : vector<8x128xf32>
    %cst_151 = arith.constant 1.000000e+00 : f32
    %374 = vector.broadcast %cst_151 : f32 to vector<8x128xf32>
    %375 = arith.addf %374, %373 : vector<8x128xf32>
    %376 = arith.divf %374, %375 : vector<8x128xf32>
    %377 = math.tanh %371 : vector<8x128xf32>
    %378 = vector.extract_strided_slice %376 {offsets = [0, 0], sizes = [8, 32], strides = [1, 1]} : vector<8x128xf32> to vector<8x32xf32>
    %379 = vector.extract_strided_slice %376 {offsets = [0, 32], sizes = [8, 32], strides = [1, 1]} : vector<8x128xf32> to vector<8x32xf32>
    %380 = vector.extract_strided_slice %377 {offsets = [0, 64], sizes = [8, 32], strides = [1, 1]} : vector<8x128xf32> to vector<8x32xf32>
    %381 = vector.extract_strided_slice %376 {offsets = [0, 96], sizes = [8, 32], strides = [1, 1]} : vector<8x128xf32> to vector<8x32xf32>
    %382 = arith.mulf %379, %344 : vector<8x32xf32>
    %383 = arith.mulf %378, %380 : vector<8x32xf32>
    %384 = arith.addf %382, %383 : vector<8x32xf32>
    %385 = math.tanh %384 : vector<8x32xf32>
    %386 = arith.mulf %381, %385 : vector<8x32xf32>
    %c0_152 = arith.constant 0 : index
    %c0_153 = arith.constant 0 : index
    %387 = vector.load %arg7[%c0_152, %c0_153] : memref<32x32xf32, #tpu.memory_space<vmem>>, vector<32x32xf32>
    %cst_154 = arith.constant dense<0.000000e+00> : vector<8x32xf32>
    %388 = tpu.matmul %386, %387, %cst_154 {dimension_numbers = #tpu.dot_dimension_numbers<[1], [0], [0], [1], [0, 0, 1, 1], [], []>} : vector<8x32xf32>, vector<32x32xf32>, vector<8x32xf32> -> vector<8x32xf32>
    %389 = arith.addf %388, %125 : vector<8x32xf32>
    %390 = tpu.concatenate %126, %149, %189, %229, %269, %309, %349, %389 in 1 : vector<8x32xf32>, vector<8x32xf32>, vector<8x32xf32>, vector<8x32xf32>, vector<8x32xf32>, vector<8x32xf32>, vector<8x32xf32>, vector<8x32xf32> -> vector<8x256xf32>
    %c0_155 = arith.constant 0 : index
    %c0_156 = arith.constant 0 : index
    %391 = vector.load %arg9[%c0_155, %c0_156] : memref<8x256xf32, #tpu.memory_space<vmem>>, vector<8x256xf32>
    tpu.vector_store %arg9[%c0_155, %c0_156], %390 {strides = array<i32>} : memref<8x256xf32, #tpu.memory_space<vmem>>, vector<8x256xf32>,
    return
  }
  func.func @transform_0(%arg0: i32, %arg1: memref<8xi32, #tpu.memory_space<smem>>) -> (i32, i32, i32) {
    %c0_i32 = arith.constant 0 : i32
    %c0_i32_0 = arith.constant 0 : i32
    %c0_i32_1 = arith.constant 0 : i32
    return %c0_i32, %arg0, %c0_i32_0 : i32, i32, i32
  }
  func.func @transform_1(%arg0: i32, %arg1: memref<8xi32, #tpu.memory_space<smem>>) -> (i32, i32, i32) {
    %c0_i32 = arith.constant 0 : i32
    %c0_i32_0 = arith.constant 0 : i32
    %c0_i32_1 = arith.constant 0 : i32
    return %c0_i32, %arg0, %c0_i32_0 : i32, i32, i32
  }
  func.func @transform_2(%arg0: i32, %arg1: memref<8xi32, #tpu.memory_space<smem>>) -> (i32, i32) {
    %c0_i32 = arith.constant 0 : i32
    %c0_i32_0 = arith.constant 0 : i32
    %c0_i32_1 = arith.constant 0 : i32
    return %c0_i32, %c0_i32_0 : i32, i32
  }
  func.func @transform_3(%arg0: i32, %arg1: memref<8xi32, #tpu.memory_space<smem>>) -> (i32, i32) {
    %c0_i32 = arith.constant 0 : i32
    %c0_i32_0 = arith.constant 0 : i32
    %c0_i32_1 = arith.constant 0 : i32
    return %c0_i32, %c0_i32_0 : i32, i32
  }
  func.func @transform_4(%arg0: i32, %arg1: memref<8xi32, #tpu.memory_space<smem>>) -> (i32, i32) {
    %c0_i32 = arith.constant 0 : i32
    %c0_i32_0 = arith.constant 0 : i32
    %c0_i32_1 = arith.constant 0 : i32
    return %c0_i32, %c0_i32_0 : i32, i32
  }
  func.func @transform_5(%arg0: i32, %arg1: memref<8xi32, #tpu.memory_space<smem>>) -> (i32, i32) {
    %c0_i32 = arith.constant 0 : i32
    %c0_i32_0 = arith.constant 0 : i32
    %c0_i32_1 = arith.constant 0 : i32
    return %c0_i32, %c0_i32_0 : i32, i32
  }
  func.func @transform_6(%arg0: i32, %arg1: memref<8xi32, #tpu.memory_space<smem>>) -> (i32, i32) {
    %c0_i32 = arith.constant 0 : i32
    %c0_i32_0 = arith.constant 0 : i32
    %c0_i32_1 = arith.constant 0 : i32
    return %c0_i32, %c0_i32_0 : i32, i32
  }
  func.func @transform_7(%arg0: i32, %arg1: memref<8xi32, #tpu.memory_space<smem>>) -> (i32, i32) {
    %c0_i32 = arith.constant 0 : i32
    %c0_i32_0 = arith.constant 0 : i32
    return %arg0, %c0_i32 : i32, i32
  }
}

</mosaic_0001>

<llo_original>
// kernel: seq2seq_forward.1
$region0: #{seq2seq_forward.1}
  #allocation0 [shape = 'u32[]', space=smem, size = 0x4, offset = 0x4, fixed_abs, tag = 'smem constant byte address 0x4 - core index']
  #allocation1 [shape = 'u32[144,128]{1,0:T(1,128)}', space=vmem, size = 0x12000, scoped, tag = 'internal scratch']
  #allocation2 [shape = 's32[1]{0}', space=sflag, size = 0x4, scoped, tag = 'scoped memory for seq2seq_forward.1']
  #allocation3 [shape = 'u8[512]{0}', space=smem, size = 0x200, scoped, tag = 'prefetched SMEM operand 0']
  %s0 = inlined_call_operand.vmem [shape: s32[8], index: 0, kind: input, shape index: {}]
  %s1 = inlined_call_operand.vmem [shape: f32[6,16,128], index: 1, kind: input, shape index: {}]
  %s2 = inlined_call_operand.vmem [shape: f32[8,16,128], index: 2, kind: input, shape index: {}]
  %s3 = inlined_call_operand.vmem [shape: f32[32,128], index: 3, kind: input, shape index: {}]
  %s4 = inlined_call_operand.vmem [shape: f32[32,128], index: 4, kind: input, shape index: {}]
  %s5 = inlined_call_operand.vmem [shape: f32[32,128], index: 5, kind: input, shape index: {}]
  %s6 = inlined_call_operand.vmem [shape: f32[32,32], index: 6, kind: input, shape index: {}]
  %s7 = inlined_call_operand.vmem [shape: f32[1,32], index: 7, kind: input, shape index: {}]
  %s8 = inlined_call_operand.vmem [shape: f32[16,256], index: 8, kind: output, shape index: {}]
  %s9 = sld [smem:[#allocation0]]
  $region137: #{seq2seq_forward.1} parent=0
    _
  %s11 = ssub.s32 1, %s9
  %s12 = scalar_select 0, %s11, %s9
  %s13 = sshll.u32 %s0, 4
  %s14 = int_to_ptr.vmem [resolvable:$true] %s13
  %16 = dma.vmem_to_smem %s14, 16, [#allocation3], [#allocation2]
  %17 = dma.done [#allocation2], 16
  %18 = sfence
  $region1: #{seq2seq_forward.1} parent=0
    #allocation4 [shape = 'u8[49152]{0}', space=vmem, size = 0xc000, scoped, tag = 'input window, operand 1']
    #allocation5 [shape = 'u8[65536]{0}', space=vmem, size = 0x10000, scoped, tag = 'input window, operand 2']
    loop: start=0, step=1, limit=4
    $region2: #{seq2seq_forward.1} parent=1 // loop_pre_header
      _
    $region3: #{seq2seq_forward.1} parent=1 // loop_header
      %s20 = sphi 0, %s24
      %p21 = scmp.ge.s32.totalorder %s20, 4
      %s30 = sphi 0, %s32
      %s33 = sphi 0, %s30
      %s34 = sphi 0, %s33
      %s50 = sphi 0, %s34
      %s56 = sphi 0, %s58
      %s59 = sphi 0, %s56
      %s60 = sphi 0, %s59
      %s76 = sphi 0, %s60
      %s80 = sphi 0, %s80
      %s82 = sphi 0, %s80
      %s83 = sphi 0, %s82
      %s97 = sphi 0, %s83
      %s101 = sphi 0, %s101
      %s103 = sphi 0, %s101
      %s104 = sphi 0, %s103
      %s118 = sphi 0, %s104
      %s122 = sphi 0, %s122
      %s124 = sphi 0, %s122
      %s125 = sphi 0, %s124
      %s139 = sphi 0, %s125
      %s143 = sphi 0, %s143
      %s145 = sphi 0, %s143
      %s146 = sphi 0, %s145
      %s160 = sphi 0, %s146
      %s164 = sphi 0, %s164
      %s166 = sphi 0, %s164
      %s167 = sphi 0, %s166
      %s181 = sphi 0, %s167
      %s187 = sphi 0, %s189
      %s190 = sphi 0, %s187
      %s191 = sphi 0, %s190
      %s207 = sphi 0, %s191
    $region4: #{seq2seq_forward.1} parent=1 // loop_header_branch
      %23 = sbr.rel (%p21) target = $region8
    $region5: #{seq2seq_forward.1} parent=1 // loop_body
      %s25 = ssub.s32 %s20, 1
      %s26 = ssub.s32 %s20, 2
      %s27 = sadd.s32 %s20, 1
      %s28 = ssub.s32 %s20, %s27
      %p29 = scmp.eq.s32.totalorder %s28, 0
      %s31 = sadd.s32 %s30, 1
      %s32 = scalar_select %p29, %s30, %s31
      %p35 = pneg %p29
      %p36 = scmp.eq.s32.totalorder %s20, 1
      %p37 = por %p35, %p36
      %p38 = scmp.ne.s32.totalorder %s30, %s33
      %p39 = scmp.eq.s32.totalorder %s20, 0
      %p40 = por %p38, %p39
      %p41 = scmp.ne.s32.totalorder %s30, %s33
      %p42 = scmp.eq.s32.totalorder %s25, 1
      %p43 = por %p41, %p42
      %p44 = scmp.ne.s32.totalorder %s33, %s34
      %p45 = scmp.eq.s32.totalorder %s25, 0
      %p46 = por %p44, %p45
      %p47 = scmp.ne.s32.totalorder %s33, %s34
      %p48 = scmp.eq.s32.totalorder %s26, 1
      %p49 = por %p47, %p48
      %p51 = scmp.ne.s32.totalorder %s34, %s50
      %p52 = scmp.eq.s32.totalorder %s26, 0
      %p53 = por %p51, %p52
      %s54 = ssub.s32 %s20, %s27
      %p55 = scmp.eq.s32.totalorder %s54, 0
      %s57 = sadd.s32 %s56, 1
      %s58 = scalar_select %p55, %s56, %s57
      %p61 = pneg %p55
      %p62 = scmp.eq.s32.totalorder %s20, 1
      %p63 = por %p61, %p62
      %p64 = scmp.ne.s32.totalorder %s56, %s59
      %p65 = scmp.eq.s32.totalorder %s20, 0
      %p66 = por %p64, %p65
      %p67 = scmp.ne.s32.totalorder %s56, %s59
      %p68 = scmp.eq.s32.totalorder %s25, 1
      %p69 = por %p67, %p68
      %p70 = scmp.ne.s32.totalorder %s59, %s60
      %p71 = scmp.eq.s32.totalorder %s25, 0
      %p72 = por %p70, %p71
      %p73 = scmp.ne.s32.totalorder %s59, %s60
      %p74 = scmp.eq.s32.totalorder %s26, 1
      %p75 = por %p73, %p74
      %p77 = scmp.ne.s32.totalorder %s60, %s76
      %p78 = scmp.eq.s32.totalorder %s26, 0
      %p79 = por %p77, %p78
      %s81 = sadd.s32 %s80, 1
      %p84 = scmp.eq.s32.totalorder %s20, 1
      %p85 = scmp.ne.s32.totalorder %s80, %s82
      %p86 = scmp.eq.s32.totalorder %s20, 0
      %p87 = por %p85, %p86
      %p88 = scmp.ne.s32.totalorder %s80, %s82
      %p89 = scmp.eq.s32.totalorder %s25, 1
      %p90 = por %p88, %p89
      %p91 = scmp.ne.s32.totalorder %s82, %s83
      %p92 = scmp.eq.s32.totalorder %s25, 0
      %p93 = por %p91, %p92
      %p94 = scmp.ne.s32.totalorder %s82, %s83
      %p95 = scmp.eq.s32.totalorder %s26, 1
      %p96 = por %p94, %p95
      %p98 = scmp.ne.s32.totalorder %s83, %s97
      %p99 = scmp.eq.s32.totalorder %s26, 0
      %p100 = por %p98, %p99
      %s102 = sadd.s32 %s101, 1
      %p105 = scmp.eq.s32.totalorder %s20, 1
      %p106 = scmp.ne.s32.totalorder %s101, %s103
      %p107 = scmp.eq.s32.totalorder %s20, 0
      %p108 = por %p106, %p107
      %p109 = scmp.ne.s32.totalorder %s101, %s103
      %p110 = scmp.eq.s32.totalorder %s25, 1
      %p111 = por %p109, %p110
      %p112 = scmp.ne.s32.totalorder %s103, %s104
      %p113 = scmp.eq.s32.totalorder %s25, 0
      %p114 = por %p112, %p113
      %p115 = scmp.ne.s32.totalorder %s103, %s104
      %p116 = scmp.eq.s32.totalorder %s26, 1
      %p117 = por %p115, %p116
      %p119 = scmp.ne.s32.totalorder %s104, %s118
      %p120 = scmp.eq.s32.totalorder %s26, 0
      %p121 = por %p119, %p120
      %s123 = sadd.s32 %s122, 1
      %p126 = scmp.eq.s32.totalorder %s20, 1
      %p127 = scmp.ne.s32.totalorder %s122, %s124
      %p128 = scmp.eq.s32.totalorder %s20, 0
      %p129 = por %p127, %p128
      %p130 = scmp.ne.s32.totalorder %s122, %s124
      %p131 = scmp.eq.s32.totalorder %s25, 1
      %p132 = por %p130, %p131
      %p133 = scmp.ne.s32.totalorder %s124, %s125
      %p134 = scmp.eq.s32.totalorder %s25, 0
      %p135 = por %p133, %p134
      %p136 = scmp.ne.s32.totalorder %s124, %s125
      %p137 = scmp.eq.s32.totalorder %s26, 1
      %p138 = por %p136, %p137
      %p140 = scmp.ne.s32.totalorder %s125, %s139
      %p141 = scmp.eq.s32.totalorder %s26, 0
      %p142 = por %p140, %p141
      %s144 = sadd.s32 %s143, 1
      %p147 = scmp.eq.s32.totalorder %s20, 1
      %p148 = scmp.ne.s32.totalorder %s143, %s145
      %p149 = scmp.eq.s32.totalorder %s20, 0
      %p150 = por %p148, %p149
      %p151 = scmp.ne.s32.totalorder %s143, %s145
      %p152 = scmp.eq.s32.totalorder %s25, 1
      %p153 = por %p151, %p152
      %p154 = scmp.ne.s32.totalorder %s145, %s146
      %p155 = scmp.eq.s32.totalorder %s25, 0
      %p156 = por %p154, %p155
      %p157 = scmp.ne.s32.totalorder %s145, %s146
      %p158 = scmp.eq.s32.totalorder %s26, 1
      %p159 = por %p157, %p158
      %p161 = scmp.ne.s32.totalorder %s146, %s160
      %p162 = scmp.eq.s32.totalorder %s26, 0
      %p163 = por %p161, %p162
      %s165 = sadd.s32 %s164, 1
      %p168 = scmp.eq.s32.totalorder %s20, 1
      %p169 = scmp.ne.s32.totalorder %s164, %s166
      %p170 = scmp.eq.s32.totalorder %s20, 0
      %p171 = por %p169, %p170
      %p172 = scmp.ne.s32.totalorder %s164, %s166
      %p173 = scmp.eq.s32.totalorder %s25, 1
      %p174 = por %p172, %p173
      %p175 = scmp.ne.s32.totalorder %s166, %s167
      %p176 = scmp.eq.s32.totalorder %s25, 0
      %p177 = por %p175, %p176
      %p178 = scmp.ne.s32.totalorder %s166, %s167
      %p179 = scmp.eq.s32.totalorder %s26, 1
      %p180 = por %p178, %p179
      %p182 = scmp.ne.s32.totalorder %s167, %s181
      %p183 = scmp.eq.s32.totalorder %s26, 0
      %p184 = por %p182, %p183
      %s185 = ssub.s32 %s20, %s27
      %p186 = scmp.eq.s32.totalorder %s185, 0
      %s188 = sadd.s32 %s187, 1
      %s189 = scalar_select %p186, %s187, %s188
      %p192 = pneg %p186
      %p193 = scmp.eq.s32.totalorder %s20, 1
      %p194 = por %p192, %p193
      %p195 = scmp.ne.s32.totalorder %s187, %s190
      %p196 = scmp.eq.s32.totalorder %s20, 0
      %p197 = por %p195, %p196
      %p198 = scmp.ne.s32.totalorder %s187, %s190
      %p199 = scmp.eq.s32.totalorder %s25, 1
      %p200 = por %p198, %p199
      %p201 = scmp.ne.s32.totalorder %s190, %s191
      %p202 = scmp.eq.s32.totalorder %s25, 0
      %p203 = por %p201, %p202
      %p204 = scmp.ne.s32.totalorder %s190, %s191
      %p205 = scmp.eq.s32.totalorder %s26, 1
      %p206 = por %p204, %p205
      %p208 = scmp.ne.s32.totalorder %s191, %s207
      %p209 = scmp.eq.s32.totalorder %s26, 0
      %p210 = por %p208, %p209
      %p211 = scmp.le.s32.totalorder 1, %s20
      %p212 = scmp.lt.s32.totalorder %s20, 3
      %p213 = pnand %p211, %p212
      %p214 = pneg %p213
      // Predicated region
      $region9: #{seq2seq_forward.1} parent=5 // pred_check
        _
      $region10: #{seq2seq_forward.1} parent=5 // pred_check_branch
        %216 = sbr.rel (%p213) target = $region12
      $region11: #{seq2seq_forward.1} parent=5 // pred_region
        %s217 = ssub.s32 %s20, 1
        // Predicated region
        $region13: #{seq2seq_forward.1} parent=11 // pred_check
          %p218 = pneg %p93
        $region14: #{seq2seq_forward.1} parent=11 // pred_check_branch
          %220 = sbr.rel (%p218) target = $region16
        $region15: #{seq2seq_forward.1} parent=11 // pred_region
          _
        $region16: #{seq2seq_forward.1} parent=11 // pred_fallthru
          _
        // Predicated region
        $region17: #{seq2seq_forward.1} parent=11 // pred_check
          %p221 = pneg %p114
        $region18: #{seq2seq_forward.1} parent=11 // pred_check_branch
          %223 = sbr.rel (%p221) target = $region20
        $region19: #{seq2seq_forward.1} parent=11 // pred_region
          _
        $region20: #{seq2seq_forward.1} parent=11 // pred_fallthru
          _
        // Predicated region
        $region21: #{seq2seq_forward.1} parent=11 // pred_check
          %p224 = pneg %p135
        $region22: #{seq2seq_forward.1} parent=11 // pred_check_branch
          %226 = sbr.rel (%p224) target = $region24
        $region23: #{seq2seq_forward.1} parent=11 // pred_region
          _
        $region24: #{seq2seq_forward.1} parent=11 // pred_fallthru
          _
        // Predicated region
        $region25: #{seq2seq_forward.1} parent=11 // pred_check
          %p227 = pneg %p156
        $region26: #{seq2seq_forward.1} parent=11 // pred_check_branch
          %229 = sbr.rel (%p227) target = $region28
        $region27: #{seq2seq_forward.1} parent=11 // pred_region
          _
        $region28: #{seq2seq_forward.1} parent=11 // pred_fallthru
          _
        // Predicated region
        $region29: #{seq2seq_forward.1} parent=11 // pred_check
          %p230 = pneg %p177
        $region30: #{seq2seq_forward.1} parent=11 // pred_check_branch
          %232 = sbr.rel (%p230) target = $region32
        $region31: #{seq2seq_forward.1} parent=11 // pred_region
          _
        $region32: #{seq2seq_forward.1} parent=11 // pred_fallthru
          _
      $region12: #{seq2seq_forward.1} parent=5 // pred_fallthru
        _
      %p233 = scmp.lt.s32.totalorder %s20, 2
      // Predicated region
      $region33: #{seq2seq_forward.1} parent=5 // pred_check
        %p234 = pneg %p233
      $region34: #{seq2seq_forward.1} parent=5 // pred_check_branch
        %236 = sbr.rel (%p234) target = $region36
      $region35: #{seq2seq_forward.1} parent=5 // pred_region
        // Predicated region
        $region37: #{seq2seq_forward.1} parent=35 // pred_check
          %p237 = pneg %p40
        $region38: #{seq2seq_forward.1} parent=35 // pred_check_branch
          %239 = sbr.rel (%p237) target = $region40
        $region39: #{seq2seq_forward.1} parent=35 // pred_region
          %s240 = sand.u32 %s30, 1
          %s241 = sand.u32 %s30, 1
          %s242 = smul.addr %s241, 48
          %s243 = scalar_lea.vmem [#allocation4], %s242
          %s244 = smul.addr %s20, 8
          %s245 = scalar_lea.vmem %s1, %s244
          // Predicated region
          $region41: #{seq2seq_forward.1} parent=39 // pred_check
            _
          $region42: #{seq2seq_forward.1} parent=39 // pred_check_branch
            %247 = sbr.rel (0) target = $region44
          $region43: #{seq2seq_forward.1} parent=39 // pred_region
            // Predicated region
            $region45: #{seq2seq_forward.1} parent=43 // pred_check
              _
            $region46: #{seq2seq_forward.1} parent=43 // pred_check_branch
              %249 = sbr.rel (0) target = $region48
            $region47: #{seq2seq_forward.1} parent=43 // pred_region
              // Predicated region
              $region60: #{seq2seq_forward.1} parent=47 // pred_check
                _
              $region61: #{seq2seq_forward.1} parent=47 // pred_check_branch
                %274 = sbr.rel (0) target = $region63
              $region62: #{seq2seq_forward.1} parent=47 // pred_region
                loop: start=0, step=1, limit=1
                $region64: #{seq2seq_forward.1} parent=62 // loop_pre_header
                  _
                $region65: #{seq2seq_forward.1} parent=62 // loop_header
                  %s276 = sphi 0, %s280
                  %p277 = scmp.ge.s32.totalorder %s276, 1
                  %s281 = sphi %s245, %s245
                  %s282 = sphi %s243, %s243
                $region66: #{seq2seq_forward.1} parent=62 // loop_header_branch
                  %279 = sbr.rel (%p277) target = $region70
                $region67: #{seq2seq_forward.1} parent=62 // loop_body
                  %v283 = vld [vmem:[%s281] sm:$0xff]
                  %284 = vst [vmem:[%s282] sm:$0xff] %v283
                  %v285 = vld [vmem:[%s281 + $0x10] sm:$0xff]
                  %286 = vst [vmem:[%s282 + $0x8] sm:$0xff] %v285
                  %v287 = vld [vmem:[%s281 + $0x20] sm:$0xff]
                  %288 = vst [vmem:[%s282 + $0x10] sm:$0xff] %v287
                  %v289 = vld [vmem:[%s281 + $0x30] sm:$0xff]
                  %290 = vst [vmem:[%s282 + $0x18] sm:$0xff] %v289
                  %v291 = vld [vmem:[%s281 + $0x40] sm:$0xff]
                  %292 = vst [vmem:[%s282 + $0x20] sm:$0xff] %v291
                  %v293 = vld [vmem:[%s281 + $0x50] sm:$0xff]
                  %294 = vst [vmem:[%s282 + $0x28] sm:$0xff] %v293
                $region68: #{seq2seq_forward.1} parent=62 // loop_footer
                  %s280 = sadd.s32 1, %s276
                $region69: #{seq2seq_forward.1} parent=62 // loop_footer_branch
                  %275 = sbr.rel target = $region65
                $region70: #{seq2seq_forward.1} parent=62 // loop_exit
                  _
              $region63: #{seq2seq_forward.1} parent=47 // pred_fallthru
                _
              // Predicated region
              $region71: #{seq2seq_forward.1} parent=47 // pred_check
                _
              $region72: #{seq2seq_forward.1} parent=47 // pred_check_branch
                %296 = sbr.rel target = $region74
              $region73: #{seq2seq_forward.1} parent=47 // pred_region
                _
              $region74: #{seq2seq_forward.1} parent=47 // pred_fallthru
                _
            $region48: #{seq2seq_forward.1} parent=43 // pred_fallthru
              _
            // Predicated region
            $region49: #{seq2seq_forward.1} parent=43 // pred_check
              _
            $region50: #{seq2seq_forward.1} parent=43 // pred_check_branch
              %251 = sbr.rel target = $region52
            $region51: #{seq2seq_forward.1} parent=43 // pred_region
              loop: start=0, step=1, limit=1
              $region53: #{seq2seq_forward.1} parent=51 // loop_pre_header
                _
              $region54: #{seq2seq_forward.1} parent=51 // loop_header
                %s254 = sphi 0, %s258
                %p255 = scmp.ge.s32.totalorder %s254, 1
                %s259 = sphi %s245, %s245
                %s260 = sphi %s243, %s243
              $region55: #{seq2seq_forward.1} parent=51 // loop_header_branch
                %257 = sbr.rel (%p255) target = $region59
              $region56: #{seq2seq_forward.1} parent=51 // loop_body
                %v261 = vld [vmem:[%s259] sm:$0xff]
                %262 = vst [vmem:[%s260] sm:$0xff] %v261
                %v263 = vld [vmem:[%s259 + $0x10] sm:$0xff]
                %264 = vst [vmem:[%s260 + $0x8] sm:$0xff] %v263
                %v265 = vld [vmem:[%s259 + $0x20] sm:$0xff]
                %266 = vst [vmem:[%s260 + $0x10] sm:$0xff] %v265
                %v267 = vld [vmem:[%s259 + $0x30] sm:$0xff]
                %268 = vst [vmem:[%s260 + $0x18] sm:$0xff] %v267
                %v269 = vld [vmem:[%s259 + $0x40] sm:$0xff]
                %270 = vst [vmem:[%s260 + $0x20] sm:$0xff] %v269
                %v271 = vld [vmem:[%s259 + $0x50] sm:$0xff]
                %272 = vst [vmem:[%s260 + $0x28] sm:$0xff] %v271
              $region57: #{seq2seq_forward.1} parent=51 // loop_footer
                %s258 = sadd.s32 1, %s254
              $region58: #{seq2seq_forward.1} parent=51 // loop_footer_branch
                %253 = sbr.rel target = $region54
              $region59: #{seq2seq_forward.1} parent=51 // loop_exit
                _
            $region52: #{seq2seq_forward.1} parent=43 // pred_fallthru
              _
          $region44: #{seq2seq_forward.1} parent=39 // pred_fallthru
            _
          %297 = vnop
        $region40: #{seq2seq_forward.1} parent=35 // pred_fallthru
          _
        // Predicated region
        $region75: #{seq2seq_forward.1} parent=35 // pred_check
          %p298 = pneg %p66
        $region76: #{seq2seq_forward.1} parent=35 // pred_check_branch
          %300 = sbr.rel (%p298) target = $region78
        $region77: #{seq2seq_forward.1} parent=35 // pred_region
          %s301 = sand.u32 %s56, 1
          %s302 = sand.u32 %s56, 1
          %s303 = smul.addr %s302, 64
          %s304 = scalar_lea.vmem [#allocation5], %s303
          %s305 = smul.addr %s20, 8
          %s306 = scalar_lea.vmem %s2, %s305
          // Predicated region
          $region79: #{seq2seq_forward.1} parent=77 // pred_check
            _
          $region80: #{seq2seq_forward.1} parent=77 // pred_check_branch
            %308 = sbr.rel (0) target = $region82
          $region81: #{seq2seq_forward.1} parent=77 // pred_region
            // Predicated region
            $region83: #{seq2seq_forward.1} parent=81 // pred_check
              _
            $region84: #{seq2seq_forward.1} parent=81 // pred_check_branch
              %310 = sbr.rel (0) target = $region86
            $region85: #{seq2seq_forward.1} parent=81 // pred_region
              // Predicated region
              $region98: #{seq2seq_forward.1} parent=85 // pred_check
                _
              $region99: #{seq2seq_forward.1} parent=85 // pred_check_branch
                %339 = sbr.rel (0) target = $region101
              $region100: #{seq2seq_forward.1} parent=85 // pred_region
                loop: start=0, step=1, limit=1
                $region102: #{seq2seq_forward.1} parent=100 // loop_pre_header
                  _
                $region103: #{seq2seq_forward.1} parent=100 // loop_header
                  %s341 = sphi 0, %s345
                  %p342 = scmp.ge.s32.totalorder %s341, 1
                  %s346 = sphi %s306, %s306
                  %s347 = sphi %s304, %s304
                $region104: #{seq2seq_forward.1} parent=100 // loop_header_branch
                  %344 = sbr.rel (%p342) target = $region108
                $region105: #{seq2seq_forward.1} parent=100 // loop_body
                  %v348 = vld [vmem:[%s346] sm:$0xff]
                  %349 = vst [vmem:[%s347] sm:$0xff] %v348
                  %v350 = vld [vmem:[%s346 + $0x10] sm:$0xff]
                  %351 = vst [vmem:[%s347 + $0x8] sm:$0xff] %v350
                  %v352 = vld [vmem:[%s346 + $0x20] sm:$0xff]
                  %353 = vst [vmem:[%s347 + $0x10] sm:$0xff] %v352
                  %v354 = vld [vmem:[%s346 + $0x30] sm:$0xff]
                  %355 = vst [vmem:[%s347 + $0x18] sm:$0xff] %v354
                  %v356 = vld [vmem:[%s346 + $0x40] sm:$0xff]
                  %357 = vst [vmem:[%s347 + $0x20] sm:$0xff] %v356
                  %v358 = vld [vmem:[%s346 + $0x50] sm:$0xff]
                  %359 = vst [vmem:[%s347 + $0x28] sm:$0xff] %v358
                  %v360 = vld [vmem:[%s346 + $0x60] sm:$0xff]
                  %361 = vst [vmem:[%s347 + $0x30] sm:$0xff] %v360
                  %v362 = vld [vmem:[%s346 + $0x70] sm:$0xff]
                  %363 = vst [vmem:[%s347 + $0x38] sm:$0xff] %v362
                $region106: #{seq2seq_forward.1} parent=100 // loop_footer
                  %s345 = sadd.s32 1, %s341
                $region107: #{seq2seq_forward.1} parent=100 // loop_footer_branch
                  %340 = sbr.rel target = $region103
                $region108: #{seq2seq_forward.1} parent=100 // loop_exit
                  _
              $region101: #{seq2seq_forward.1} parent=85 // pred_fallthru
                _
              // Predicated region
              $region109: #{seq2seq_forward.1} parent=85 // pred_check
                _
              $region110: #{seq2seq_forward.1} parent=85 // pred_check_branch
                %365 = sbr.rel target = $region112
              $region111: #{seq2seq_forward.1} parent=85 // pred_region
                _
              $region112: #{seq2seq_forward.1} parent=85 // pred_fallthru
                _
            $region86: #{seq2seq_forward.1} parent=81 // pred_fallthru
              _
            // Predicated region
            $region87: #{seq2seq_forward.1} parent=81 // pred_check
              _
            $region88: #{seq2seq_forward.1} parent=81 // pred_check_branch
              %312 = sbr.rel target = $region90
            $region89: #{seq2seq_forward.1} parent=81 // pred_region
              loop: start=0, step=1, limit=1
              $region91: #{seq2seq_forward.1} parent=89 // loop_pre_header
                _
              $region92: #{seq2seq_forward.1} parent=89 // loop_header
                %s315 = sphi 0, %s319
                %p316 = scmp.ge.s32.totalorder %s315, 1
                %s320 = sphi %s306, %s306
                %s321 = sphi %s304, %s304
              $region93: #{seq2seq_forward.1} parent=89 // loop_header_branch
                %318 = sbr.rel (%p316) target = $region97
              $region94: #{seq2seq_forward.1} parent=89 // loop_body
                %v322 = vld [vmem:[%s320] sm:$0xff]
                %323 = vst [vmem:[%s321] sm:$0xff] %v322
                %v324 = vld [vmem:[%s320 + $0x10] sm:$0xff]
                %325 = vst [vmem:[%s321 + $0x8] sm:$0xff] %v324
                %v326 = vld [vmem:[%s320 + $0x20] sm:$0xff]
                %327 = vst [vmem:[%s321 + $0x10] sm:$0xff] %v326
                %v328 = vld [vmem:[%s320 + $0x30] sm:$0xff]
                %329 = vst [vmem:[%s321 + $0x18] sm:$0xff] %v328
                %v330 = vld [vmem:[%s320 + $0x40] sm:$0xff]
                %331 = vst [vmem:[%s321 + $0x20] sm:$0xff] %v330
                %v332 = vld [vmem:[%s320 + $0x50] sm:$0xff]
                %333 = vst [vmem:[%s321 + $0x28] sm:$0xff] %v332
                %v334 = vld [vmem:[%s320 + $0x60] sm:$0xff]
                %335 = vst [vmem:[%s321 + $0x30] sm:$0xff] %v334
                %v336 = vld [vmem:[%s320 + $0x70] sm:$0xff]
                %337 = vst [vmem:[%s321 + $0x38] sm:$0xff] %v336
              $region95: #{seq2seq_forward.1} parent=89 // loop_footer
                %s319 = sadd.s32 1, %s315
              $region96: #{seq2seq_forward.1} parent=89 // loop_footer_branch
                %314 = sbr.rel target = $region92
              $region97: #{seq2seq_forward.1} parent=89 // loop_exit
                _
            $region90: #{seq2seq_forward.1} parent=81 // pred_fallthru
              _
          $region82: #{seq2seq_forward.1} parent=77 // pred_fallthru
            _
          %366 = vnop
        $region78: #{seq2seq_forward.1} parent=35 // pred_fallthru
          _
      $region36: #{seq2seq_forward.1} parent=5 // pred_fallthru
        _
      %p367 = scmp.le.s32.totalorder 1, %s20
      %p368 = scmp.lt.s32.totalorder %s20, 3
      %p369 = pnand %p367, %p368
      %p370 = pneg %p369
      // Predicated region
      $region113: #{seq2seq_forward.1} parent=5 // pred_check
        _
      $region114: #{seq2seq_forward.1} parent=5 // pred_check_branch
        %372 = sbr.rel (%p369) target = $region116
      $region115: #{seq2seq_forward.1} parent=5 // pred_region
        %s373 = ssub.s32 %s20, 1
        %s374 = sand.u32 %s33, 1
        %s375 = sand.u32 %s33, 1
        %s376 = smul.addr %s375, 48
        %s377 = scalar_lea.vmem [#allocation4], %s376
        // Predicated region
        $region117: #{seq2seq_forward.1} parent=115 // pred_check
          %p378 = pneg %p46
        $region118: #{seq2seq_forward.1} parent=115 // pred_check_branch
          %380 = sbr.rel (%p378) target = $region120
        $region119: #{seq2seq_forward.1} parent=115 // pred_region
          _
        $region120: #{seq2seq_forward.1} parent=115 // pred_fallthru
          _
        %s381 = sand.u32 %s59, 1
        %s382 = sand.u32 %s59, 1
        %s383 = smul.addr %s382, 64
        %s384 = scalar_lea.vmem [#allocation5], %s383
        // Predicated region
        $region121: #{seq2seq_forward.1} parent=115 // pred_check
          %p385 = pneg %p72
        $region122: #{seq2seq_forward.1} parent=115 // pred_check_branch
          %387 = sbr.rel (%p385) target = $region124
        $region123: #{seq2seq_forward.1} parent=115 // pred_region
          _
        $region124: #{seq2seq_forward.1} parent=115 // pred_fallthru
          _
        %s388 = sand.u32 %s33, 1
        %s389 = sand.u32 %s33, 1
        %s390 = smul.addr %s389, 48
        %s391 = scalar_lea.vmem [#allocation4], %s390
        %p392 = pneg %p46
        %p393 = pneg %p43
        %s394 = sand.u32 %s59, 1
        %s395 = sand.u32 %s59, 1
        %s396 = smul.addr %s395, 64
        %s397 = scalar_lea.vmem [#allocation5], %s396
        %p398 = pneg %p72
        %p399 = pneg %p69
        %p400 = pneg %p93
        %p401 = pneg %p90
        %p402 = pneg %p114
        %p403 = pneg %p111
        %p404 = pneg %p135
        %p405 = pneg %p132
        %p406 = pneg %p156
        %p407 = pneg %p153
        %p408 = pneg %p177
        %p409 = pneg %p174
        %p410 = pneg %p203
        %p411 = pneg %p200
        %p412 = scmp.lt.s32.totalorder %s25, 1
        %s413 = scalar_select %p412, %s25, 1
        %s414 = smul.addr %s413, 2
        %s415 = smul.addr %s414, 8
        %s416 = scalar_lea.vmem %s8, %s415
        %p417 = scmp.lt.s32.totalorder %s25, 1
        %s418 = scalar_select %p417, %s25, 1
        %s419 = smul.addr %s418, 2
        %s420 = smul.addr %s419, 8
        %s421 = scalar_lea.vmem %s8, %s420
        %v422 = vld [vmem:[%s377] sm:$0xff]
        %v423 = vld [vmem:[%s3] sm:$0xff]
        %v424 = vld [vmem:[%s3 + $0x8] sm:$0xff]
        %v425 = vld [vmem:[%s3 + $0x10] sm:$0xff]
        %v426 = vld [vmem:[%s3 + $0x18] sm:$0xff]
        %vm427 = vcmask 261120
        %v429 = vsel %vm427, 0.0, 0
        %431 = vmatprep.subr.mxu0 0.0
        %432 = vmatpush1.msra.mxu0 %v423
        %433 = vmatprep.subr.mxu0 0.0
        %434 = vmatpush1.msra.mxu0 %v424
        %435 = vmatprep.subr.mxu0 0.0
        %436 = vmatpush1.msra.mxu0 %v425
        %437 = vmatprep.subr.mxu0 0.0
        %438 = vmatpush1.msra.mxu0 %v426
        %439 = vmatprep.subr.mxu0 0.0
        %440 = vmatpush1.msra.mxu0 0.0
        %441 = vmatprep.subr.mxu0 0.0
        %442 = vmatpush1.msra.mxu0 0.0
        %443 = vmatprep.subr.mxu0 0.0
        %444 = vmatpush1.msra.mxu0 0.0
        %445 = vmatprep.subr.mxu0 0.0
        %446 = vmatpush1.msra.mxu0 0.0
        %447 = vmatprep.subr.mxu0 0.0
        %448 = vmatpush1.msra.mxu0 0.0
        %449 = vmatprep.subr.mxu0 0.0
        %450 = vmatpush1.msra.mxu0 0.0
        %451 = vmatprep.subr.mxu0 0.0
        %452 = vmatpush1.msra.mxu0 0.0
        %453 = vmatprep.subr.mxu0 0.0
        %454 = vmatpush1.msra.mxu0 0.0
        %455 = vmatprep.subr.mxu0 0.0
        %456 = vmatpush1.msra.mxu0 0.0
        %457 = vmatprep.subr.mxu0 0.0
        %458 = vmatpush1.msra.mxu0 0.0
        %459 = vmatprep.subr.mxu0 0.0
        %460 = vmatpush1.msra.mxu0 0.0
        %461 = vmatprep.subr.mxu0 0.0
        %462 = vmatpush1.msra.mxu0 0.0
        %463 = vmatprep.subr.mxu0 0.0
        %464 = vmatpush1.msra.mxu0 0.0
        %465 = vmatprep.subr.mxu0 0.0
        %466 = vmatpush1.msra.mxu0 0.0
        %467 = vmatprep.subr.mxu0 0.0
        %468 = vmatpush1.msra.mxu0 0.0
        %469 = vmatprep.subr.mxu0 0.0
        %470 = vmatpush1.msra.mxu0 0.0
        %471 = vmatprep.subr.mxu0 0.0
        %472 = vmatpush1.msra.mxu0 0.0
        %473 = vmatprep.subr.mxu0 0.0
        %474 = vmatpush1.msra.mxu0 0.0
        %475 = vmatprep.subr.mxu0 0.0
        %476 = vmatpush1.msra.mxu0 0.0
        %477 = vmatprep.subr.mxu0 0.0
        %478 = vmatpush1.msra.mxu0 0.0
        %479 = vmatprep.subr.mxu0 0.0
        %480 = vmatpush1.msra.mxu0 0.0
        %481 = vmatprep.subr.mxu0 0.0
        %482 = vmatpush1.msra.mxu0 0.0
        %483 = vmatprep.subr.mxu0 0.0
        %484 = vmatpush1.msra.mxu0 0.0
        %485 = vmatprep.subr.mxu0 0.0
        %486 = vmatpush1.msra.mxu0 0.0
        %487 = vmatprep.subr.mxu0 0.0
        %488 = vmatpush1.msra.mxu0 0.0
        %489 = vmatprep.subr.mxu0 0.0
        %490 = vmatpush1.msra.mxu0 0.0
        %491 = vmatprep.subr.mxu0 0.0
        %492 = vmatpush1.msra.mxu0 0.0
        %493 = vmatprep.subr.mxu0 0.0
        %494 = vmatpush1.msra.mxu0 0.0
        %495 = vmatprep.mubr.f32.mxu0 0.0
        %496 = vmatmul.mubr.f32.gmra.mrb[0].mxu0 %v429
        %v497 = vpop.f32.mrb[0].mxu0
        %v498 = vadd.f32 0.0, %v497
        %v499 = vpop.f32.mrb[0].mxu0
        %500 = vdwg.mxu0
        %v501 = vadd.f32 %v422, %v498
        %v502 = vxor.u32 %v501, 2147483648
        %v503 = vmul.f32 %v502, 1.442695
        %v504 = vpow.pop %v503
        %v505 = vadd.f32 %v504, 1.0
        %v506 = vrcp.pop %v505
        %v507 = vmul.f32 1.0, %v506
        %v508 = vtanh.pop %v501
        %v509 = vmul.f32 %v507, 0.0
        %511 = vrot.lane.b32.xlu0 %v508, 64
        %v512 = vpop.permute.xlu0 %511
        %v514 = vmul.f32 %v507, %v512
        %516 = vrot.lane.b32.xlu0 %v514, 32
        %v517 = vpop.permute.xlu0 %516
        %v519 = vadd.f32 %v509, %v517
        %v520 = vtanh.pop %v519
        %522 = vrot.lane.b32.xlu0 %v520, 64
        %v523 = vpop.permute.xlu0 %522
        %v525 = vmul.f32 %v507, %v523
        %s526 = scalar_lea.vmem %s377, 8 [#allocation4]
        %v527 = vld [vmem:[%s526] sm:$0xff]
        %529 = vrot.lane.b32.xlu0 %v525, 32
        %v530 = vpop.permute.xlu0 %529
        %v531 = vsel %vm427, %v530, 0
        %533 = vmatprep.subr.mxu0 0.0
        %534 = vmatpush1.msra.mxu0 %v423
        %535 = vmatprep.subr.mxu0 0.0
        %536 = vmatpush1.msra.mxu0 %v424
        %537 = vmatprep.subr.mxu0 0.0
        %538 = vmatpush1.msra.mxu0 %v425
        %539 = vmatprep.subr.mxu0 0.0
        %540 = vmatpush1.msra.mxu0 %v426
        %541 = vmatprep.subr.mxu0 0.0
        %542 = vmatpush1.msra.mxu0 0.0
        %543 = vmatprep.subr.mxu0 0.0
        %544 = vmatpush1.msra.mxu0 0.0
        %545 = vmatprep.subr.mxu0 0.0
        %546 = vmatpush1.msra.mxu0 0.0
        %547 = vmatprep.subr.mxu0 0.0
        %548 = vmatpush1.msra.mxu0 0.0
        %549 = vmatprep.subr.mxu0 0.0
        %550 = vmatpush1.msra.mxu0 0.0
        %551 = vmatprep.subr.mxu0 0.0
        %552 = vmatpush1.msra.mxu0 0.0
        %553 = vmatprep.subr.mxu0 0.0
        %554 = vmatpush1.msra.mxu0 0.0
        %555 = vmatprep.subr.mxu0 0.0
        %556 = vmatpush1.msra.mxu0 0.0
        %557 = vmatprep.subr.mxu0 0.0
        %558 = vmatpush1.msra.mxu0 0.0
        %559 = vmatprep.subr.mxu0 0.0
        %560 = vmatpush1.msra.mxu0 0.0
        %561 = vmatprep.subr.mxu0 0.0
        %562 = vmatpush1.msra.mxu0 0.0
        %563 = vmatprep.subr.mxu0 0.0
        %564 = vmatpush1.msra.mxu0 0.0
        %565 = vmatprep.subr.mxu0 0.0
        %566 = vmatpush1.msra.mxu0 0.0
        %567 = vmatprep.subr.mxu0 0.0
        %568 = vmatpush1.msra.mxu0 0.0
        %569 = vmatprep.subr.mxu0 0.0
        %570 = vmatpush1.msra.mxu0 0.0
        %571 = vmatprep.subr.mxu0 0.0
        %572 = vmatpush1.msra.mxu0 0.0
        %573 = vmatprep.subr.mxu0 0.0
        %574 = vmatpush1.msra.mxu0 0.0
        %575 = vmatprep.subr.mxu0 0.0
        %576 = vmatpush1.msra.mxu0 0.0
        %577 = vmatprep.subr.mxu0 0.0
        %578 = vmatpush1.msra.mxu0 0.0
        %579 = vmatprep.subr.mxu0 0.0
        %580 = vmatpush1.msra.mxu0 0.0
        %581 = vmatprep.subr.mxu0 0.0
        %582 = vmatpush1.msra.mxu0 0.0
        %583 = vmatprep.subr.mxu0 0.0
        %584 = vmatpush1.msra.mxu0 0.0
        %585 = vmatprep.subr.mxu0 0.0
        %586 = vmatpush1.msra.mxu0 0.0
        %587 = vmatprep.subr.mxu0 0.0
        %588 = vmatpush1.msra.mxu0 0.0
        %589 = vmatprep.subr.mxu0 0.0
        %590 = vmatpush1.msra.mxu0 0.0
        %591 = vmatprep.subr.mxu0 0.0
        %592 = vmatpush1.msra.mxu0 0.0
        %593 = vmatprep.subr.mxu0 0.0
        %594 = vmatpush1.msra.mxu0 0.0
        %595 = vmatprep.subr.mxu0 0.0
        %596 = vmatpush1.msra.mxu0 0.0
        %597 = vmatprep.mubr.f32.mxu0 0.0
        %598 = vmatmul.mubr.f32.gmra.mrb[0].mxu0 %v531
        %v599 = vpop.f32.mrb[0].mxu0
        %v600 = vadd.f32 0.0, %v599
        %v601 = vpop.f32.mrb[0].mxu0
        %602 = vdwg.mxu0
        %v603 = vadd.f32 %v527, %v600
        %v604 = vxor.u32 %v603, 2147483648
        %v605 = vmul.f32 %v604, 1.442695
        %v606 = vpow.pop %v605
        %v607 = vadd.f32 %v606, 1.0
        %v608 = vrcp.pop %v607
        %v609 = vmul.f32 1.0, %v608
        %v610 = vtanh.pop %v603
        %v611 = vmul.f32 %v609, %v519
        %613 = vrot.lane.b32.xlu0 %v610, 64
        %v614 = vpop.permute.xlu0 %613
        %v616 = vmul.f32 %v609, %v614
        %618 = vrot.lane.b32.xlu0 %v616, 32
        %v619 = vpop.permute.xlu0 %618
        %v621 = vadd.f32 %v611, %v619
        %v622 = vtanh.pop %v621
        %624 = vrot.lane.b32.xlu0 %v622, 64
        %v625 = vpop.permute.xlu0 %624
        %v627 = vmul.f32 %v609, %v625
        %s628 = scalar_lea.vmem %s377, 16 [#allocation4]
        %v629 = vld [vmem:[%s628] sm:$0xff]
        %631 = vrot.lane.b32.xlu0 %v627, 32
        %v632 = vpop.permute.xlu0 %631
        %v633 = vsel %vm427, %v632, 0
        %635 = vmatprep.subr.mxu0 0.0
        %636 = vmatpush1.msra.mxu0 %v423
        %637 = vmatprep.subr.mxu0 0.0
        %638 = vmatpush1.msra.mxu0 %v424
        %639 = vmatprep.subr.mxu0 0.0
        %640 = vmatpush1.msra.mxu0 %v425
        %641 = vmatprep.subr.mxu0 0.0
        %642 = vmatpush1.msra.mxu0 %v426
        %643 = vmatprep.subr.mxu0 0.0
        %644 = vmatpush1.msra.mxu0 0.0
        %645 = vmatprep.subr.mxu0 0.0
        %646 = vmatpush1.msra.mxu0 0.0
        %647 = vmatprep.subr.mxu0 0.0
        %648 = vmatpush1.msra.mxu0 0.0
        %649 = vmatprep.subr.mxu0 0.0
        %650 = vmatpush1.msra.mxu0 0.0
        %651 = vmatprep.subr.mxu0 0.0
        %652 = vmatpush1.msra.mxu0 0.0
        %653 = vmatprep.subr.mxu0 0.0
        %654 = vmatpush1.msra.mxu0 0.0
        %655 = vmatprep.subr.mxu0 0.0
        %656 = vmatpush1.msra.mxu0 0.0
        %657 = vmatprep.subr.mxu0 0.0
        %658 = vmatpush1.msra.mxu0 0.0
        %659 = vmatprep.subr.mxu0 0.0
        %660 = vmatpush1.msra.mxu0 0.0
        %661 = vmatprep.subr.mxu0 0.0
        %662 = vmatpush1.msra.mxu0 0.0
        %663 = vmatprep.subr.mxu0 0.0
        %664 = vmatpush1.msra.mxu0 0.0
        %665 = vmatprep.subr.mxu0 0.0
        %666 = vmatpush1.msra.mxu0 0.0
        %667 = vmatprep.subr.mxu0 0.0
        %668 = vmatpush1.msra.mxu0 0.0
        %669 = vmatprep.subr.mxu0 0.0
        %670 = vmatpush1.msra.mxu0 0.0
        %671 = vmatprep.subr.mxu0 0.0
        %672 = vmatpush1.msra.mxu0 0.0
        %673 = vmatprep.subr.mxu0 0.0
        %674 = vmatpush1.msra.mxu0 0.0
        %675 = vmatprep.subr.mxu0 0.0
        %676 = vmatpush1.msra.mxu0 0.0
        %677 = vmatprep.subr.mxu0 0.0
        %678 = vmatpush1.msra.mxu0 0.0
        %679 = vmatprep.subr.mxu0 0.0
        %680 = vmatpush1.msra.mxu0 0.0
        %681 = vmatprep.subr.mxu0 0.0
        %682 = vmatpush1.msra.mxu0 0.0
        %683 = vmatprep.subr.mxu0 0.0
        %684 = vmatpush1.msra.mxu0 0.0
        %685 = vmatprep.subr.mxu0 0.0
        %686 = vmatpush1.msra.mxu0 0.0
        %687 = vmatprep.subr.mxu0 0.0
        %688 = vmatpush1.msra.mxu0 0.0
        %689 = vmatprep.subr.mxu0 0.0
        %690 = vmatpush1.msra.mxu0 0.0
        %691 = vmatprep.subr.mxu0 0.0
        %692 = vmatpush1.msra.mxu0 0.0
        %693 = vmatprep.subr.mxu0 0.0
        %694 = vmatpush1.msra.mxu0 0.0
        %695 = vmatprep.subr.mxu0 0.0
        %696 = vmatpush1.msra.mxu0 0.0
        %697 = vmatprep.subr.mxu0 0.0
        %698 = vmatpush1.msra.mxu0 0.0
        %699 = vmatprep.mubr.f32.mxu0 0.0
        %700 = vmatmul.mubr.f32.gmra.mrb[0].mxu0 %v633
        %v701 = vpop.f32.mrb[0].mxu0
        %v702 = vadd.f32 0.0, %v701
        %v703 = vpop.f32.mrb[0].mxu0
        %704 = vdwg.mxu0
        %v705 = vadd.f32 %v629, %v702
        %v706 = vxor.u32 %v705, 2147483648
        %v707 = vmul.f32 %v706, 1.442695
        %v708 = vpow.pop %v707
        %v709 = vadd.f32 %v708, 1.0
        %v710 = vrcp.pop %v709
        %v711 = vmul.f32 1.0, %v710
        %v712 = vtanh.pop %v705
        %v713 = vmul.f32 %v711, %v621
        %715 = vrot.lane.b32.xlu0 %v712, 64
        %v716 = vpop.permute.xlu0 %715
        %v718 = vmul.f32 %v711, %v716
        %720 = vrot.lane.b32.xlu0 %v718, 32
        %v721 = vpop.permute.xlu0 %720
        %v723 = vadd.f32 %v713, %v721
        %v724 = vtanh.pop %v723
        %726 = vrot.lane.b32.xlu0 %v724, 64
        %v727 = vpop.permute.xlu0 %726
        %v729 = vmul.f32 %v711, %v727
        %s730 = scalar_lea.vmem %s377, 24 [#allocation4]
        %v731 = vld [vmem:[%s730] sm:$0xff]
        %733 = vrot.lane.b32.xlu0 %v729, 32
        %v734 = vpop.permute.xlu0 %733
        %v735 = vsel %vm427, %v734, 0
        %737 = vmatprep.subr.mxu0 0.0
        %738 = vmatpush1.msra.mxu0 %v423
        %739 = vmatprep.subr.mxu0 0.0
        %740 = vmatpush1.msra.mxu0 %v424
        %741 = vmatprep.subr.mxu0 0.0
        %742 = vmatpush1.msra.mxu0 %v425
        %743 = vmatprep.subr.mxu0 0.0
        %744 = vmatpush1.msra.mxu0 %v426
        %745 = vmatprep.subr.mxu0 0.0
        %746 = vmatpush1.msra.mxu0 0.0
        %747 = vmatprep.subr.mxu0 0.0
        %748 = vmatpush1.msra.mxu0 0.0
        %749 = vmatprep.subr.mxu0 0.0
        %750 = vmatpush1.msra.mxu0 0.0
        %751 = vmatprep.subr.mxu0 0.0
        %752 = vmatpush1.msra.mxu0 0.0
        %753 = vmatprep.subr.mxu0 0.0
        %754 = vmatpush1.msra.mxu0 0.0
        %755 = vmatprep.subr.mxu0 0.0
        %756 = vmatpush1.msra.mxu0 0.0
        %757 = vmatprep.subr.mxu0 0.0
        %758 = vmatpush1.msra.mxu0 0.0
        %759 = vmatprep.subr.mxu0 0.0
        %760 = vmatpush1.msra.mxu0 0.0
        %761 = vmatprep.subr.mxu0 0.0
        %762 = vmatpush1.msra.mxu0 0.0
        %763 = vmatprep.subr.mxu0 0.0
        %764 = vmatpush1.msra.mxu0 0.0
        %765 = vmatprep.subr.mxu0 0.0
        %766 = vmatpush1.msra.mxu0 0.0
        %767 = vmatprep.subr.mxu0 0.0
        %768 = vmatpush1.msra.mxu0 0.0
        %769 = vmatprep.subr.mxu0 0.0
        %770 = vmatpush1.msra.mxu0 0.0
        %771 = vmatprep.subr.mxu0 0.0
        %772 = vmatpush1.msra.mxu0 0.0
        %773 = vmatprep.subr.mxu0 0.0
        %774 = vmatpush1.msra.mxu0 0.0
        %775 = vmatprep.subr.mxu0 0.0
        %776 = vmatpush1.msra.mxu0 0.0
        %777 = vmatprep.subr.mxu0 0.0
        %778 = vmatpush1.msra.mxu0 0.0
        %779 = vmatprep.subr.mxu0 0.0
        %780 = vmatpush1.msra.mxu0 0.0
        %781 = vmatprep.subr.mxu0 0.0
        %782 = vmatpush1.msra.mxu0 0.0
        %783 = vmatprep.subr.mxu0 0.0
        %784 = vmatpush1.msra.mxu0 0.0
        %785 = vmatprep.subr.mxu0 0.0
        %786 = vmatpush1.msra.mxu0 0.0
        %787 = vmatprep.subr.mxu0 0.0
        %788 = vmatpush1.msra.mxu0 0.0
        %789 = vmatprep.subr.mxu0 0.0
        %790 = vmatpush1.msra.mxu0 0.0
        %791 = vmatprep.subr.mxu0 0.0
        %792 = vmatpush1.msra.mxu0 0.0
        %793 = vmatprep.subr.mxu0 0.0
        %794 = vmatpush1.msra.mxu0 0.0
        %795 = vmatprep.subr.mxu0 0.0
        %796 = vmatpush1.msra.mxu0 0.0
        %797 = vmatprep.subr.mxu0 0.0
        %798 = vmatpush1.msra.mxu0 0.0
        %799 = vmatprep.subr.mxu0 0.0
        %800 = vmatpush1.msra.mxu0 0.0
        %801 = vmatprep.mubr.f32.mxu0 0.0
        %802 = vmatmul.mubr.f32.gmra.mrb[0].mxu0 %v735
        %v803 = vpop.f32.mrb[0].mxu0
        %v804 = vadd.f32 0.0, %v803
        %v805 = vpop.f32.mrb[0].mxu0
        %806 = vdwg.mxu0
        %v807 = vadd.f32 %v731, %v804
        %v808 = vxor.u32 %v807, 2147483648
        %v809 = vmul.f32 %v808, 1.442695
        %v810 = vpow.pop %v809
        %v811 = vadd.f32 %v810, 1.0
        %v812 = vrcp.pop %v811
        %v813 = vmul.f32 1.0, %v812
        %v814 = vtanh.pop %v807
        %v815 = vmul.f32 %v813, %v723
        %817 = vrot.lane.b32.xlu0 %v814, 64
        %v818 = vpop.permute.xlu0 %817
        %v820 = vmul.f32 %v813, %v818
        %822 = vrot.lane.b32.xlu0 %v820, 32
        %v823 = vpop.permute.xlu0 %822
        %v825 = vadd.f32 %v815, %v823
        %v826 = vtanh.pop %v825
        %828 = vrot.lane.b32.xlu0 %v826, 64
        %v829 = vpop.permute.xlu0 %828
        %v831 = vmul.f32 %v813, %v829
        %s832 = scalar_lea.vmem %s377, 32 [#allocation4]
        %v833 = vld [vmem:[%s832] sm:$0xff]
        %835 = vrot.lane.b32.xlu0 %v831, 32
        %v836 = vpop.permute.xlu0 %835
        %v837 = vsel %vm427, %v836, 0
        %839 = vmatprep.subr.mxu0 0.0
        %840 = vmatpush1.msra.mxu0 %v423
        %841 = vmatprep.subr.mxu0 0.0
        %842 = vmatpush1.msra.mxu0 %v424
        %843 = vmatprep.subr.mxu0 0.0
        %844 = vmatpush1.msra.mxu0 %v425
        %845 = vmatprep.subr.mxu0 0.0
        %846 = vmatpush1.msra.mxu0 %v426
        %847 = vmatprep.subr.mxu0 0.0
        %848 = vmatpush1.msra.mxu0 0.0
        %849 = vmatprep.subr.mxu0 0.0
        %850 = vmatpush1.msra.mxu0 0.0
        %851 = vmatprep.subr.mxu0 0.0
        %852 = vmatpush1.msra.mxu0 0.0
        %853 = vmatprep.subr.mxu0 0.0
        %854 = vmatpush1.msra.mxu0 0.0
        %855 = vmatprep.subr.mxu0 0.0
        %856 = vmatpush1.msra.mxu0 0.0
        %857 = vmatprep.subr.mxu0 0.0
        %858 = vmatpush1.msra.mxu0 0.0
        %859 = vmatprep.subr.mxu0 0.0
        %860 = vmatpush1.msra.mxu0 0.0
        %861 = vmatprep.subr.mxu0 0.0
        %862 = vmatpush1.msra.mxu0 0.0
        %863 = vmatprep.subr.mxu0 0.0
        %864 = vmatpush1.msra.mxu0 0.0
        %865 = vmatprep.subr.mxu0 0.0
        %866 = vmatpush1.msra.mxu0 0.0
        %867 = vmatprep.subr.mxu0 0.0
        %868 = vmatpush1.msra.mxu0 0.0
        %869 = vmatprep.subr.mxu0 0.0
        %870 = vmatpush1.msra.mxu0 0.0
        %871 = vmatprep.subr.mxu0 0.0
        %872 = vmatpush1.msra.mxu0 0.0
        %873 = vmatprep.subr.mxu0 0.0
        %874 = vmatpush1.msra.mxu0 0.0
        %875 = vmatprep.subr.mxu0 0.0
        %876 = vmatpush1.msra.mxu0 0.0
        %877 = vmatprep.subr.mxu0 0.0
        %878 = vmatpush1.msra.mxu0 0.0
        %879 = vmatprep.subr.mxu0 0.0
        %880 = vmatpush1.msra.mxu0 0.0
        %881 = vmatprep.subr.mxu0 0.0
        %882 = vmatpush1.msra.mxu0 0.0
        %883 = vmatprep.subr.mxu0 0.0
        %884 = vmatpush1.msra.mxu0 0.0
        %885 = vmatprep.subr.mxu0 0.0
        %886 = vmatpush1.msra.mxu0 0.0
        %887 = vmatprep.subr.mxu0 0.0
        %888 = vmatpush1.msra.mxu0 0.0
        %889 = vmatprep.subr.mxu0 0.0
        %890 = vmatpush1.msra.mxu0 0.0
        %891 = vmatprep.subr.mxu0 0.0
        %892 = vmatpush1.msra.mxu0 0.0
        %893 = vmatprep.subr.mxu0 0.0
        %894 = vmatpush1.msra.mxu0 0.0
        %895 = vmatprep.subr.mxu0 0.0
        %896 = vmatpush1.msra.mxu0 0.0
        %897 = vmatprep.subr.mxu0 0.0
        %898 = vmatpush1.msra.mxu0 0.0
        %899 = vmatprep.subr.mxu0 0.0
        %900 = vmatpush1.msra.mxu0 0.0
        %901 = vmatprep.subr.mxu0 0.0
        %902 = vmatpush1.msra.mxu0 0.0
        %903 = vmatprep.mubr.f32.mxu0 0.0
        %904 = vmatmul.mubr.f32.gmra.mrb[0].mxu0 %v837
        %v905 = vpop.f32.mrb[0].mxu0
        %v906 = vadd.f32 0.0, %v905
        %v907 = vpop.f32.mrb[0].mxu0
        %908 = vdwg.mxu0
        %v909 = vadd.f32 %v833, %v906
        %v910 = vxor.u32 %v909, 2147483648
        %v911 = vmul.f32 %v910, 1.442695
        %v912 = vpow.pop %v911
        %v913 = vadd.f32 %v912, 1.0
        %v914 = vrcp.pop %v913
        %v915 = vmul.f32 1.0, %v914
        %v916 = vtanh.pop %v909
        %v917 = vmul.f32 %v915, %v825
        %919 = vrot.lane.b32.xlu0 %v916, 64
        %v920 = vpop.permute.xlu0 %919
        %v922 = vmul.f32 %v915, %v920
        %924 = vrot.lane.b32.xlu0 %v922, 32
        %v925 = vpop.permute.xlu0 %924
        %v927 = vadd.f32 %v917, %v925
        %v928 = vtanh.pop %v927
        %930 = vrot.lane.b32.xlu0 %v928, 64
        %v931 = vpop.permute.xlu0 %930
        %v933 = vmul.f32 %v915, %v931
        %s934 = scalar_lea.vmem %s377, 40 [#allocation4]
        %v935 = vld [vmem:[%s934] sm:$0xff]
        %937 = vrot.lane.b32.xlu0 %v933, 32
        %v938 = vpop.permute.xlu0 %937
        %v939 = vsel %vm427, %v938, 0
        %941 = vmatprep.subr.mxu0 0.0
        %942 = vmatpush1.msra.mxu0 %v423
        %943 = vmatprep.subr.mxu0 0.0
        %944 = vmatpush1.msra.mxu0 %v424
        %945 = vmatprep.subr.mxu0 0.0
        %946 = vmatpush1.msra.mxu0 %v425
        %947 = vmatprep.subr.mxu0 0.0
        %948 = vmatpush1.msra.mxu0 %v426
        %949 = vmatprep.subr.mxu0 0.0
        %950 = vmatpush1.msra.mxu0 0.0
        %951 = vmatprep.subr.mxu0 0.0
        %952 = vmatpush1.msra.mxu0 0.0
        %953 = vmatprep.subr.mxu0 0.0
        %954 = vmatpush1.msra.mxu0 0.0
        %955 = vmatprep.subr.mxu0 0.0
        %956 = vmatpush1.msra.mxu0 0.0
        %957 = vmatprep.subr.mxu0 0.0
        %958 = vmatpush1.msra.mxu0 0.0
        %959 = vmatprep.subr.mxu0 0.0
        %960 = vmatpush1.msra.mxu0 0.0
        %961 = vmatprep.subr.mxu0 0.0
        %962 = vmatpush1.msra.mxu0 0.0
        %963 = vmatprep.subr.mxu0 0.0
        %964 = vmatpush1.msra.mxu0 0.0
        %965 = vmatprep.subr.mxu0 0.0
        %966 = vmatpush1.msra.mxu0 0.0
        %967 = vmatprep.subr.mxu0 0.0
        %968 = vmatpush1.msra.mxu0 0.0
        %969 = vmatprep.subr.mxu0 0.0
        %970 = vmatpush1.msra.mxu0 0.0
        %971 = vmatprep.subr.mxu0 0.0
        %972 = vmatpush1.msra.mxu0 0.0
        %973 = vmatprep.subr.mxu0 0.0
        %974 = vmatpush1.msra.mxu0 0.0
        %975 = vmatprep.subr.mxu0 0.0
        %976 = vmatpush1.msra.mxu0 0.0
        %977 = vmatprep.subr.mxu0 0.0
        %978 = vmatpush1.msra.mxu0 0.0
        %979 = vmatprep.subr.mxu0 0.0
        %980 = vmatpush1.msra.mxu0 0.0
        %981 = vmatprep.subr.mxu0 0.0
        %982 = vmatpush1.msra.mxu0 0.0
        %983 = vmatprep.subr.mxu0 0.0
        %984 = vmatpush1.msra.mxu0 0.0
        %985 = vmatprep.subr.mxu0 0.0
        %986 = vmatpush1.msra.mxu0 0.0
        %987 = vmatprep.subr.mxu0 0.0
        %988 = vmatpush1.msra.mxu0 0.0
        %989 = vmatprep.subr.mxu0 0.0
        %990 = vmatpush1.msra.mxu0 0.0
        %991 = vmatprep.subr.mxu0 0.0
        %992 = vmatpush1.msra.mxu0 0.0
        %993 = vmatprep.subr.mxu0 0.0
        %994 = vmatpush1.msra.mxu0 0.0
        %995 = vmatprep.subr.mxu0 0.0
        %996 = vmatpush1.msra.mxu0 0.0
        %997 = vmatprep.subr.mxu0 0.0
        %998 = vmatpush1.msra.mxu0 0.0
        %999 = vmatprep.subr.mxu0 0.0
        %1000 = vmatpush1.msra.mxu0 0.0
        %1001 = vmatprep.subr.mxu0 0.0
        %1002 = vmatpush1.msra.mxu0 0.0
        %1003 = vmatprep.subr.mxu0 0.0
        %1004 = vmatpush1.msra.mxu0 0.0
        %1005 = vmatprep.mubr.f32.mxu0 0.0
        %1006 = vmatmul.mubr.f32.gmra.mrb[0].mxu0 %v939
        %v1007 = vpop.f32.mrb[0].mxu0
        %v1008 = vadd.f32 0.0, %v1007
        %v1009 = vpop.f32.mrb[0].mxu0
        %1010 = vdwg.mxu0
        %v1011 = vadd.f32 %v935, %v1008
        %v1012 = vxor.u32 %v1011, 2147483648
        %v1013 = vmul.f32 %v1012, 1.442695
        %v1014 = vpow.pop %v1013
        %v1015 = vadd.f32 %v1014, 1.0
        %v1016 = vrcp.pop %v1015
        %v1017 = vmul.f32 1.0, %v1016
        %v1018 = vtanh.pop %v1011
        %v1019 = vmul.f32 %v1017, %v927
        %1021 = vrot.lane.b32.xlu0 %v1018, 64
        %v1022 = vpop.permute.xlu0 %1021
        %v1024 = vmul.f32 %v1017, %v1022
        %1026 = vrot.lane.b32.xlu0 %v1024, 32
        %v1027 = vpop.permute.xlu0 %1026
        %v1029 = vadd.f32 %v1019, %v1027
        %v1030 = vtanh.pop %v1029
        %1032 = vrot.lane.b32.xlu0 %v1030, 64
        %v1033 = vpop.permute.xlu0 %1032
        %v1035 = vmul.f32 %v1017, %v1033
        %v1036 = vlaneseq
        %v1037 = vand.u32 %v1036, 127
        %v1038 = vld [vmem:[%s7] sm:$0x1]
        %v1040 = vlaneseq
        %v1041 = vshrl.u32 %v1040, 7
        %v1042 = vsub.s32 0, %v1041
        %v1043 = vrot.slane %v1038, %v1042
        %v1045 = vld [vmem:[%s384] sm:$0xff]
        %v1046 = vld [vmem:[%s4] sm:$0xff]
        %v1047 = vld [vmem:[%s4 + $0x8] sm:$0xff]
        %v1048 = vld [vmem:[%s4 + $0x10] sm:$0xff]
        %v1049 = vld [vmem:[%s4 + $0x18] sm:$0xff]
        %1051 = vrot.lane.b32.xlu0 %v1035, 32
        %v1052 = vpop.permute.xlu0 %1051
        %v1053 = vsel %vm427, %v1052, 0
        %1055 = vmatprep.subr.mxu0 0.0
        %1056 = vmatpush1.msra.mxu0 %v1046
        %1057 = vmatprep.subr.mxu0 0.0
        %1058 = vmatpush1.msra.mxu0 %v1047
        %1059 = vmatprep.subr.mxu0 0.0
        %1060 = vmatpush1.msra.mxu0 %v1048
        %1061 = vmatprep.subr.mxu0 0.0
        %1062 = vmatpush1.msra.mxu0 %v1049
        %1063 = vmatprep.subr.mxu0 0.0
        %1064 = vmatpush1.msra.mxu0 0.0
        %1065 = vmatprep.subr.mxu0 0.0
        %1066 = vmatpush1.msra.mxu0 0.0
        %1067 = vmatprep.subr.mxu0 0.0
        %1068 = vmatpush1.msra.mxu0 0.0
        %1069 = vmatprep.subr.mxu0 0.0
        %1070 = vmatpush1.msra.mxu0 0.0
        %1071 = vmatprep.subr.mxu0 0.0
        %1072 = vmatpush1.msra.mxu0 0.0
        %1073 = vmatprep.subr.mxu0 0.0
        %1074 = vmatpush1.msra.mxu0 0.0
        %1075 = vmatprep.subr.mxu0 0.0
        %1076 = vmatpush1.msra.mxu0 0.0
        %1077 = vmatprep.subr.mxu0 0.0
        %1078 = vmatpush1.msra.mxu0 0.0
        %1079 = vmatprep.subr.mxu0 0.0
        %1080 = vmatpush1.msra.mxu0 0.0
        %1081 = vmatprep.subr.mxu0 0.0
        %1082 = vmatpush1.msra.mxu0 0.0
        %1083 = vmatprep.subr.mxu0 0.0
        %1084 = vmatpush1.msra.mxu0 0.0
        %1085 = vmatprep.subr.mxu0 0.0
        %1086 = vmatpush1.msra.mxu0 0.0
        %1087 = vmatprep.subr.mxu0 0.0
        %1088 = vmatpush1.msra.mxu0 0.0
        %1089 = vmatprep.subr.mxu0 0.0
        %1090 = vmatpush1.msra.mxu0 0.0
        %1091 = vmatprep.subr.mxu0 0.0
        %1092 = vmatpush1.msra.mxu0 0.0
        %1093 = vmatprep.subr.mxu0 0.0
        %1094 = vmatpush1.msra.mxu0 0.0
        %1095 = vmatprep.subr.mxu0 0.0
        %1096 = vmatpush1.msra.mxu0 0.0
        %1097 = vmatprep.subr.mxu0 0.0
        %1098 = vmatpush1.msra.mxu0 0.0
        %1099 = vmatprep.subr.mxu0 0.0
        %1100 = vmatpush1.msra.mxu0 0.0
        %1101 = vmatprep.subr.mxu0 0.0
        %1102 = vmatpush1.msra.mxu0 0.0
        %1103 = vmatprep.subr.mxu0 0.0
        %1104 = vmatpush1.msra.mxu0 0.0
        %1105 = vmatprep.subr.mxu0 0.0
        %1106 = vmatpush1.msra.mxu0 0.0
        %1107 = vmatprep.subr.mxu0 0.0
        %1108 = vmatpush1.msra.mxu0 0.0
        %1109 = vmatprep.subr.mxu0 0.0
        %1110 = vmatpush1.msra.mxu0 0.0
        %1111 = vmatprep.subr.mxu0 0.0
        %1112 = vmatpush1.msra.mxu0 0.0
        %1113 = vmatprep.subr.mxu0 0.0
        %1114 = vmatpush1.msra.mxu0 0.0
        %1115 = vmatprep.subr.mxu0 0.0
        %1116 = vmatpush1.msra.mxu0 0.0
        %1117 = vmatprep.subr.mxu0 0.0
        %1118 = vmatpush1.msra.mxu0 0.0
        %1119 = vmatprep.mubr.f32.mxu0 0.0
        %1120 = vmatmul.mubr.f32.gmra.mrb[0].mxu0 %v1053
        %v1121 = vpop.f32.mrb[0].mxu0
        %v1122 = vadd.f32 0.0, %v1121
        %v1123 = vpop.f32.mrb[0].mxu0
        %1124 = vdwg.mxu0
        %v1125 = vadd.f32 %v1045, %v1122
        %v1126 = vxor.u32 %v1125, 2147483648
        %v1127 = vmul.f32 %v1126, 1.442695
        %v1128 = vpow.pop %v1127
        %v1129 = vadd.f32 %v1128, 1.0
        %v1130 = vrcp.pop %v1129
        %v1131 = vmul.f32 1.0, %v1130
        %v1132 = vtanh.pop %v1125
        %v1133 = vmul.f32 %v1131, %v1029
        %1135 = vrot.lane.b32.xlu0 %v1132, 64
        %v1136 = vpop.permute.xlu0 %1135
        %v1138 = vmul.f32 %v1131, %v1136
        %1140 = vrot.lane.b32.xlu0 %v1138, 32
        %v1141 = vpop.permute.xlu0 %1140
        %v1143 = vadd.f32 %v1133, %v1141
        %v1144 = vtanh.pop %v1143
        %1146 = vrot.lane.b32.xlu0 %v1144, 64
        %v1147 = vpop.permute.xlu0 %1146
        %v1149 = vmul.f32 %v1131, %v1147
        %v1150 = vld [vmem:[%s6] sm:$0xff]
        %v1151 = vld [vmem:[%s6 + $0x8] sm:$0xff]
        %v1152 = vld [vmem:[%s6 + $0x10] sm:$0xff]
        %v1153 = vld [vmem:[%s6 + $0x18] sm:$0xff]
        %1155 = vrot.lane.b32.xlu0 %v1149, 32
        %v1156 = vpop.permute.xlu0 %1155
        %v1157 = vsel %vm427, %v1156, 0
        %1159 = vmatprep.subr.mxu0 0.0
        %1160 = vmatpush1.msra.mxu0 %v1150
        %1161 = vmatprep.subr.mxu0 0.0
        %1162 = vmatpush1.msra.mxu0 %v1151
        %1163 = vmatprep.subr.mxu0 0.0
        %1164 = vmatpush1.msra.mxu0 %v1152
        %1165 = vmatprep.subr.mxu0 0.0
        %1166 = vmatpush1.msra.mxu0 %v1153
        %1167 = vmatprep.subr.mxu0 0.0
        %1168 = vmatpush1.msra.mxu0 0.0
        %1169 = vmatprep.subr.mxu0 0.0
        %1170 = vmatpush1.msra.mxu0 0.0
        %1171 = vmatprep.subr.mxu0 0.0
        %1172 = vmatpush1.msra.mxu0 0.0
        %1173 = vmatprep.subr.mxu0 0.0
        %1174 = vmatpush1.msra.mxu0 0.0
        %1175 = vmatprep.subr.mxu0 0.0
        %1176 = vmatpush1.msra.mxu0 0.0
        %1177 = vmatprep.subr.mxu0 0.0
        %1178 = vmatpush1.msra.mxu0 0.0
        %1179 = vmatprep.subr.mxu0 0.0
        %1180 = vmatpush1.msra.mxu0 0.0
        %1181 = vmatprep.subr.mxu0 0.0
        %1182 = vmatpush1.msra.mxu0 0.0
        %1183 = vmatprep.subr.mxu0 0.0
        %1184 = vmatpush1.msra.mxu0 0.0
        %1185 = vmatprep.subr.mxu0 0.0
        %1186 = vmatpush1.msra.mxu0 0.0
        %1187 = vmatprep.subr.mxu0 0.0
        %1188 = vmatpush1.msra.mxu0 0.0
        %1189 = vmatprep.subr.mxu0 0.0
        %1190 = vmatpush1.msra.mxu0 0.0
        %1191 = vmatprep.subr.mxu0 0.0
        %1192 = vmatpush1.msra.mxu0 0.0
        %1193 = vmatprep.subr.mxu0 0.0
        %1194 = vmatpush1.msra.mxu0 0.0
        %1195 = vmatprep.subr.mxu0 0.0
        %1196 = vmatpush1.msra.mxu0 0.0
        %1197 = vmatprep.subr.mxu0 0.0
        %1198 = vmatpush1.msra.mxu0 0.0
        %1199 = vmatprep.subr.mxu0 0.0
        %1200 = vmatpush1.msra.mxu0 0.0
        %1201 = vmatprep.subr.mxu0 0.0
        %1202 = vmatpush1.msra.mxu0 0.0
        %1203 = vmatprep.subr.mxu0 0.0
        %1204 = vmatpush1.msra.mxu0 0.0
        %1205 = vmatprep.subr.mxu0 0.0
        %1206 = vmatpush1.msra.mxu0 0.0
        %1207 = vmatprep.subr.mxu0 0.0
        %1208 = vmatpush1.msra.mxu0 0.0
        %1209 = vmatprep.subr.mxu0 0.0
        %1210 = vmatpush1.msra.mxu0 0.0
        %1211 = vmatprep.subr.mxu0 0.0
        %1212 = vmatpush1.msra.mxu0 0.0
        %1213 = vmatprep.subr.mxu0 0.0
        %1214 = vmatpush1.msra.mxu0 0.0
        %1215 = vmatprep.subr.mxu0 0.0
        %1216 = vmatpush1.msra.mxu0 0.0
        %1217 = vmatprep.subr.mxu0 0.0
        %1218 = vmatpush1.msra.mxu0 0.0
        %1219 = vmatprep.subr.mxu0 0.0
        %1220 = vmatpush1.msra.mxu0 0.0
        %1221 = vmatprep.subr.mxu0 0.0
        %1222 = vmatpush1.msra.mxu0 0.0
        %1223 = vmatprep.mubr.f32.mxu0 0.0
        %1224 = vmatmul.mubr.f32.gmra.mrb[0].mxu0 %v1157
        %v1225 = vpop.f32.mrb[0].mxu0
        %v1226 = vadd.f32 %v1043, %v1225
        %v1227 = vpop.f32.mrb[0].mxu0
        %1228 = vdwg.mxu0
        %v1229 = vsel %vm427, %v1226, -inf
        %1230 = vmax.xlane.f32.xlu0 %v1229
        %v1231 = vpop.xlane.xlu0 %1230
        %vm1232 = vcmp.eq.f32.partialorder %v1226, %v1231
        %v1233 = vsel %vm1232, %v1037, 32
        %v1234 = vsel %vm427, %v1233, 2147483647
        %v1235 = vand.u32 %v1234, 65535
        %v1236 = vshra.s32 %v1234, 16
        %v1237 = vcvt.s32.f32 %v1235
        %v1238 = vcvt.s32.f32 %v1236
        %1239 = vmin.xlane.f32.xlu0 %v1238
        %v1240 = vpop.xlane.xlu0 %1239
        %vm1241 = vcmp.eq.f32.partialorder %v1238, %v1240
        %v1242 = vsel %vm1241, %v1237, inf
        %1243 = vmin.xlane.f32.xlu0 %v1242
        %v1244 = vpop.xlane.xlu0 %1243
        %v1245 = vcvt.f32.s32 %v1244
        %v1246 = vcvt.f32.s32 %v1240
        %v1247 = vshll.u32 %v1246, 16
        %v1248 = vadd.s32 %v1247, %v1245
        %vm1249 = vcmp.eq.s32.totalorder %v1037, %v1248
        %v1250 = vsel %vm1249, 1, 0
        %v1251 = vcvt.s32.f32 %v1250
        %v1252 = vld [vmem:[%s5] sm:$0xff]
        %v1253 = vld [vmem:[%s5 + $0x8] sm:$0xff]
        %v1254 = vld [vmem:[%s5 + $0x10] sm:$0xff]
        %v1255 = vld [vmem:[%s5 + $0x18] sm:$0xff]
        %v1257 = vsel %vm427, %v1251, 0
        %1259 = vmatprep.subr.mxu0 0.0
        %1260 = vmatpush1.msra.mxu0 %v1252
        %1261 = vmatprep.subr.mxu0 0.0
        %1262 = vmatpush1.msra.mxu0 %v1253
        %1263 = vmatprep.subr.mxu0 0.0
        %1264 = vmatpush1.msra.mxu0 %v1254
        %1265 = vmatprep.subr.mxu0 0.0
        %1266 = vmatpush1.msra.mxu0 %v1255
        %1267 = vmatprep.subr.mxu0 0.0
        %1268 = vmatpush1.msra.mxu0 0.0
        %1269 = vmatprep.subr.mxu0 0.0
        %1270 = vmatpush1.msra.mxu0 0.0
        %1271 = vmatprep.subr.mxu0 0.0
        %1272 = vmatpush1.msra.mxu0 0.0
        %1273 = vmatprep.subr.mxu0 0.0
        %1274 = vmatpush1.msra.mxu0 0.0
        %1275 = vmatprep.subr.mxu0 0.0
        %1276 = vmatpush1.msra.mxu0 0.0
        %1277 = vmatprep.subr.mxu0 0.0
        %1278 = vmatpush1.msra.mxu0 0.0
        %1279 = vmatprep.subr.mxu0 0.0
        %1280 = vmatpush1.msra.mxu0 0.0
        %1281 = vmatprep.subr.mxu0 0.0
        %1282 = vmatpush1.msra.mxu0 0.0
        %1283 = vmatprep.subr.mxu0 0.0
        %1284 = vmatpush1.msra.mxu0 0.0
        %1285 = vmatprep.subr.mxu0 0.0
        %1286 = vmatpush1.msra.mxu0 0.0
        %1287 = vmatprep.subr.mxu0 0.0
        %1288 = vmatpush1.msra.mxu0 0.0
        %1289 = vmatprep.subr.mxu0 0.0
        %1290 = vmatpush1.msra.mxu0 0.0
        %1291 = vmatprep.subr.mxu0 0.0
        %1292 = vmatpush1.msra.mxu0 0.0
        %1293 = vmatprep.subr.mxu0 0.0
        %1294 = vmatpush1.msra.mxu0 0.0
        %1295 = vmatprep.subr.mxu0 0.0
        %1296 = vmatpush1.msra.mxu0 0.0
        %1297 = vmatprep.subr.mxu0 0.0
        %1298 = vmatpush1.msra.mxu0 0.0
        %1299 = vmatprep.subr.mxu0 0.0
        %1300 = vmatpush1.msra.mxu0 0.0
        %1301 = vmatprep.subr.mxu0 0.0
        %1302 = vmatpush1.msra.mxu0 0.0
        %1303 = vmatprep.subr.mxu0 0.0
        %1304 = vmatpush1.msra.mxu0 0.0
        %1305 = vmatprep.subr.mxu0 0.0
        %1306 = vmatpush1.msra.mxu0 0.0
        %1307 = vmatprep.subr.mxu0 0.0
        %1308 = vmatpush1.msra.mxu0 0.0
        %1309 = vmatprep.subr.mxu0 0.0
        %1310 = vmatpush1.msra.mxu0 0.0
        %1311 = vmatprep.subr.mxu0 0.0
        %1312 = vmatpush1.msra.mxu0 0.0
        %1313 = vmatprep.subr.mxu0 0.0
        %1314 = vmatpush1.msra.mxu0 0.0
        %1315 = vmatprep.subr.mxu0 0.0
        %1316 = vmatpush1.msra.mxu0 0.0
        %1317 = vmatprep.subr.mxu0 0.0
        %1318 = vmatpush1.msra.mxu0 0.0
        %1319 = vmatprep.subr.mxu0 0.0
        %1320 = vmatpush1.msra.mxu0 0.0
        %1321 = vmatprep.subr.mxu0 0.0
        %1322 = vmatpush1.msra.mxu0 0.0
        %1323 = vmatprep.mubr.f32.mxu0 0.0
        %1324 = vmatmul.mubr.f32.gmra.mrb[0].mxu0 %v1257
        %v1325 = vpop.f32.mrb[0].mxu0
        %v1326 = vadd.f32 0.0, %v1325
        %v1327 = vpop.f32.mrb[0].mxu0
        %1328 = vdwg.mxu0
        %s1329 = sld [smem:[#allocation3 + $0x1]]
        %p1330 = scmp.ne.s32.totalorder %s1329, 0
        %s1331 = scalar_lea.vmem %s384, 8 [#allocation5]
        %v1332 = vld [vmem:[%s1331] sm:$0xff]
        %s1333 = scalar_select %p1330, 1, 0
        %v1334 = vstv %s1333
        %vm1335 = vcmp.eq.s32.totalorder %v1334, 1
        %v1336 = vsel %vm1335, %v1332, %v1326
        %1337 = vmatprep.subr.mxu0 0.0
        %1338 = vmatpush1.msra.mxu0 %v1046
        %1339 = vmatprep.subr.mxu0 0.0
        %1340 = vmatpush1.msra.mxu0 %v1047
        %1341 = vmatprep.subr.mxu0 0.0
        %1342 = vmatpush1.msra.mxu0 %v1048
        %1343 = vmatprep.subr.mxu0 0.0
        %1344 = vmatpush1.msra.mxu0 %v1049
        %1345 = vmatprep.subr.mxu0 0.0
        %1346 = vmatpush1.msra.mxu0 0.0
        %1347 = vmatprep.subr.mxu0 0.0
        %1348 = vmatpush1.msra.mxu0 0.0
        %1349 = vmatprep.subr.mxu0 0.0
        %1350 = vmatpush1.msra.mxu0 0.0
        %1351 = vmatprep.subr.mxu0 0.0
        %1352 = vmatpush1.msra.mxu0 0.0
        %1353 = vmatprep.subr.mxu0 0.0
        %1354 = vmatpush1.msra.mxu0 0.0
        %1355 = vmatprep.subr.mxu0 0.0
        %1356 = vmatpush1.msra.mxu0 0.0
        %1357 = vmatprep.subr.mxu0 0.0
        %1358 = vmatpush1.msra.mxu0 0.0
        %1359 = vmatprep.subr.mxu0 0.0
        %1360 = vmatpush1.msra.mxu0 0.0
        %1361 = vmatprep.subr.mxu0 0.0
        %1362 = vmatpush1.msra.mxu0 0.0
        %1363 = vmatprep.subr.mxu0 0.0
        %1364 = vmatpush1.msra.mxu0 0.0
        %1365 = vmatprep.subr.mxu0 0.0
        %1366 = vmatpush1.msra.mxu0 0.0
        %1367 = vmatprep.subr.mxu0 0.0
        %1368 = vmatpush1.msra.mxu0 0.0
        %1369 = vmatprep.subr.mxu0 0.0
        %1370 = vmatpush1.msra.mxu0 0.0
        %1371 = vmatprep.subr.mxu0 0.0
        %1372 = vmatpush1.msra.mxu0 0.0
        %1373 = vmatprep.subr.mxu0 0.0
        %1374 = vmatpush1.msra.mxu0 0.0
        %1375 = vmatprep.subr.mxu0 0.0
        %1376 = vmatpush1.msra.mxu0 0.0
        %1377 = vmatprep.subr.mxu0 0.0
        %1378 = vmatpush1.msra.mxu0 0.0
        %1379 = vmatprep.subr.mxu0 0.0
        %1380 = vmatpush1.msra.mxu0 0.0
        %1381 = vmatprep.subr.mxu0 0.0
        %1382 = vmatpush1.msra.mxu0 0.0
        %1383 = vmatprep.subr.mxu0 0.0
        %1384 = vmatpush1.msra.mxu0 0.0
        %1385 = vmatprep.subr.mxu0 0.0
        %1386 = vmatpush1.msra.mxu0 0.0
        %1387 = vmatprep.subr.mxu0 0.0
        %1388 = vmatpush1.msra.mxu0 0.0
        %1389 = vmatprep.subr.mxu0 0.0
        %1390 = vmatpush1.msra.mxu0 0.0
        %1391 = vmatprep.subr.mxu0 0.0
        %1392 = vmatpush1.msra.mxu0 0.0
        %1393 = vmatprep.subr.mxu0 0.0
        %1394 = vmatpush1.msra.mxu0 0.0
        %1395 = vmatprep.subr.mxu0 0.0
        %1396 = vmatpush1.msra.mxu0 0.0
        %1397 = vmatprep.subr.mxu0 0.0
        %1398 = vmatpush1.msra.mxu0 0.0
        %1399 = vmatprep.subr.mxu0 0.0
        %1400 = vmatpush1.msra.mxu0 0.0
        %1401 = vmatprep.mubr.f32.mxu0 0.0
        %1402 = vmatmul.mubr.f32.gmra.mrb[0].mxu0 %v1157
        %v1403 = vpop.f32.mrb[0].mxu0
        %v1404 = vadd.f32 0.0, %v1403
        %v1405 = vpop.f32.mrb[0].mxu0
        %1406 = vdwg.mxu0
        %v1407 = vadd.f32 %v1336, %v1404
        %v1408 = vxor.u32 %v1407, 2147483648
        %v1409 = vmul.f32 %v1408, 1.442695
        %v1410 = vpow.pop %v1409
        %v1411 = vadd.f32 %v1410, 1.0
        %v1412 = vrcp.pop %v1411
        %v1413 = vmul.f32 1.0, %v1412
        %v1414 = vtanh.pop %v1407
        %v1415 = vmul.f32 %v1413, %v1143
        %1417 = vrot.lane.b32.xlu0 %v1414, 64
        %v1418 = vpop.permute.xlu0 %1417
        %v1420 = vmul.f32 %v1413, %v1418
        %1422 = vrot.lane.b32.xlu0 %v1420, 32
        %v1423 = vpop.permute.xlu0 %1422
        %v1425 = vadd.f32 %v1415, %v1423
        %v1426 = vtanh.pop %v1425
        %1428 = vrot.lane.b32.xlu0 %v1426, 64
        %v1429 = vpop.permute.xlu0 %1428
        %v1431 = vmul.f32 %v1413, %v1429
        %1433 = vrot.lane.b32.xlu0 %v1431, 32
        %v1434 = vpop.permute.xlu0 %1433
        %v1435 = vsel %vm427, %v1434, 0
        %1437 = vmatprep.subr.mxu0 0.0
        %1438 = vmatpush1.msra.mxu0 %v1150
        %1439 = vmatprep.subr.mxu0 0.0
        %1440 = vmatpush1.msra.mxu0 %v1151
        %1441 = vmatprep.subr.mxu0 0.0
        %1442 = vmatpush1.msra.mxu0 %v1152
        %1443 = vmatprep.subr.mxu0 0.0
        %1444 = vmatpush1.msra.mxu0 %v1153
        %1445 = vmatprep.subr.mxu0 0.0
        %1446 = vmatpush1.msra.mxu0 0.0
        %1447 = vmatprep.subr.mxu0 0.0
        %1448 = vmatpush1.msra.mxu0 0.0
        %1449 = vmatprep.subr.mxu0 0.0
        %1450 = vmatpush1.msra.mxu0 0.0
        %1451 = vmatprep.subr.mxu0 0.0
        %1452 = vmatpush1.msra.mxu0 0.0
        %1453 = vmatprep.subr.mxu0 0.0
        %1454 = vmatpush1.msra.mxu0 0.0
        %1455 = vmatprep.subr.mxu0 0.0
        %1456 = vmatpush1.msra.mxu0 0.0
        %1457 = vmatprep.subr.mxu0 0.0
        %1458 = vmatpush1.msra.mxu0 0.0
        %1459 = vmatprep.subr.mxu0 0.0
        %1460 = vmatpush1.msra.mxu0 0.0
        %1461 = vmatprep.subr.mxu0 0.0
        %1462 = vmatpush1.msra.mxu0 0.0
        %1463 = vmatprep.subr.mxu0 0.0
        %1464 = vmatpush1.msra.mxu0 0.0
        %1465 = vmatprep.subr.mxu0 0.0
        %1466 = vmatpush1.msra.mxu0 0.0
        %1467 = vmatprep.subr.mxu0 0.0
        %1468 = vmatpush1.msra.mxu0 0.0
        %1469 = vmatprep.subr.mxu0 0.0
        %1470 = vmatpush1.msra.mxu0 0.0
        %1471 = vmatprep.subr.mxu0 0.0
        %1472 = vmatpush1.msra.mxu0 0.0
        %1473 = vmatprep.subr.mxu0 0.0
        %1474 = vmatpush1.msra.mxu0 0.0
        %1475 = vmatprep.subr.mxu0 0.0
        %1476 = vmatpush1.msra.mxu0 0.0
        %1477 = vmatprep.subr.mxu0 0.0
        %1478 = vmatpush1.msra.mxu0 0.0
        %1479 = vmatprep.subr.mxu0 0.0
        %1480 = vmatpush1.msra.mxu0 0.0
        %1481 = vmatprep.subr.mxu0 0.0
        %1482 = vmatpush1.msra.mxu0 0.0
        %1483 = vmatprep.subr.mxu0 0.0
        %1484 = vmatpush1.msra.mxu0 0.0
        %1485 = vmatprep.subr.mxu0 0.0
        %1486 = vmatpush1.msra.mxu0 0.0
        %1487 = vmatprep.subr.mxu0 0.0
        %1488 = vmatpush1.msra.mxu0 0.0
        %1489 = vmatprep.subr.mxu0 0.0
        %1490 = vmatpush1.msra.mxu0 0.0
        %1491 = vmatprep.subr.mxu0 0.0
        %1492 = vmatpush1.msra.mxu0 0.0
        %1493 = vmatprep.subr.mxu0 0.0
        %1494 = vmatpush1.msra.mxu0 0.0
        %1495 = vmatprep.subr.mxu0 0.0
        %1496 = vmatpush1.msra.mxu0 0.0
        %1497 = vmatprep.subr.mxu0 0.0
        %1498 = vmatpush1.msra.mxu0 0.0
        %1499 = vmatprep.subr.mxu0 0.0
        %1500 = vmatpush1.msra.mxu0 0.0
        %1501 = vmatprep.mubr.f32.mxu0 0.0
        %1502 = vmatmul.mubr.f32.gmra.mrb[0].mxu0 %v1435
        %v1503 = vpop.f32.mrb[0].mxu0
        %v1504 = vadd.f32 %v1043, %v1503
        %v1505 = vpop.f32.mrb[0].mxu0
        %1506 = vdwg.mxu0
        %v1507 = vsel %vm427, %v1504, -inf
        %1508 = vmax.xlane.f32.xlu0 %v1507
        %v1509 = vpop.xlane.xlu0 %1508
        %vm1510 = vcmp.eq.f32.partialorder %v1504, %v1509
        %v1511 = vsel %vm1510, %v1037, 32
        %v1512 = vsel %vm427, %v1511, 2147483647
        %v1513 = vand.u32 %v1512, 65535
        %v1514 = vshra.s32 %v1512, 16
        %v1515 = vcvt.s32.f32 %v1513
        %v1516 = vcvt.s32.f32 %v1514
        %1517 = vmin.xlane.f32.xlu0 %v1516
        %v1518 = vpop.xlane.xlu0 %1517
        %vm1519 = vcmp.eq.f32.partialorder %v1516, %v1518
        %v1520 = vsel %vm1519, %v1515, inf
        %1521 = vmin.xlane.f32.xlu0 %v1520
        %v1522 = vpop.xlane.xlu0 %1521
        %v1523 = vcvt.f32.s32 %v1522
        %v1524 = vcvt.f32.s32 %v1518
        %v1525 = vshll.u32 %v1524, 16
        %v1526 = vadd.s32 %v1525, %v1523
        %vm1527 = vcmp.eq.s32.totalorder %v1037, %v1526
        %v1528 = vsel %vm1527, 1, 0
        %v1529 = vcvt.s32.f32 %v1528
        %v1531 = vsel %vm427, %v1529, 0
        %1533 = vmatprep.subr.mxu0 0.0
        %1534 = vmatpush1.msra.mxu0 %v1252
        %1535 = vmatprep.subr.mxu0 0.0
        %1536 = vmatpush1.msra.mxu0 %v1253
        %1537 = vmatprep.subr.mxu0 0.0
        %1538 = vmatpush1.msra.mxu0 %v1254
        %1539 = vmatprep.subr.mxu0 0.0
        %1540 = vmatpush1.msra.mxu0 %v1255
        %1541 = vmatprep.subr.mxu0 0.0
        %1542 = vmatpush1.msra.mxu0 0.0
        %1543 = vmatprep.subr.mxu0 0.0
        %1544 = vmatpush1.msra.mxu0 0.0
        %1545 = vmatprep.subr.mxu0 0.0
        %1546 = vmatpush1.msra.mxu0 0.0
        %1547 = vmatprep.subr.mxu0 0.0
        %1548 = vmatpush1.msra.mxu0 0.0
        %1549 = vmatprep.subr.mxu0 0.0
        %1550 = vmatpush1.msra.mxu0 0.0
        %1551 = vmatprep.subr.mxu0 0.0
        %1552 = vmatpush1.msra.mxu0 0.0
        %1553 = vmatprep.subr.mxu0 0.0
        %1554 = vmatpush1.msra.mxu0 0.0
        %1555 = vmatprep.subr.mxu0 0.0
        %1556 = vmatpush1.msra.mxu0 0.0
        %1557 = vmatprep.subr.mxu0 0.0
        %1558 = vmatpush1.msra.mxu0 0.0
        %1559 = vmatprep.subr.mxu0 0.0
        %1560 = vmatpush1.msra.mxu0 0.0
        %1561 = vmatprep.subr.mxu0 0.0
        %1562 = vmatpush1.msra.mxu0 0.0
        %1563 = vmatprep.subr.mxu0 0.0
        %1564 = vmatpush1.msra.mxu0 0.0
        %1565 = vmatprep.subr.mxu0 0.0
        %1566 = vmatpush1.msra.mxu0 0.0
        %1567 = vmatprep.subr.mxu0 0.0
        %1568 = vmatpush1.msra.mxu0 0.0
        %1569 = vmatprep.subr.mxu0 0.0
        %1570 = vmatpush1.msra.mxu0 0.0
        %1571 = vmatprep.subr.mxu0 0.0
        %1572 = vmatpush1.msra.mxu0 0.0
        %1573 = vmatprep.subr.mxu0 0.0
        %1574 = vmatpush1.msra.mxu0 0.0
        %1575 = vmatprep.subr.mxu0 0.0
        %1576 = vmatpush1.msra.mxu0 0.0
        %1577 = vmatprep.subr.mxu0 0.0
        %1578 = vmatpush1.msra.mxu0 0.0
        %1579 = vmatprep.subr.mxu0 0.0
        %1580 = vmatpush1.msra.mxu0 0.0
        %1581 = vmatprep.subr.mxu0 0.0
        %1582 = vmatpush1.msra.mxu0 0.0
        %1583 = vmatprep.subr.mxu0 0.0
        %1584 = vmatpush1.msra.mxu0 0.0
        %1585 = vmatprep.subr.mxu0 0.0
        %1586 = vmatpush1.msra.mxu0 0.0
        %1587 = vmatprep.subr.mxu0 0.0
        %1588 = vmatpush1.msra.mxu0 0.0
        %1589 = vmatprep.subr.mxu0 0.0
        %1590 = vmatpush1.msra.mxu0 0.0
        %1591 = vmatprep.subr.mxu0 0.0
        %1592 = vmatpush1.msra.mxu0 0.0
        %1593 = vmatprep.subr.mxu0 0.0
        %1594 = vmatpush1.msra.mxu0 0.0
        %1595 = vmatprep.subr.mxu0 0.0
        %1596 = vmatpush1.msra.mxu0 0.0
        %1597 = vmatprep.mubr.f32.mxu0 0.0
        %1598 = vmatmul.mubr.f32.gmra.mrb[0].mxu0 %v1531
        %v1599 = vpop.f32.mrb[0].mxu0
        %v1600 = vadd.f32 0.0, %v1599
        %v1601 = vpop.f32.mrb[0].mxu0
        %1602 = vdwg.mxu0
        %s1603 = sld [smem:[#allocation3 + $0x2]]
        %p1604 = scmp.ne.s32.totalorder %s1603, 0
        %s1605 = scalar_lea.vmem %s384, 16 [#allocation5]
        %v1606 = vld [vmem:[%s1605] sm:$0xff]
        %s1607 = scalar_select %p1604, 1, 0
        %v1608 = vstv %s1607
        %vm1609 = vcmp.eq.s32.totalorder %v1608, 1
        %v1610 = vsel %vm1609, %v1606, %v1600
        %1611 = vmatprep.subr.mxu0 0.0
        %1612 = vmatpush1.msra.mxu0 %v1046
        %1613 = vmatprep.subr.mxu0 0.0
        %1614 = vmatpush1.msra.mxu0 %v1047
        %1615 = vmatprep.subr.mxu0 0.0
        %1616 = vmatpush1.msra.mxu0 %v1048
        %1617 = vmatprep.subr.mxu0 0.0
        %1618 = vmatpush1.msra.mxu0 %v1049
        %1619 = vmatprep.subr.mxu0 0.0
        %1620 = vmatpush1.msra.mxu0 0.0
        %1621 = vmatprep.subr.mxu0 0.0
        %1622 = vmatpush1.msra.mxu0 0.0
        %1623 = vmatprep.subr.mxu0 0.0
        %1624 = vmatpush1.msra.mxu0 0.0
        %1625 = vmatprep.subr.mxu0 0.0
        %1626 = vmatpush1.msra.mxu0 0.0
        %1627 = vmatprep.subr.mxu0 0.0
        %1628 = vmatpush1.msra.mxu0 0.0
        %1629 = vmatprep.subr.mxu0 0.0
        %1630 = vmatpush1.msra.mxu0 0.0
        %1631 = vmatprep.subr.mxu0 0.0
        %1632 = vmatpush1.msra.mxu0 0.0
        %1633 = vmatprep.subr.mxu0 0.0
        %1634 = vmatpush1.msra.mxu0 0.0
        %1635 = vmatprep.subr.mxu0 0.0
        %1636 = vmatpush1.msra.mxu0 0.0
        %1637 = vmatprep.subr.mxu0 0.0
        %1638 = vmatpush1.msra.mxu0 0.0
        %1639 = vmatprep.subr.mxu0 0.0
        %1640 = vmatpush1.msra.mxu0 0.0
        %1641 = vmatprep.subr.mxu0 0.0
        %1642 = vmatpush1.msra.mxu0 0.0
        %1643 = vmatprep.subr.mxu0 0.0
        %1644 = vmatpush1.msra.mxu0 0.0
        %1645 = vmatprep.subr.mxu0 0.0
        %1646 = vmatpush1.msra.mxu0 0.0
        %1647 = vmatprep.subr.mxu0 0.0
        %1648 = vmatpush1.msra.mxu0 0.0
        %1649 = vmatprep.subr.mxu0 0.0
        %1650 = vmatpush1.msra.mxu0 0.0
        %1651 = vmatprep.subr.mxu0 0.0
        %1652 = vmatpush1.msra.mxu0 0.0
        %1653 = vmatprep.subr.mxu0 0.0
        %1654 = vmatpush1.msra.mxu0 0.0
        %1655 = vmatprep.subr.mxu0 0.0
        %1656 = vmatpush1.msra.mxu0 0.0
        %1657 = vmatprep.subr.mxu0 0.0
        %1658 = vmatpush1.msra.mxu0 0.0
        %1659 = vmatprep.subr.mxu0 0.0
        %1660 = vmatpush1.msra.mxu0 0.0
        %1661 = vmatprep.subr.mxu0 0.0
        %1662 = vmatpush1.msra.mxu0 0.0
        %1663 = vmatprep.subr.mxu0 0.0
        %1664 = vmatpush1.msra.mxu0 0.0
        %1665 = vmatprep.subr.mxu0 0.0
        %1666 = vmatpush1.msra.mxu0 0.0
        %1667 = vmatprep.subr.mxu0 0.0
        %1668 = vmatpush1.msra.mxu0 0.0
        %1669 = vmatprep.subr.mxu0 0.0
        %1670 = vmatpush1.msra.mxu0 0.0
        %1671 = vmatprep.subr.mxu0 0.0
        %1672 = vmatpush1.msra.mxu0 0.0
        %1673 = vmatprep.subr.mxu0 0.0
        %1674 = vmatpush1.msra.mxu0 0.0
        %1675 = vmatprep.mubr.f32.mxu0 0.0
        %1676 = vmatmul.mubr.f32.gmra.mrb[0].mxu0 %v1435
        %v1677 = vpop.f32.mrb[0].mxu0
        %v1678 = vadd.f32 0.0, %v1677
        %v1679 = vpop.f32.mrb[0].mxu0
        %1680 = vdwg.mxu0
        %v1681 = vadd.f32 %v1610, %v1678
        %v1682 = vxor.u32 %v1681, 2147483648
        %v1683 = vmul.f32 %v1682, 1.442695
        %v1684 = vpow.pop %v1683
        %v1685 = vadd.f32 %v1684, 1.0
        %v1686 = vrcp.pop %v1685
        %v1687 = vmul.f32 1.0, %v1686
        %v1688 = vtanh.pop %v1681
        %v1689 = vmul.f32 %v1687, %v1425
        %1691 = vrot.lane.b32.xlu0 %v1688, 64
        %v1692 = vpop.permute.xlu0 %1691
        %v1694 = vmul.f32 %v1687, %v1692
        %1696 = vrot.lane.b32.xlu0 %v1694, 32
        %v1697 = vpop.permute.xlu0 %1696
        %v1699 = vadd.f32 %v1689, %v1697
        %v1700 = vtanh.pop %v1699
        %1702 = vrot.lane.b32.xlu0 %v1700, 64
        %v1703 = vpop.permute.xlu0 %1702
        %v1705 = vmul.f32 %v1687, %v1703
        %1707 = vrot.lane.b32.xlu0 %v1705, 32
        %v1708 = vpop.permute.xlu0 %1707
        %v1709 = vsel %vm427, %v1708, 0
        %1711 = vmatprep.subr.mxu0 0.0
        %1712 = vmatpush1.msra.mxu0 %v1150
        %1713 = vmatprep.subr.mxu0 0.0
        %1714 = vmatpush1.msra.mxu0 %v1151
        %1715 = vmatprep.subr.mxu0 0.0
        %1716 = vmatpush1.msra.mxu0 %v1152
        %1717 = vmatprep.subr.mxu0 0.0
        %1718 = vmatpush1.msra.mxu0 %v1153
        %1719 = vmatprep.subr.mxu0 0.0
        %1720 = vmatpush1.msra.mxu0 0.0
        %1721 = vmatprep.subr.mxu0 0.0
        %1722 = vmatpush1.msra.mxu0 0.0
        %1723 = vmatprep.subr.mxu0 0.0
        %1724 = vmatpush1.msra.mxu0 0.0
        %1725 = vmatprep.subr.mxu0 0.0
        %1726 = vmatpush1.msra.mxu0 0.0
        %1727 = vmatprep.subr.mxu0 0.0
        %1728 = vmatpush1.msra.mxu0 0.0
        %1729 = vmatprep.subr.mxu0 0.0
        %1730 = vmatpush1.msra.mxu0 0.0
        %1731 = vmatprep.subr.mxu0 0.0
        %1732 = vmatpush1.msra.mxu0 0.0
        %1733 = vmatprep.subr.mxu0 0.0
        %1734 = vmatpush1.msra.mxu0 0.0
        %1735 = vmatprep.subr.mxu0 0.0
        %1736 = vmatpush1.msra.mxu0 0.0
        %1737 = vmatprep.subr.mxu0 0.0
        %1738 = vmatpush1.msra.mxu0 0.0
        %1739 = vmatprep.subr.mxu0 0.0
        %1740 = vmatpush1.msra.mxu0 0.0
        %1741 = vmatprep.subr.mxu0 0.0
        %1742 = vmatpush1.msra.mxu0 0.0
        %1743 = vmatprep.subr.mxu0 0.0
        %1744 = vmatpush1.msra.mxu0 0.0
        %1745 = vmatprep.subr.mxu0 0.0
        %1746 = vmatpush1.msra.mxu0 0.0
        %1747 = vmatprep.subr.mxu0 0.0
        %1748 = vmatpush1.msra.mxu0 0.0
        %1749 = vmatprep.subr.mxu0 0.0
        %1750 = vmatpush1.msra.mxu0 0.0
        %1751 = vmatprep.subr.mxu0 0.0
        %1752 = vmatpush1.msra.mxu0 0.0
        %1753 = vmatprep.subr.mxu0 0.0
        %1754 = vmatpush1.msra.mxu0 0.0
        %1755 = vmatprep.subr.mxu0 0.0
        %1756 = vmatpush1.msra.mxu0 0.0
        %1757 = vmatprep.subr.mxu0 0.0
        %1758 = vmatpush1.msra.mxu0 0.0
        %1759 = vmatprep.subr.mxu0 0.0
        %1760 = vmatpush1.msra.mxu0 0.0
        %1761 = vmatprep.subr.mxu0 0.0
        %1762 = vmatpush1.msra.mxu0 0.0
        %1763 = vmatprep.subr.mxu0 0.0
        %1764 = vmatpush1.msra.mxu0 0.0
        %1765 = vmatprep.subr.mxu0 0.0
        %1766 = vmatpush1.msra.mxu0 0.0
        %1767 = vmatprep.subr.mxu0 0.0
        %1768 = vmatpush1.msra.mxu0 0.0
        %1769 = vmatprep.subr.mxu0 0.0
        %1770 = vmatpush1.msra.mxu0 0.0
        %1771 = vmatprep.subr.mxu0 0.0
        %1772 = vmatpush1.msra.mxu0 0.0
        %1773 = vmatprep.subr.mxu0 0.0
        %1774 = vmatpush1.msra.mxu0 0.0
        %1775 = vmatprep.mubr.f32.mxu0 0.0
        %1776 = vmatmul.mubr.f32.gmra.mrb[0].mxu0 %v1709
        %v1777 = vpop.f32.mrb[0].mxu0
        %v1778 = vadd.f32 %v1043, %v1777
        %v1779 = vpop.f32.mrb[0].mxu0
        %1780 = vdwg.mxu0
        %v1781 = vsel %vm427, %v1778, -inf
        %1782 = vmax.xlane.f32.xlu0 %v1781
        %v1783 = vpop.xlane.xlu0 %1782
        %vm1784 = vcmp.eq.f32.partialorder %v1778, %v1783
        %v1785 = vsel %vm1784, %v1037, 32
        %v1786 = vsel %vm427, %v1785, 2147483647
        %v1787 = vand.u32 %v1786, 65535
        %v1788 = vshra.s32 %v1786, 16
        %v1789 = vcvt.s32.f32 %v1787
        %v1790 = vcvt.s32.f32 %v1788
        %1791 = vmin.xlane.f32.xlu0 %v1790
        %v1792 = vpop.xlane.xlu0 %1791
        %vm1793 = vcmp.eq.f32.partialorder %v1790, %v1792
        %v1794 = vsel %vm1793, %v1789, inf
        %1795 = vmin.xlane.f32.xlu0 %v1794
        %v1796 = vpop.xlane.xlu0 %1795
        %v1797 = vcvt.f32.s32 %v1796
        %v1798 = vcvt.f32.s32 %v1792
        %v1799 = vshll.u32 %v1798, 16
        %v1800 = vadd.s32 %v1799, %v1797
        %vm1801 = vcmp.eq.s32.totalorder %v1037, %v1800
        %v1802 = vsel %vm1801, 1, 0
        %v1803 = vcvt.s32.f32 %v1802
        %v1805 = vsel %vm427, %v1803, 0
        %1807 = vmatprep.subr.mxu0 0.0
        %1808 = vmatpush1.msra.mxu0 %v1252
        %1809 = vmatprep.subr.mxu0 0.0
        %1810 = vmatpush1.msra.mxu0 %v1253
        %1811 = vmatprep.subr.mxu0 0.0
        %1812 = vmatpush1.msra.mxu0 %v1254
        %1813 = vmatprep.subr.mxu0 0.0
        %1814 = vmatpush1.msra.mxu0 %v1255
        %1815 = vmatprep.subr.mxu0 0.0
        %1816 = vmatpush1.msra.mxu0 0.0
        %1817 = vmatprep.subr.mxu0 0.0
        %1818 = vmatpush1.msra.mxu0 0.0
        %1819 = vmatprep.subr.mxu0 0.0
        %1820 = vmatpush1.msra.mxu0 0.0
        %1821 = vmatprep.subr.mxu0 0.0
        %1822 = vmatpush1.msra.mxu0 0.0
        %1823 = vmatprep.subr.mxu0 0.0
        %1824 = vmatpush1.msra.mxu0 0.0
        %1825 = vmatprep.subr.mxu0 0.0
        %1826 = vmatpush1.msra.mxu0 0.0
        %1827 = vmatprep.subr.mxu0 0.0
        %1828 = vmatpush1.msra.mxu0 0.0
        %1829 = vmatprep.subr.mxu0 0.0
        %1830 = vmatpush1.msra.mxu0 0.0
        %1831 = vmatprep.subr.mxu0 0.0
        %1832 = vmatpush1.msra.mxu0 0.0
        %1833 = vmatprep.subr.mxu0 0.0
        %1834 = vmatpush1.msra.mxu0 0.0
        %1835 = vmatprep.subr.mxu0 0.0
        %1836 = vmatpush1.msra.mxu0 0.0
        %1837 = vmatprep.subr.mxu0 0.0
        %1838 = vmatpush1.msra.mxu0 0.0
        %1839 = vmatprep.subr.mxu0 0.0
        %1840 = vmatpush1.msra.mxu0 0.0
        %1841 = vmatprep.subr.mxu0 0.0
        %1842 = vmatpush1.msra.mxu0 0.0
        %1843 = vmatprep.subr.mxu0 0.0
        %1844 = vmatpush1.msra.mxu0 0.0
        %1845 = vmatprep.subr.mxu0 0.0
        %1846 = vmatpush1.msra.mxu0 0.0
        %1847 = vmatprep.subr.mxu0 0.0
        %1848 = vmatpush1.msra.mxu0 0.0
        %1849 = vmatprep.subr.mxu0 0.0
        %1850 = vmatpush1.msra.mxu0 0.0
        %1851 = vmatprep.subr.mxu0 0.0
        %1852 = vmatpush1.msra.mxu0 0.0
        %1853 = vmatprep.subr.mxu0 0.0
        %1854 = vmatpush1.msra.mxu0 0.0
        %1855 = vmatprep.subr.mxu0 0.0
        %1856 = vmatpush1.msra.mxu0 0.0
        %1857 = vmatprep.subr.mxu0 0.0
        %1858 = vmatpush1.msra.mxu0 0.0
        %1859 = vmatprep.subr.mxu0 0.0
        %1860 = vmatpush1.msra.mxu0 0.0
        %1861 = vmatprep.subr.mxu0 0.0
        %1862 = vmatpush1.msra.mxu0 0.0
        %1863 = vmatprep.subr.mxu0 0.0
        %1864 = vmatpush1.msra.mxu0 0.0
        %1865 = vmatprep.subr.mxu0 0.0
        %1866 = vmatpush1.msra.mxu0 0.0
        %1867 = vmatprep.subr.mxu0 0.0
        %1868 = vmatpush1.msra.mxu0 0.0
        %1869 = vmatprep.subr.mxu0 0.0
        %1870 = vmatpush1.msra.mxu0 0.0
        %1871 = vmatprep.mubr.f32.mxu0 0.0
        %1872 = vmatmul.mubr.f32.gmra.mrb[0].mxu0 %v1805
        %v1873 = vpop.f32.mrb[0].mxu0
        %v1874 = vadd.f32 0.0, %v1873
        %v1875 = vpop.f32.mrb[0].mxu0
        %1876 = vdwg.mxu0
        %s1877 = sld [smem:[#allocation3 + $0x3]]
        %p1878 = scmp.ne.s32.totalorder %s1877, 0
        %s1879 = scalar_lea.vmem %s384, 24 [#allocation5]
        %v1880 = vld [vmem:[%s1879] sm:$0xff]
        %s1881 = scalar_select %p1878, 1, 0
        %v1882 = vstv %s1881
        %vm1883 = vcmp.eq.s32.totalorder %v1882, 1
        %v1884 = vsel %vm1883, %v1880, %v1874
        %1885 = vmatprep.subr.mxu0 0.0
        %1886 = vmatpush1.msra.mxu0 %v1046
        %1887 = vmatprep.subr.mxu0 0.0
        %1888 = vmatpush1.msra.mxu0 %v1047
        %1889 = vmatprep.subr.mxu0 0.0
        %1890 = vmatpush1.msra.mxu0 %v1048
        %1891 = vmatprep.subr.mxu0 0.0
        %1892 = vmatpush1.msra.mxu0 %v1049
        %1893 = vmatprep.subr.mxu0 0.0
        %1894 = vmatpush1.msra.mxu0 0.0
        %1895 = vmatprep.subr.mxu0 0.0
        %1896 = vmatpush1.msra.mxu0 0.0
        %1897 = vmatprep.subr.mxu0 0.0
        %1898 = vmatpush1.msra.mxu0 0.0
        %1899 = vmatprep.subr.mxu0 0.0
        %1900 = vmatpush1.msra.mxu0 0.0
        %1901 = vmatprep.subr.mxu0 0.0
        %1902 = vmatpush1.msra.mxu0 0.0
        %1903 = vmatprep.subr.mxu0 0.0
        %1904 = vmatpush1.msra.mxu0 0.0
        %1905 = vmatprep.subr.mxu0 0.0
        %1906 = vmatpush1.msra.mxu0 0.0
        %1907 = vmatprep.subr.mxu0 0.0
        %1908 = vmatpush1.msra.mxu0 0.0
        %1909 = vmatprep.subr.mxu0 0.0
        %1910 = vmatpush1.msra.mxu0 0.0
        %1911 = vmatprep.subr.mxu0 0.0
        %1912 = vmatpush1.msra.mxu0 0.0
        %1913 = vmatprep.subr.mxu0 0.0
        %1914 = vmatpush1.msra.mxu0 0.0
        %1915 = vmatprep.subr.mxu0 0.0
        %1916 = vmatpush1.msra.mxu0 0.0
        %1917 = vmatprep.subr.mxu0 0.0
        %1918 = vmatpush1.msra.mxu0 0.0
        %1919 = vmatprep.subr.mxu0 0.0
        %1920 = vmatpush1.msra.mxu0 0.0
        %1921 = vmatprep.subr.mxu0 0.0
        %1922 = vmatpush1.msra.mxu0 0.0
        %1923 = vmatprep.subr.mxu0 0.0
        %1924 = vmatpush1.msra.mxu0 0.0
        %1925 = vmatprep.subr.mxu0 0.0
        %1926 = vmatpush1.msra.mxu0 0.0
        %1927 = vmatprep.subr.mxu0 0.0
        %1928 = vmatpush1.msra.mxu0 0.0
        %1929 = vmatprep.subr.mxu0 0.0
        %1930 = vmatpush1.msra.mxu0 0.0
        %1931 = vmatprep.subr.mxu0 0.0
        %1932 = vmatpush1.msra.mxu0 0.0
        %1933 = vmatprep.subr.mxu0 0.0
        %1934 = vmatpush1.msra.mxu0 0.0
        %1935 = vmatprep.subr.mxu0 0.0
        %1936 = vmatpush1.msra.mxu0 0.0
        %1937 = vmatprep.subr.mxu0 0.0
        %1938 = vmatpush1.msra.mxu0 0.0
        %1939 = vmatprep.subr.mxu0 0.0
        %1940 = vmatpush1.msra.mxu0 0.0
        %1941 = vmatprep.subr.mxu0 0.0
        %1942 = vmatpush1.msra.mxu0 0.0
        %1943 = vmatprep.subr.mxu0 0.0
        %1944 = vmatpush1.msra.mxu0 0.0
        %1945 = vmatprep.subr.mxu0 0.0
        %1946 = vmatpush1.msra.mxu0 0.0
        %1947 = vmatprep.subr.mxu0 0.0
        %1948 = vmatpush1.msra.mxu0 0.0
        %1949 = vmatprep.mubr.f32.mxu0 0.0
        %1950 = vmatmul.mubr.f32.gmra.mrb[0].mxu0 %v1709
        %v1951 = vpop.f32.mrb[0].mxu0
        %v1952 = vadd.f32 0.0, %v1951
        %v1953 = vpop.f32.mrb[0].mxu0
        %1954 = vdwg.mxu0
        %v1955 = vadd.f32 %v1884, %v1952
        %v1956 = vxor.u32 %v1955, 2147483648
        %v1957 = vmul.f32 %v1956, 1.442695
        %v1958 = vpow.pop %v1957
        %v1959 = vadd.f32 %v1958, 1.0
        %v1960 = vrcp.pop %v1959
        %v1961 = vmul.f32 1.0, %v1960
        %v1962 = vtanh.pop %v1955
        %v1963 = vmul.f32 %v1961, %v1699
        %1965 = vrot.lane.b32.xlu0 %v1962, 64
        %v1966 = vpop.permute.xlu0 %1965
        %v1968 = vmul.f32 %v1961, %v1966
        %1970 = vrot.lane.b32.xlu0 %v1968, 32
        %v1971 = vpop.permute.xlu0 %1970
        %v1973 = vadd.f32 %v1963, %v1971
        %v1974 = vtanh.pop %v1973
        %1976 = vrot.lane.b32.xlu0 %v1974, 64
        %v1977 = vpop.permute.xlu0 %1976
        %v1979 = vmul.f32 %v1961, %v1977
        %1981 = vrot.lane.b32.xlu0 %v1979, 32
        %v1982 = vpop.permute.xlu0 %1981
        %v1983 = vsel %vm427, %v1982, 0
        %1985 = vmatprep.subr.mxu0 0.0
        %1986 = vmatpush1.msra.mxu0 %v1150
        %1987 = vmatprep.subr.mxu0 0.0
        %1988 = vmatpush1.msra.mxu0 %v1151
        %1989 = vmatprep.subr.mxu0 0.0
        %1990 = vmatpush1.msra.mxu0 %v1152
        %1991 = vmatprep.subr.mxu0 0.0
        %1992 = vmatpush1.msra.mxu0 %v1153
        %1993 = vmatprep.subr.mxu0 0.0
        %1994 = vmatpush1.msra.mxu0 0.0
        %1995 = vmatprep.subr.mxu0 0.0
        %1996 = vmatpush1.msra.mxu0 0.0
        %1997 = vmatprep.subr.mxu0 0.0
        %1998 = vmatpush1.msra.mxu0 0.0
        %1999 = vmatprep.subr.mxu0 0.0
        %2000 = vmatpush1.msra.mxu0 0.0
        %2001 = vmatprep.subr.mxu0 0.0
        %2002 = vmatpush1.msra.mxu0 0.0
        %2003 = vmatprep.subr.mxu0 0.0
        %2004 = vmatpush1.msra.mxu0 0.0
        %2005 = vmatprep.subr.mxu0 0.0
        %2006 = vmatpush1.msra.mxu0 0.0
        %2007 = vmatprep.subr.mxu0 0.0
        %2008 = vmatpush1.msra.mxu0 0.0
        %2009 = vmatprep.subr.mxu0 0.0
        %2010 = vmatpush1.msra.mxu0 0.0
        %2011 = vmatprep.subr.mxu0 0.0
        %2012 = vmatpush1.msra.mxu0 0.0
        %2013 = vmatprep.subr.mxu0 0.0
        %2014 = vmatpush1.msra.mxu0 0.0
        %2015 = vmatprep.subr.mxu0 0.0
        %2016 = vmatpush1.msra.mxu0 0.0
        %2017 = vmatprep.subr.mxu0 0.0
        %2018 = vmatpush1.msra.mxu0 0.0
        %2019 = vmatprep.subr.mxu0 0.0
        %2020 = vmatpush1.msra.mxu0 0.0
        %2021 = vmatprep.subr.mxu0 0.0
        %2022 = vmatpush1.msra.mxu0 0.0
        %2023 = vmatprep.subr.mxu0 0.0
        %2024 = vmatpush1.msra.mxu0 0.0
        %2025 = vmatprep.subr.mxu0 0.0
        %2026 = vmatpush1.msra.mxu0 0.0
        %2027 = vmatprep.subr.mxu0 0.0
        %2028 = vmatpush1.msra.mxu0 0.0
        %2029 = vmatprep.subr.mxu0 0.0
        %2030 = vmatpush1.msra.mxu0 0.0
        %2031 = vmatprep.subr.mxu0 0.0
        %2032 = vmatpush1.msra.mxu0 0.0
        %2033 = vmatprep.subr.mxu0 0.0
        %2034 = vmatpush1.msra.mxu0 0.0
        %2035 = vmatprep.subr.mxu0 0.0
        %2036 = vmatpush1.msra.mxu0 0.0
        %2037 = vmatprep.subr.mxu0 0.0
        %2038 = vmatpush1.msra.mxu0 0.0
        %2039 = vmatprep.subr.mxu0 0.0
        %2040 = vmatpush1.msra.mxu0 0.0
        %2041 = vmatprep.subr.mxu0 0.0
        %2042 = vmatpush1.msra.mxu0 0.0
        %2043 = vmatprep.subr.mxu0 0.0
        %2044 = vmatpush1.msra.mxu0 0.0
        %2045 = vmatprep.subr.mxu0 0.0
        %2046 = vmatpush1.msra.mxu0 0.0
        %2047 = vmatprep.subr.mxu0 0.0
        %2048 = vmatpush1.msra.mxu0 0.0
        %2049 = vmatprep.mubr.f32.mxu0 0.0
        %2050 = vmatmul.mubr.f32.gmra.mrb[0].mxu0 %v1983
        %v2051 = vpop.f32.mrb[0].mxu0
        %v2052 = vadd.f32 %v1043, %v2051
        %v2053 = vpop.f32.mrb[0].mxu0
        %2054 = vdwg.mxu0
        %v2055 = vsel %vm427, %v2052, -inf
        %2056 = vmax.xlane.f32.xlu0 %v2055
        %v2057 = vpop.xlane.xlu0 %2056
        %vm2058 = vcmp.eq.f32.partialorder %v2052, %v2057
        %v2059 = vsel %vm2058, %v1037, 32
        %v2060 = vsel %vm427, %v2059, 2147483647
        %v2061 = vand.u32 %v2060, 65535
        %v2062 = vshra.s32 %v2060, 16
        %v2063 = vcvt.s32.f32 %v2061
        %v2064 = vcvt.s32.f32 %v2062
        %2065 = vmin.xlane.f32.xlu0 %v2064
        %v2066 = vpop.xlane.xlu0 %2065
        %vm2067 = vcmp.eq.f32.partialorder %v2064, %v2066
        %v2068 = vsel %vm2067, %v2063, inf
        %2069 = vmin.xlane.f32.xlu0 %v2068
        %v2070 = vpop.xlane.xlu0 %2069
        %v2071 = vcvt.f32.s32 %v2070
        %v2072 = vcvt.f32.s32 %v2066
        %v2073 = vshll.u32 %v2072, 16
        %v2074 = vadd.s32 %v2073, %v2071
        %vm2075 = vcmp.eq.s32.totalorder %v1037, %v2074
        %v2076 = vsel %vm2075, 1, 0
        %v2077 = vcvt.s32.f32 %v2076
        %v2079 = vsel %vm427, %v2077, 0
        %2081 = vmatprep.subr.mxu0 0.0
        %2082 = vmatpush1.msra.mxu0 %v1252
        %2083 = vmatprep.subr.mxu0 0.0
        %2084 = vmatpush1.msra.mxu0 %v1253
        %2085 = vmatprep.subr.mxu0 0.0
        %2086 = vmatpush1.msra.mxu0 %v1254
        %2087 = vmatprep.subr.mxu0 0.0
        %2088 = vmatpush1.msra.mxu0 %v1255
        %2089 = vmatprep.subr.mxu0 0.0
        %2090 = vmatpush1.msra.mxu0 0.0
        %2091 = vmatprep.subr.mxu0 0.0
        %2092 = vmatpush1.msra.mxu0 0.0
        %2093 = vmatprep.subr.mxu0 0.0
        %2094 = vmatpush1.msra.mxu0 0.0
        %2095 = vmatprep.subr.mxu0 0.0
        %2096 = vmatpush1.msra.mxu0 0.0
        %2097 = vmatprep.subr.mxu0 0.0
        %2098 = vmatpush1.msra.mxu0 0.0
        %2099 = vmatprep.subr.mxu0 0.0
        %2100 = vmatpush1.msra.mxu0 0.0
        %2101 = vmatprep.subr.mxu0 0.0
        %2102 = vmatpush1.msra.mxu0 0.0
        %2103 = vmatprep.subr.mxu0 0.0
        %2104 = vmatpush1.msra.mxu0 0.0
        %2105 = vmatprep.subr.mxu0 0.0
        %2106 = vmatpush1.msra.mxu0 0.0
        %2107 = vmatprep.subr.mxu0 0.0
        %2108 = vmatpush1.msra.mxu0 0.0
        %2109 = vmatprep.subr.mxu0 0.0
        %2110 = vmatpush1.msra.mxu0 0.0
        %2111 = vmatprep.subr.mxu0 0.0
        %2112 = vmatpush1.msra.mxu0 0.0
        %2113 = vmatprep.subr.mxu0 0.0
        %2114 = vmatpush1.msra.mxu0 0.0
        %2115 = vmatprep.subr.mxu0 0.0
        %2116 = vmatpush1.msra.mxu0 0.0
        %2117 = vmatprep.subr.mxu0 0.0
        %2118 = vmatpush1.msra.mxu0 0.0
        %2119 = vmatprep.subr.mxu0 0.0
        %2120 = vmatpush1.msra.mxu0 0.0
        %2121 = vmatprep.subr.mxu0 0.0
        %2122 = vmatpush1.msra.mxu0 0.0
        %2123 = vmatprep.subr.mxu0 0.0
        %2124 = vmatpush1.msra.mxu0 0.0
        %2125 = vmatprep.subr.mxu0 0.0
        %2126 = vmatpush1.msra.mxu0 0.0
        %2127 = vmatprep.subr.mxu0 0.0
        %2128 = vmatpush1.msra.mxu0 0.0
        %2129 = vmatprep.subr.mxu0 0.0
        %2130 = vmatpush1.msra.mxu0 0.0
        %2131 = vmatprep.subr.mxu0 0.0
        %2132 = vmatpush1.msra.mxu0 0.0
        %2133 = vmatprep.subr.mxu0 0.0
        %2134 = vmatpush1.msra.mxu0 0.0
        %2135 = vmatprep.subr.mxu0 0.0
        %2136 = vmatpush1.msra.mxu0 0.0
        %2137 = vmatprep.subr.mxu0 0.0
        %2138 = vmatpush1.msra.mxu0 0.0
        %2139 = vmatprep.subr.mxu0 0.0
        %2140 = vmatpush1.msra.mxu0 0.0
        %2141 = vmatprep.subr.mxu0 0.0
        %2142 = vmatpush1.msra.mxu0 0.0
        %2143 = vmatprep.subr.mxu0 0.0
        %2144 = vmatpush1.msra.mxu0 0.0
        %2145 = vmatprep.mubr.f32.mxu0 0.0
        %2146 = vmatmul.mubr.f32.gmra.mrb[0].mxu0 %v2079
        %v2147 = vpop.f32.mrb[0].mxu0
        %v2148 = vadd.f32 0.0, %v2147
        %v2149 = vpop.f32.mrb[0].mxu0
        %2150 = vdwg.mxu0
        %s2151 = sld [smem:[#allocation3 + $0x4]]
        %p2152 = scmp.ne.s32.totalorder %s2151, 0
        %s2153 = scalar_lea.vmem %s384, 32 [#allocation5]
        %v2154 = vld [vmem:[%s2153] sm:$0xff]
        %s2155 = scalar_select %p2152, 1, 0
        %v2156 = vstv %s2155
        %vm2157 = vcmp.eq.s32.totalorder %v2156, 1
        %v2158 = vsel %vm2157, %v2154, %v2148
        %2159 = vmatprep.subr.mxu0 0.0
        %2160 = vmatpush1.msra.mxu0 %v1046
        %2161 = vmatprep.subr.mxu0 0.0
        %2162 = vmatpush1.msra.mxu0 %v1047
        %2163 = vmatprep.subr.mxu0 0.0
        %2164 = vmatpush1.msra.mxu0 %v1048
        %2165 = vmatprep.subr.mxu0 0.0
        %2166 = vmatpush1.msra.mxu0 %v1049
        %2167 = vmatprep.subr.mxu0 0.0
        %2168 = vmatpush1.msra.mxu0 0.0
        %2169 = vmatprep.subr.mxu0 0.0
        %2170 = vmatpush1.msra.mxu0 0.0
        %2171 = vmatprep.subr.mxu0 0.0
        %2172 = vmatpush1.msra.mxu0 0.0
        %2173 = vmatprep.subr.mxu0 0.0
        %2174 = vmatpush1.msra.mxu0 0.0
        %2175 = vmatprep.subr.mxu0 0.0
        %2176 = vmatpush1.msra.mxu0 0.0
        %2177 = vmatprep.subr.mxu0 0.0
        %2178 = vmatpush1.msra.mxu0 0.0
        %2179 = vmatprep.subr.mxu0 0.0
        %2180 = vmatpush1.msra.mxu0 0.0
        %2181 = vmatprep.subr.mxu0 0.0
        %2182 = vmatpush1.msra.mxu0 0.0
        %2183 = vmatprep.subr.mxu0 0.0
        %2184 = vmatpush1.msra.mxu0 0.0
        %2185 = vmatprep.subr.mxu0 0.0
        %2186 = vmatpush1.msra.mxu0 0.0
        %2187 = vmatprep.subr.mxu0 0.0
        %2188 = vmatpush1.msra.mxu0 0.0
        %2189 = vmatprep.subr.mxu0 0.0
        %2190 = vmatpush1.msra.mxu0 0.0
        %2191 = vmatprep.subr.mxu0 0.0
        %2192 = vmatpush1.msra.mxu0 0.0
        %2193 = vmatprep.subr.mxu0 0.0
        %2194 = vmatpush1.msra.mxu0 0.0
        %2195 = vmatprep.subr.mxu0 0.0
        %2196 = vmatpush1.msra.mxu0 0.0
        %2197 = vmatprep.subr.mxu0 0.0
        %2198 = vmatpush1.msra.mxu0 0.0
        %2199 = vmatprep.subr.mxu0 0.0
        %2200 = vmatpush1.msra.mxu0 0.0
        %2201 = vmatprep.subr.mxu0 0.0
        %2202 = vmatpush1.msra.mxu0 0.0
        %2203 = vmatprep.subr.mxu0 0.0
        %2204 = vmatpush1.msra.mxu0 0.0
        %2205 = vmatprep.subr.mxu0 0.0
        %2206 = vmatpush1.msra.mxu0 0.0
        %2207 = vmatprep.subr.mxu0 0.0
        %2208 = vmatpush1.msra.mxu0 0.0
        %2209 = vmatprep.subr.mxu0 0.0
        %2210 = vmatpush1.msra.mxu0 0.0
        %2211 = vmatprep.subr.mxu0 0.0
        %2212 = vmatpush1.msra.mxu0 0.0
        %2213 = vmatprep.subr.mxu0 0.0
        %2214 = vmatpush1.msra.mxu0 0.0
        %2215 = vmatprep.subr.mxu0 0.0
        %2216 = vmatpush1.msra.mxu0 0.0
        %2217 = vmatprep.subr.mxu0 0.0
        %2218 = vmatpush1.msra.mxu0 0.0
        %2219 = vmatprep.subr.mxu0 0.0
        %2220 = vmatpush1.msra.mxu0 0.0
        %2221 = vmatprep.subr.mxu0 0.0
        %2222 = vmatpush1.msra.mxu0 0.0
        %2223 = vmatprep.mubr.f32.mxu0 0.0
        %2224 = vmatmul.mubr.f32.gmra.mrb[0].mxu0 %v1983
        %v2225 = vpop.f32.mrb[0].mxu0
        %v2226 = vadd.f32 0.0, %v2225
        %v2227 = vpop.f32.mrb[0].mxu0
        %2228 = vdwg.mxu0
        %v2229 = vadd.f32 %v2158, %v2226
        %v2230 = vxor.u32 %v2229, 2147483648
        %v2231 = vmul.f32 %v2230, 1.442695
        %v2232 = vpow.pop %v2231
        %v2233 = vadd.f32 %v2232, 1.0
        %v2234 = vrcp.pop %v2233
        %v2235 = vmul.f32 1.0, %v2234
        %v2236 = vtanh.pop %v2229
        %v2237 = vmul.f32 %v2235, %v1973
        %2239 = vrot.lane.b32.xlu0 %v2236, 64
        %v2240 = vpop.permute.xlu0 %2239
        %v2242 = vmul.f32 %v2235, %v2240
        %2244 = vrot.lane.b32.xlu0 %v2242, 32
        %v2245 = vpop.permute.xlu0 %2244
        %v2247 = vadd.f32 %v2237, %v2245
        %v2248 = vtanh.pop %v2247
        %2250 = vrot.lane.b32.xlu0 %v2248, 64
        %v2251 = vpop.permute.xlu0 %2250
        %v2253 = vmul.f32 %v2235, %v2251
        %2255 = vrot.lane.b32.xlu0 %v2253, 32
        %v2256 = vpop.permute.xlu0 %2255
        %v2257 = vsel %vm427, %v2256, 0
        %2259 = vmatprep.subr.mxu0 0.0
        %2260 = vmatpush1.msra.mxu0 %v1150
        %2261 = vmatprep.subr.mxu0 0.0
        %2262 = vmatpush1.msra.mxu0 %v1151
        %2263 = vmatprep.subr.mxu0 0.0
        %2264 = vmatpush1.msra.mxu0 %v1152
        %2265 = vmatprep.subr.mxu0 0.0
        %2266 = vmatpush1.msra.mxu0 %v1153
        %2267 = vmatprep.subr.mxu0 0.0
        %2268 = vmatpush1.msra.mxu0 0.0
        %2269 = vmatprep.subr.mxu0 0.0
        %2270 = vmatpush1.msra.mxu0 0.0
        %2271 = vmatprep.subr.mxu0 0.0
        %2272 = vmatpush1.msra.mxu0 0.0
        %2273 = vmatprep.subr.mxu0 0.0
        %2274 = vmatpush1.msra.mxu0 0.0
        %2275 = vmatprep.subr.mxu0 0.0
        %2276 = vmatpush1.msra.mxu0 0.0
        %2277 = vmatprep.subr.mxu0 0.0
        %2278 = vmatpush1.msra.mxu0 0.0
        %2279 = vmatprep.subr.mxu0 0.0
        %2280 = vmatpush1.msra.mxu0 0.0
        %2281 = vmatprep.subr.mxu0 0.0
        %2282 = vmatpush1.msra.mxu0 0.0
        %2283 = vmatprep.subr.mxu0 0.0
        %2284 = vmatpush1.msra.mxu0 0.0
        %2285 = vmatprep.subr.mxu0 0.0
        %2286 = vmatpush1.msra.mxu0 0.0
        %2287 = vmatprep.subr.mxu0 0.0
        %2288 = vmatpush1.msra.mxu0 0.0
        %2289 = vmatprep.subr.mxu0 0.0
        %2290 = vmatpush1.msra.mxu0 0.0
        %2291 = vmatprep.subr.mxu0 0.0
        %2292 = vmatpush1.msra.mxu0 0.0
        %2293 = vmatprep.subr.mxu0 0.0
        %2294 = vmatpush1.msra.mxu0 0.0
        %2295 = vmatprep.subr.mxu0 0.0
        %2296 = vmatpush1.msra.mxu0 0.0
        %2297 = vmatprep.subr.mxu0 0.0
        %2298 = vmatpush1.msra.mxu0 0.0
        %2299 = vmatprep.subr.mxu0 0.0
        %2300 = vmatpush1.msra.mxu0 0.0
        %2301 = vmatprep.subr.mxu0 0.0
        %2302 = vmatpush1.msra.mxu0 0.0
        %2303 = vmatprep.subr.mxu0 0.0
        %2304 = vmatpush1.msra.mxu0 0.0
        %2305 = vmatprep.subr.mxu0 0.0
        %2306 = vmatpush1.msra.mxu0 0.0
        %2307 = vmatprep.subr.mxu0 0.0
        %2308 = vmatpush1.msra.mxu0 0.0
        %2309 = vmatprep.subr.mxu0 0.0
        %2310 = vmatpush1.msra.mxu0 0.0
        %2311 = vmatprep.subr.mxu0 0.0
        %2312 = vmatpush1.msra.mxu0 0.0
        %2313 = vmatprep.subr.mxu0 0.0
        %2314 = vmatpush1.msra.mxu0 0.0
        %2315 = vmatprep.subr.mxu0 0.0
        %2316 = vmatpush1.msra.mxu0 0.0
        %2317 = vmatprep.subr.mxu0 0.0
        %2318 = vmatpush1.msra.mxu0 0.0
        %2319 = vmatprep.subr.mxu0 0.0
        %2320 = vmatpush1.msra.mxu0 0.0
        %2321 = vmatprep.subr.mxu0 0.0
        %2322 = vmatpush1.msra.mxu0 0.0
        %2323 = vmatprep.mubr.f32.mxu0 0.0
        %2324 = vmatmul.mubr.f32.gmra.mrb[0].mxu0 %v2257
        %v2325 = vpop.f32.mrb[0].mxu0
        %v2326 = vadd.f32 %v1043, %v2325
        %v2327 = vpop.f32.mrb[0].mxu0
        %2328 = vdwg.mxu0
        %v2329 = vsel %vm427, %v2326, -inf
        %2330 = vmax.xlane.f32.xlu0 %v2329
        %v2331 = vpop.xlane.xlu0 %2330
        %vm2332 = vcmp.eq.f32.partialorder %v2326, %v2331
        %v2333 = vsel %vm2332, %v1037, 32
        %v2334 = vsel %vm427, %v2333, 2147483647
        %v2335 = vand.u32 %v2334, 65535
        %v2336 = vshra.s32 %v2334, 16
        %v2337 = vcvt.s32.f32 %v2335
        %v2338 = vcvt.s32.f32 %v2336
        %2339 = vmin.xlane.f32.xlu0 %v2338
        %v2340 = vpop.xlane.xlu0 %2339
        %vm2341 = vcmp.eq.f32.partialorder %v2338, %v2340
        %v2342 = vsel %vm2341, %v2337, inf
        %2343 = vmin.xlane.f32.xlu0 %v2342
        %v2344 = vpop.xlane.xlu0 %2343
        %v2345 = vcvt.f32.s32 %v2344
        %v2346 = vcvt.f32.s32 %v2340
        %v2347 = vshll.u32 %v2346, 16
        %v2348 = vadd.s32 %v2347, %v2345
        %vm2349 = vcmp.eq.s32.totalorder %v1037, %v2348
        %v2350 = vsel %vm2349, 1, 0
        %v2351 = vcvt.s32.f32 %v2350
        %v2353 = vsel %vm427, %v2351, 0
        %2355 = vmatprep.subr.mxu0 0.0
        %2356 = vmatpush1.msra.mxu0 %v1252
        %2357 = vmatprep.subr.mxu0 0.0
        %2358 = vmatpush1.msra.mxu0 %v1253
        %2359 = vmatprep.subr.mxu0 0.0
        %2360 = vmatpush1.msra.mxu0 %v1254
        %2361 = vmatprep.subr.mxu0 0.0
        %2362 = vmatpush1.msra.mxu0 %v1255
        %2363 = vmatprep.subr.mxu0 0.0
        %2364 = vmatpush1.msra.mxu0 0.0
        %2365 = vmatprep.subr.mxu0 0.0
        %2366 = vmatpush1.msra.mxu0 0.0
        %2367 = vmatprep.subr.mxu0 0.0
        %2368 = vmatpush1.msra.mxu0 0.0
        %2369 = vmatprep.subr.mxu0 0.0
        %2370 = vmatpush1.msra.mxu0 0.0
        %2371 = vmatprep.subr.mxu0 0.0
        %2372 = vmatpush1.msra.mxu0 0.0
        %2373 = vmatprep.subr.mxu0 0.0
        %2374 = vmatpush1.msra.mxu0 0.0
        %2375 = vmatprep.subr.mxu0 0.0
        %2376 = vmatpush1.msra.mxu0 0.0
        %2377 = vmatprep.subr.mxu0 0.0
        %2378 = vmatpush1.msra.mxu0 0.0
        %2379 = vmatprep.subr.mxu0 0.0
        %2380 = vmatpush1.msra.mxu0 0.0
        %2381 = vmatprep.subr.mxu0 0.0
        %2382 = vmatpush1.msra.mxu0 0.0
        %2383 = vmatprep.subr.mxu0 0.0
        %2384 = vmatpush1.msra.mxu0 0.0
        %2385 = vmatprep.subr.mxu0 0.0
        %2386 = vmatpush1.msra.mxu0 0.0
        %2387 = vmatprep.subr.mxu0 0.0
        %2388 = vmatpush1.msra.mxu0 0.0
        %2389 = vmatprep.subr.mxu0 0.0
        %2390 = vmatpush1.msra.mxu0 0.0
        %2391 = vmatprep.subr.mxu0 0.0
        %2392 = vmatpush1.msra.mxu0 0.0
        %2393 = vmatprep.subr.mxu0 0.0
        %2394 = vmatpush1.msra.mxu0 0.0
        %2395 = vmatprep.subr.mxu0 0.0
        %2396 = vmatpush1.msra.mxu0 0.0
        %2397 = vmatprep.subr.mxu0 0.0
        %2398 = vmatpush1.msra.mxu0 0.0
        %2399 = vmatprep.subr.mxu0 0.0
        %2400 = vmatpush1.msra.mxu0 0.0
        %2401 = vmatprep.subr.mxu0 0.0
        %2402 = vmatpush1.msra.mxu0 0.0
        %2403 = vmatprep.subr.mxu0 0.0
        %2404 = vmatpush1.msra.mxu0 0.0
        %2405 = vmatprep.subr.mxu0 0.0
        %2406 = vmatpush1.msra.mxu0 0.0
        %2407 = vmatprep.subr.mxu0 0.0
        %2408 = vmatpush1.msra.mxu0 0.0
        %2409 = vmatprep.subr.mxu0 0.0
        %2410 = vmatpush1.msra.mxu0 0.0
        %2411 = vmatprep.subr.mxu0 0.0
        %2412 = vmatpush1.msra.mxu0 0.0
        %2413 = vmatprep.subr.mxu0 0.0
        %2414 = vmatpush1.msra.mxu0 0.0
        %2415 = vmatprep.subr.mxu0 0.0
        %2416 = vmatpush1.msra.mxu0 0.0
        %2417 = vmatprep.subr.mxu0 0.0
        %2418 = vmatpush1.msra.mxu0 0.0
        %2419 = vmatprep.mubr.f32.mxu0 0.0
        %2420 = vmatmul.mubr.f32.gmra.mrb[0].mxu0 %v2353
        %v2421 = vpop.f32.mrb[0].mxu0
        %v2422 = vadd.f32 0.0, %v2421
        %v2423 = vpop.f32.mrb[0].mxu0
        %2424 = vdwg.mxu0
        %s2425 = sld [smem:[#allocation3 + $0x5]]
        %p2426 = scmp.ne.s32.totalorder %s2425, 0
        %s2427 = scalar_lea.vmem %s384, 40 [#allocation5]
        %v2428 = vld [vmem:[%s2427] sm:$0xff]
        %s2429 = scalar_select %p2426, 1, 0
        %v2430 = vstv %s2429
        %vm2431 = vcmp.eq.s32.totalorder %v2430, 1
        %v2432 = vsel %vm2431, %v2428, %v2422
        %2433 = vmatprep.subr.mxu0 0.0
        %2434 = vmatpush1.msra.mxu0 %v1046
        %2435 = vmatprep.subr.mxu0 0.0
        %2436 = vmatpush1.msra.mxu0 %v1047
        %2437 = vmatprep.subr.mxu0 0.0
        %2438 = vmatpush1.msra.mxu0 %v1048
        %2439 = vmatprep.subr.mxu0 0.0
        %2440 = vmatpush1.msra.mxu0 %v1049
        %2441 = vmatprep.subr.mxu0 0.0
        %2442 = vmatpush1.msra.mxu0 0.0
        %2443 = vmatprep.subr.mxu0 0.0
        %2444 = vmatpush1.msra.mxu0 0.0
        %2445 = vmatprep.subr.mxu0 0.0
        %2446 = vmatpush1.msra.mxu0 0.0
        %2447 = vmatprep.subr.mxu0 0.0
        %2448 = vmatpush1.msra.mxu0 0.0
        %2449 = vmatprep.subr.mxu0 0.0
        %2450 = vmatpush1.msra.mxu0 0.0
        %2451 = vmatprep.subr.mxu0 0.0
        %2452 = vmatpush1.msra.mxu0 0.0
        %2453 = vmatprep.subr.mxu0 0.0
        %2454 = vmatpush1.msra.mxu0 0.0
        %2455 = vmatprep.subr.mxu0 0.0
        %2456 = vmatpush1.msra.mxu0 0.0
        %2457 = vmatprep.subr.mxu0 0.0
        %2458 = vmatpush1.msra.mxu0 0.0
        %2459 = vmatprep.subr.mxu0 0.0
        %2460 = vmatpush1.msra.mxu0 0.0
        %2461 = vmatprep.subr.mxu0 0.0
        %2462 = vmatpush1.msra.mxu0 0.0
        %2463 = vmatprep.subr.mxu0 0.0
        %2464 = vmatpush1.msra.mxu0 0.0
        %2465 = vmatprep.subr.mxu0 0.0
        %2466 = vmatpush1.msra.mxu0 0.0
        %2467 = vmatprep.subr.mxu0 0.0
        %2468 = vmatpush1.msra.mxu0 0.0
        %2469 = vmatprep.subr.mxu0 0.0
        %2470 = vmatpush1.msra.mxu0 0.0
        %2471 = vmatprep.subr.mxu0 0.0
        %2472 = vmatpush1.msra.mxu0 0.0
        %2473 = vmatprep.subr.mxu0 0.0
        %2474 = vmatpush1.msra.mxu0 0.0
        %2475 = vmatprep.subr.mxu0 0.0
        %2476 = vmatpush1.msra.mxu0 0.0
        %2477 = vmatprep.subr.mxu0 0.0
        %2478 = vmatpush1.msra.mxu0 0.0
        %2479 = vmatprep.subr.mxu0 0.0
        %2480 = vmatpush1.msra.mxu0 0.0
        %2481 = vmatprep.subr.mxu0 0.0
        %2482 = vmatpush1.msra.mxu0 0.0
        %2483 = vmatprep.subr.mxu0 0.0
        %2484 = vmatpush1.msra.mxu0 0.0
        %2485 = vmatprep.subr.mxu0 0.0
        %2486 = vmatpush1.msra.mxu0 0.0
        %2487 = vmatprep.subr.mxu0 0.0
        %2488 = vmatpush1.msra.mxu0 0.0
        %2489 = vmatprep.subr.mxu0 0.0
        %2490 = vmatpush1.msra.mxu0 0.0
        %2491 = vmatprep.subr.mxu0 0.0
        %2492 = vmatpush1.msra.mxu0 0.0
        %2493 = vmatprep.subr.mxu0 0.0
        %2494 = vmatpush1.msra.mxu0 0.0
        %2495 = vmatprep.subr.mxu0 0.0
        %2496 = vmatpush1.msra.mxu0 0.0
        %2497 = vmatprep.mubr.f32.mxu0 0.0
        %2498 = vmatmul.mubr.f32.gmra.mrb[0].mxu0 %v2257
        %v2499 = vpop.f32.mrb[0].mxu0
        %v2500 = vadd.f32 0.0, %v2499
        %v2501 = vpop.f32.mrb[0].mxu0
        %2502 = vdwg.mxu0
        %v2503 = vadd.f32 %v2432, %v2500
        %v2504 = vxor.u32 %v2503, 2147483648
        %v2505 = vmul.f32 %v2504, 1.442695
        %v2506 = vpow.pop %v2505
        %v2507 = vadd.f32 %v2506, 1.0
        %v2508 = vrcp.pop %v2507
        %v2509 = vmul.f32 1.0, %v2508
        %v2510 = vtanh.pop %v2503
        %v2511 = vmul.f32 %v2509, %v2247
        %2513 = vrot.lane.b32.xlu0 %v2510, 64
        %v2514 = vpop.permute.xlu0 %2513
        %v2516 = vmul.f32 %v2509, %v2514
        %2518 = vrot.lane.b32.xlu0 %v2516, 32
        %v2519 = vpop.permute.xlu0 %2518
        %v2521 = vadd.f32 %v2511, %v2519
        %v2522 = vtanh.pop %v2521
        %2524 = vrot.lane.b32.xlu0 %v2522, 64
        %v2525 = vpop.permute.xlu0 %2524
        %v2527 = vmul.f32 %v2509, %v2525
        %2529 = vrot.lane.b32.xlu0 %v2527, 32
        %v2530 = vpop.permute.xlu0 %2529
        %v2531 = vsel %vm427, %v2530, 0
        %2533 = vmatprep.subr.mxu0 0.0
        %2534 = vmatpush1.msra.mxu0 %v1150
        %2535 = vmatprep.subr.mxu0 0.0
        %2536 = vmatpush1.msra.mxu0 %v1151
        %2537 = vmatprep.subr.mxu0 0.0
        %2538 = vmatpush1.msra.mxu0 %v1152
        %2539 = vmatprep.subr.mxu0 0.0
        %2540 = vmatpush1.msra.mxu0 %v1153
        %2541 = vmatprep.subr.mxu0 0.0
        %2542 = vmatpush1.msra.mxu0 0.0
        %2543 = vmatprep.subr.mxu0 0.0
        %2544 = vmatpush1.msra.mxu0 0.0
        %2545 = vmatprep.subr.mxu0 0.0
        %2546 = vmatpush1.msra.mxu0 0.0
        %2547 = vmatprep.subr.mxu0 0.0
        %2548 = vmatpush1.msra.mxu0 0.0
        %2549 = vmatprep.subr.mxu0 0.0
        %2550 = vmatpush1.msra.mxu0 0.0
        %2551 = vmatprep.subr.mxu0 0.0
        %2552 = vmatpush1.msra.mxu0 0.0
        %2553 = vmatprep.subr.mxu0 0.0
        %2554 = vmatpush1.msra.mxu0 0.0
        %2555 = vmatprep.subr.mxu0 0.0
        %2556 = vmatpush1.msra.mxu0 0.0
        %2557 = vmatprep.subr.mxu0 0.0
        %2558 = vmatpush1.msra.mxu0 0.0
        %2559 = vmatprep.subr.mxu0 0.0
        %2560 = vmatpush1.msra.mxu0 0.0
        %2561 = vmatprep.subr.mxu0 0.0
        %2562 = vmatpush1.msra.mxu0 0.0
        %2563 = vmatprep.subr.mxu0 0.0
        %2564 = vmatpush1.msra.mxu0 0.0
        %2565 = vmatprep.subr.mxu0 0.0
        %2566 = vmatpush1.msra.mxu0 0.0
        %2567 = vmatprep.subr.mxu0 0.0
        %2568 = vmatpush1.msra.mxu0 0.0
        %2569 = vmatprep.subr.mxu0 0.0
        %2570 = vmatpush1.msra.mxu0 0.0
        %2571 = vmatprep.subr.mxu0 0.0
        %2572 = vmatpush1.msra.mxu0 0.0
        %2573 = vmatprep.subr.mxu0 0.0
        %2574 = vmatpush1.msra.mxu0 0.0
        %2575 = vmatprep.subr.mxu0 0.0
        %2576 = vmatpush1.msra.mxu0 0.0
        %2577 = vmatprep.subr.mxu0 0.0
        %2578 = vmatpush1.msra.mxu0 0.0
        %2579 = vmatprep.subr.mxu0 0.0
        %2580 = vmatpush1.msra.mxu0 0.0
        %2581 = vmatprep.subr.mxu0 0.0
        %2582 = vmatpush1.msra.mxu0 0.0
        %2583 = vmatprep.subr.mxu0 0.0
        %2584 = vmatpush1.msra.mxu0 0.0
        %2585 = vmatprep.subr.mxu0 0.0
        %2586 = vmatpush1.msra.mxu0 0.0
        %2587 = vmatprep.subr.mxu0 0.0
        %2588 = vmatpush1.msra.mxu0 0.0
        %2589 = vmatprep.subr.mxu0 0.0
        %2590 = vmatpush1.msra.mxu0 0.0
        %2591 = vmatprep.subr.mxu0 0.0
        %2592 = vmatpush1.msra.mxu0 0.0
        %2593 = vmatprep.subr.mxu0 0.0
        %2594 = vmatpush1.msra.mxu0 0.0
        %2595 = vmatprep.subr.mxu0 0.0
        %2596 = vmatpush1.msra.mxu0 0.0
        %2597 = vmatprep.mubr.f32.mxu0 0.0
        %2598 = vmatmul.mubr.f32.gmra.mrb[0].mxu0 %v2531
        %v2599 = vpop.f32.mrb[0].mxu0
        %v2600 = vadd.f32 %v1043, %v2599
        %v2601 = vpop.f32.mrb[0].mxu0
        %2602 = vdwg.mxu0
        %v2603 = vsel %vm427, %v2600, -inf
        %2604 = vmax.xlane.f32.xlu0 %v2603
        %v2605 = vpop.xlane.xlu0 %2604
        %vm2606 = vcmp.eq.f32.partialorder %v2600, %v2605
        %v2607 = vsel %vm2606, %v1037, 32
        %v2608 = vsel %vm427, %v2607, 2147483647
        %v2609 = vand.u32 %v2608, 65535
        %v2610 = vshra.s32 %v2608, 16
        %v2611 = vcvt.s32.f32 %v2609
        %v2612 = vcvt.s32.f32 %v2610
        %2613 = vmin.xlane.f32.xlu0 %v2612
        %v2614 = vpop.xlane.xlu0 %2613
        %vm2615 = vcmp.eq.f32.partialorder %v2612, %v2614
        %v2616 = vsel %vm2615, %v2611, inf
        %2617 = vmin.xlane.f32.xlu0 %v2616
        %v2618 = vpop.xlane.xlu0 %2617
        %v2619 = vcvt.f32.s32 %v2618
        %v2620 = vcvt.f32.s32 %v2614
        %v2621 = vshll.u32 %v2620, 16
        %v2622 = vadd.s32 %v2621, %v2619
        %vm2623 = vcmp.eq.s32.totalorder %v1037, %v2622
        %v2624 = vsel %vm2623, 1, 0
        %v2625 = vcvt.s32.f32 %v2624
        %v2627 = vsel %vm427, %v2625, 0
        %2629 = vmatprep.subr.mxu0 0.0
        %2630 = vmatpush1.msra.mxu0 %v1252
        %2631 = vmatprep.subr.mxu0 0.0
        %2632 = vmatpush1.msra.mxu0 %v1253
        %2633 = vmatprep.subr.mxu0 0.0
        %2634 = vmatpush1.msra.mxu0 %v1254
        %2635 = vmatprep.subr.mxu0 0.0
        %2636 = vmatpush1.msra.mxu0 %v1255
        %2637 = vmatprep.subr.mxu0 0.0
        %2638 = vmatpush1.msra.mxu0 0.0
        %2639 = vmatprep.subr.mxu0 0.0
        %2640 = vmatpush1.msra.mxu0 0.0
        %2641 = vmatprep.subr.mxu0 0.0
        %2642 = vmatpush1.msra.mxu0 0.0
        %2643 = vmatprep.subr.mxu0 0.0
        %2644 = vmatpush1.msra.mxu0 0.0
        %2645 = vmatprep.subr.mxu0 0.0
        %2646 = vmatpush1.msra.mxu0 0.0
        %2647 = vmatprep.subr.mxu0 0.0
        %2648 = vmatpush1.msra.mxu0 0.0
        %2649 = vmatprep.subr.mxu0 0.0
        %2650 = vmatpush1.msra.mxu0 0.0
        %2651 = vmatprep.subr.mxu0 0.0
        %2652 = vmatpush1.msra.mxu0 0.0
        %2653 = vmatprep.subr.mxu0 0.0
        %2654 = vmatpush1.msra.mxu0 0.0
        %2655 = vmatprep.subr.mxu0 0.0
        %2656 = vmatpush1.msra.mxu0 0.0
        %2657 = vmatprep.subr.mxu0 0.0
        %2658 = vmatpush1.msra.mxu0 0.0
        %2659 = vmatprep.subr.mxu0 0.0
        %2660 = vmatpush1.msra.mxu0 0.0
        %2661 = vmatprep.subr.mxu0 0.0
        %2662 = vmatpush1.msra.mxu0 0.0
        %2663 = vmatprep.subr.mxu0 0.0
        %2664 = vmatpush1.msra.mxu0 0.0
        %2665 = vmatprep.subr.mxu0 0.0
        %2666 = vmatpush1.msra.mxu0 0.0
        %2667 = vmatprep.subr.mxu0 0.0
        %2668 = vmatpush1.msra.mxu0 0.0
        %2669 = vmatprep.subr.mxu0 0.0
        %2670 = vmatpush1.msra.mxu0 0.0
        %2671 = vmatprep.subr.mxu0 0.0
        %2672 = vmatpush1.msra.mxu0 0.0
        %2673 = vmatprep.subr.mxu0 0.0
        %2674 = vmatpush1.msra.mxu0 0.0
        %2675 = vmatprep.subr.mxu0 0.0
        %2676 = vmatpush1.msra.mxu0 0.0
        %2677 = vmatprep.subr.mxu0 0.0
        %2678 = vmatpush1.msra.mxu0 0.0
        %2679 = vmatprep.subr.mxu0 0.0
        %2680 = vmatpush1.msra.mxu0 0.0
        %2681 = vmatprep.subr.mxu0 0.0
        %2682 = vmatpush1.msra.mxu0 0.0
        %2683 = vmatprep.subr.mxu0 0.0
        %2684 = vmatpush1.msra.mxu0 0.0
        %2685 = vmatprep.subr.mxu0 0.0
        %2686 = vmatpush1.msra.mxu0 0.0
        %2687 = vmatprep.subr.mxu0 0.0
        %2688 = vmatpush1.msra.mxu0 0.0
        %2689 = vmatprep.subr.mxu0 0.0
        %2690 = vmatpush1.msra.mxu0 0.0
        %2691 = vmatprep.subr.mxu0 0.0
        %2692 = vmatpush1.msra.mxu0 0.0
        %2693 = vmatprep.mubr.f32.mxu0 0.0
        %2694 = vmatmul.mubr.f32.gmra.mrb[0].mxu0 %v2627
        %v2695 = vpop.f32.mrb[0].mxu0
        %v2696 = vadd.f32 0.0, %v2695
        %v2697 = vpop.f32.mrb[0].mxu0
        %2698 = vdwg.mxu0
        %s2699 = sld [smem:[#allocation3 + $0x6]]
        %p2700 = scmp.ne.s32.totalorder %s2699, 0
        %s2701 = scalar_lea.vmem %s384, 48 [#allocation5]
        %v2702 = vld [vmem:[%s2701] sm:$0xff]
        %s2703 = scalar_select %p2700, 1, 0
        %v2704 = vstv %s2703
        %vm2705 = vcmp.eq.s32.totalorder %v2704, 1
        %v2706 = vsel %vm2705, %v2702, %v2696
        %2707 = vmatprep.subr.mxu0 0.0
        %2708 = vmatpush1.msra.mxu0 %v1046
        %2709 = vmatprep.subr.mxu0 0.0
        %2710 = vmatpush1.msra.mxu0 %v1047
        %2711 = vmatprep.subr.mxu0 0.0
        %2712 = vmatpush1.msra.mxu0 %v1048
        %2713 = vmatprep.subr.mxu0 0.0
        %2714 = vmatpush1.msra.mxu0 %v1049
        %2715 = vmatprep.subr.mxu0 0.0
        %2716 = vmatpush1.msra.mxu0 0.0
        %2717 = vmatprep.subr.mxu0 0.0
        %2718 = vmatpush1.msra.mxu0 0.0
        %2719 = vmatprep.subr.mxu0 0.0
        %2720 = vmatpush1.msra.mxu0 0.0
        %2721 = vmatprep.subr.mxu0 0.0
        %2722 = vmatpush1.msra.mxu0 0.0
        %2723 = vmatprep.subr.mxu0 0.0
        %2724 = vmatpush1.msra.mxu0 0.0
        %2725 = vmatprep.subr.mxu0 0.0
        %2726 = vmatpush1.msra.mxu0 0.0
        %2727 = vmatprep.subr.mxu0 0.0
        %2728 = vmatpush1.msra.mxu0 0.0
        %2729 = vmatprep.subr.mxu0 0.0
        %2730 = vmatpush1.msra.mxu0 0.0
        %2731 = vmatprep.subr.mxu0 0.0
        %2732 = vmatpush1.msra.mxu0 0.0
        %2733 = vmatprep.subr.mxu0 0.0
        %2734 = vmatpush1.msra.mxu0 0.0
        %2735 = vmatprep.subr.mxu0 0.0
        %2736 = vmatpush1.msra.mxu0 0.0
        %2737 = vmatprep.subr.mxu0 0.0
        %2738 = vmatpush1.msra.mxu0 0.0
        %2739 = vmatprep.subr.mxu0 0.0
        %2740 = vmatpush1.msra.mxu0 0.0
        %2741 = vmatprep.subr.mxu0 0.0
        %2742 = vmatpush1.msra.mxu0 0.0
        %2743 = vmatprep.subr.mxu0 0.0
        %2744 = vmatpush1.msra.mxu0 0.0
        %2745 = vmatprep.subr.mxu0 0.0
        %2746 = vmatpush1.msra.mxu0 0.0
        %2747 = vmatprep.subr.mxu0 0.0
        %2748 = vmatpush1.msra.mxu0 0.0
        %2749 = vmatprep.subr.mxu0 0.0
        %2750 = vmatpush1.msra.mxu0 0.0
        %2751 = vmatprep.subr.mxu0 0.0
        %2752 = vmatpush1.msra.mxu0 0.0
        %2753 = vmatprep.subr.mxu0 0.0
        %2754 = vmatpush1.msra.mxu0 0.0
        %2755 = vmatprep.subr.mxu0 0.0
        %2756 = vmatpush1.msra.mxu0 0.0
        %2757 = vmatprep.subr.mxu0 0.0
        %2758 = vmatpush1.msra.mxu0 0.0
        %2759 = vmatprep.subr.mxu0 0.0
        %2760 = vmatpush1.msra.mxu0 0.0
        %2761 = vmatprep.subr.mxu0 0.0
        %2762 = vmatpush1.msra.mxu0 0.0
        %2763 = vmatprep.subr.mxu0 0.0
        %2764 = vmatpush1.msra.mxu0 0.0
        %2765 = vmatprep.subr.mxu0 0.0
        %2766 = vmatpush1.msra.mxu0 0.0
        %2767 = vmatprep.subr.mxu0 0.0
        %2768 = vmatpush1.msra.mxu0 0.0
        %2769 = vmatprep.subr.mxu0 0.0
        %2770 = vmatpush1.msra.mxu0 0.0
        %2771 = vmatprep.mubr.f32.mxu0 0.0
        %2772 = vmatmul.mubr.f32.gmra.mrb[0].mxu0 %v2531
        %v2773 = vpop.f32.mrb[0].mxu0
        %v2774 = vadd.f32 0.0, %v2773
        %v2775 = vpop.f32.mrb[0].mxu0
        %2776 = vdwg.mxu0
        %v2777 = vadd.f32 %v2706, %v2774
        %v2778 = vxor.u32 %v2777, 2147483648
        %v2779 = vmul.f32 %v2778, 1.442695
        %v2780 = vpow.pop %v2779
        %v2781 = vadd.f32 %v2780, 1.0
        %v2782 = vrcp.pop %v2781
        %v2783 = vmul.f32 1.0, %v2782
        %v2784 = vtanh.pop %v2777
        %v2785 = vmul.f32 %v2783, %v2521
        %2787 = vrot.lane.b32.xlu0 %v2784, 64
        %v2788 = vpop.permute.xlu0 %2787
        %v2790 = vmul.f32 %v2783, %v2788
        %2792 = vrot.lane.b32.xlu0 %v2790, 32
        %v2793 = vpop.permute.xlu0 %2792
        %v2795 = vadd.f32 %v2785, %v2793
        %v2796 = vtanh.pop %v2795
        %2798 = vrot.lane.b32.xlu0 %v2796, 64
        %v2799 = vpop.permute.xlu0 %2798
        %v2801 = vmul.f32 %v2783, %v2799
        %2803 = vrot.lane.b32.xlu0 %v2801, 32
        %v2804 = vpop.permute.xlu0 %2803
        %v2805 = vsel %vm427, %v2804, 0
        %2807 = vmatprep.subr.mxu0 0.0
        %2808 = vmatpush1.msra.mxu0 %v1150
        %2809 = vmatprep.subr.mxu0 0.0
        %2810 = vmatpush1.msra.mxu0 %v1151
        %2811 = vmatprep.subr.mxu0 0.0
        %2812 = vmatpush1.msra.mxu0 %v1152
        %2813 = vmatprep.subr.mxu0 0.0
        %2814 = vmatpush1.msra.mxu0 %v1153
        %2815 = vmatprep.subr.mxu0 0.0
        %2816 = vmatpush1.msra.mxu0 0.0
        %2817 = vmatprep.subr.mxu0 0.0
        %2818 = vmatpush1.msra.mxu0 0.0
        %2819 = vmatprep.subr.mxu0 0.0
        %2820 = vmatpush1.msra.mxu0 0.0
        %2821 = vmatprep.subr.mxu0 0.0
        %2822 = vmatpush1.msra.mxu0 0.0
        %2823 = vmatprep.subr.mxu0 0.0
        %2824 = vmatpush1.msra.mxu0 0.0
        %2825 = vmatprep.subr.mxu0 0.0
        %2826 = vmatpush1.msra.mxu0 0.0
        %2827 = vmatprep.subr.mxu0 0.0
        %2828 = vmatpush1.msra.mxu0 0.0
        %2829 = vmatprep.subr.mxu0 0.0
        %2830 = vmatpush1.msra.mxu0 0.0
        %2831 = vmatprep.subr.mxu0 0.0
        %2832 = vmatpush1.msra.mxu0 0.0
        %2833 = vmatprep.subr.mxu0 0.0
        %2834 = vmatpush1.msra.mxu0 0.0
        %2835 = vmatprep.subr.mxu0 0.0
        %2836 = vmatpush1.msra.mxu0 0.0
        %2837 = vmatprep.subr.mxu0 0.0
        %2838 = vmatpush1.msra.mxu0 0.0
        %2839 = vmatprep.subr.mxu0 0.0
        %2840 = vmatpush1.msra.mxu0 0.0
        %2841 = vmatprep.subr.mxu0 0.0
        %2842 = vmatpush1.msra.mxu0 0.0
        %2843 = vmatprep.subr.mxu0 0.0
        %2844 = vmatpush1.msra.mxu0 0.0
        %2845 = vmatprep.subr.mxu0 0.0
        %2846 = vmatpush1.msra.mxu0 0.0
        %2847 = vmatprep.subr.mxu0 0.0
        %2848 = vmatpush1.msra.mxu0 0.0
        %2849 = vmatprep.subr.mxu0 0.0
        %2850 = vmatpush1.msra.mxu0 0.0
        %2851 = vmatprep.subr.mxu0 0.0
        %2852 = vmatpush1.msra.mxu0 0.0
        %2853 = vmatprep.subr.mxu0 0.0
        %2854 = vmatpush1.msra.mxu0 0.0
        %2855 = vmatprep.subr.mxu0 0.0
        %2856 = vmatpush1.msra.mxu0 0.0
        %2857 = vmatprep.subr.mxu0 0.0
        %2858 = vmatpush1.msra.mxu0 0.0
        %2859 = vmatprep.subr.mxu0 0.0
        %2860 = vmatpush1.msra.mxu0 0.0
        %2861 = vmatprep.subr.mxu0 0.0
        %2862 = vmatpush1.msra.mxu0 0.0
        %2863 = vmatprep.subr.mxu0 0.0
        %2864 = vmatpush1.msra.mxu0 0.0
        %2865 = vmatprep.subr.mxu0 0.0
        %2866 = vmatpush1.msra.mxu0 0.0
        %2867 = vmatprep.subr.mxu0 0.0
        %2868 = vmatpush1.msra.mxu0 0.0
        %2869 = vmatprep.subr.mxu0 0.0
        %2870 = vmatpush1.msra.mxu0 0.0
        %2871 = vmatprep.mubr.f32.mxu0 0.0
        %2872 = vmatmul.mubr.f32.gmra.mrb[0].mxu0 %v2805
        %v2873 = vpop.f32.mrb[0].mxu0
        %v2874 = vadd.f32 %v1043, %v2873
        %v2875 = vpop.f32.mrb[0].mxu0
        %2876 = vdwg.mxu0
        %2878 = vrot.lane.b32.xlu0 %v1226, 32
        %v2879 = vpop.permute.xlu0 %2878
        %2882 = vrot.lane.b32.xlu0 %v1504, 64
        %v2883 = vpop.permute.xlu0 %2882
        %2886 = vrot.lane.b32.xlu0 %v1778, 96
        %v2887 = vpop.permute.xlu0 %2886
        %2890 = vrot.lane.b32.xlu0 %v2326, 32
        %v2891 = vpop.permute.xlu0 %2890
        %2894 = vrot.lane.b32.xlu0 %v2600, 64
        %v2895 = vpop.permute.xlu0 %2894
        %2898 = vrot.lane.b32.xlu0 %v2874, 96
        %v2899 = vpop.permute.xlu0 %2898
        %v2901 = vsel %vm427, 0.0, %v2879
        %vm2902 = vcmask 523264
        %v2903 = vsel %vm2902, %v2901, %v2883
        %vm2904 = vcmask 785408
        %v2905 = vsel %vm2904, %v2903, %v2887
        %v2906 = vsel %vm427, %v2052, %v2891
        %v2907 = vsel %vm2902, %v2906, %v2895
        %v2908 = vsel %vm2904, %v2907, %v2899
        %2909 = vst [vmem:[%s421] sm:$0xff] %v2905
        %2910 = vst [vmem:[%s421 + $0x8] sm:$0xff] %v2908
        %p2911 = scmp.lt.s32.totalorder %s25, 1
        %s2912 = scalar_select %p2911, %s25, 1
        %s2913 = smul.addr %s2912, 2
        %s2914 = smul.addr %s2913, 8
        %s2915 = scalar_lea.vmem %s8, %s2914
        // Predicated region
        $region125: #{seq2seq_forward.1} parent=115 // pred_check
          %p2916 = pneg %p200
        $region126: #{seq2seq_forward.1} parent=115 // pred_check_branch
          %2918 = sbr.rel (%p2916) target = $region128
        $region127: #{seq2seq_forward.1} parent=115 // pred_region
          _
        $region128: #{seq2seq_forward.1} parent=115 // pred_fallthru
          _
      $region116: #{seq2seq_forward.1} parent=5 // pred_fallthru
        _
      %p2919 = scmp.le.s32.totalorder 2, %s20
      // Predicated region
      $region129: #{seq2seq_forward.1} parent=5 // pred_check
        %p2920 = pneg %p2919
      $region130: #{seq2seq_forward.1} parent=5 // pred_check_branch
        %2922 = sbr.rel (%p2920) target = $region132
      $region131: #{seq2seq_forward.1} parent=5 // pred_region
        %s2923 = ssub.s32 %s20, 2
        // Predicated region
        $region133: #{seq2seq_forward.1} parent=131 // pred_check
          %p2924 = pneg %p206
        $region134: #{seq2seq_forward.1} parent=131 // pred_check_branch
          %2926 = sbr.rel (%p2924) target = $region136
        $region135: #{seq2seq_forward.1} parent=131 // pred_region
          %p2927 = scmp.lt.s32.totalorder %s26, 1
          %s2928 = scalar_select %p2927, %s26, 1
          %s2929 = smul.addr %s2928, 2
          %s2930 = smul.addr %s2929, 8
          %s2931 = scalar_lea.vmem %s8, %s2930
        $region136: #{seq2seq_forward.1} parent=131 // pred_fallthru
          _
      $region132: #{seq2seq_forward.1} parent=5 // pred_fallthru
        _
    $region6: #{seq2seq_forward.1} parent=1 // loop_footer
      %s24 = sadd.s32 1, %s20
    $region7: #{seq2seq_forward.1} parent=1 // loop_footer_branch
      %19 = sbr.rel target = $region3
    $region8: #{seq2seq_forward.1} parent=1 // loop_exit
      _

</llo_original>
